<compile_context>
chip_gen: v7x
topology: tpu7x:2x2x1
jax: 0.10.0
libtpu: 0.0.40
codegen_flags: <defaults>
</compile_context>

<pallas_src>
import functools
import numpy as np
import jax
import jax.numpy as jnp
from jax.experimental import pallas as pl
from jax.experimental.pallas import tpu as pltpu  # noqa: F401  (TPU backend)

PATCH_LEN = 8
SLIDING_WINDOW = 4
NUM_LAYERS = 2
NHEAD_LOW = 2
NHEAD_HIGH = 1
N_CLASSES = 5
LN_EPS = 1e-5          # TransformerEncoderLayer layer norms
HEAD_LN_EPS = 1e-6     # Head layer norm
C_PAD = 128            # lane-dense padded width for slabs / logits
NEG_INF = -1e30        # additive mask value for cross-window attention

# ---- slab row layout (shared by host packers and kernel) -------------------
N_ENC = 2 * NUM_LAYERS            # total encoder layers (low stack + high stack)
ROWS_PER_LAYER = 8                # bqkv, bo, b1, b2, g1, be1, g2, be2
ROW_HEAD_G = N_ENC * ROWS_PER_LAYER
ROW_HEAD_B = ROW_HEAD_G + 1
ROW_HEAD_BIAS = ROW_HEAD_G + 2
ROW_CLS_EMB = ROW_HEAD_G + 3
ROW_HIGH_BIAS = ROW_HEAD_G + 4


# --------------------------------------------------------------------------
# Elementwise math helpers (shared by the Pallas kernel and the pure-JAX
# reference so the two paths use identical formulations).
# --------------------------------------------------------------------------
def _erf(x):
    # Abramowitz & Stegun 7.1.26, |err| < 1.5e-7 (Mosaic has no native erf).
    p = 0.3275911
    a1, a2, a3, a4, a5 = (0.254829592, -0.284496736, 1.421413741,
                          -1.453152027, 1.061405429)
    sgn = jnp.where(x >= 0.0, 1.0, -1.0)
    ax = jnp.abs(x)
    t = 1.0 / (1.0 + p * ax)
    poly = ((((a5 * t + a4) * t + a3) * t + a2) * t + a1) * t
    return sgn * (1.0 - poly * jnp.exp(-ax * ax))


def _gelu_exact(x):
    # PyTorch nn.GELU() default (erf-based).
    return 0.5 * x * (1.0 + _erf(x * (1.0 / np.sqrt(2.0))))


def _layer_norm(x, gamma, beta, eps):
    # fused single-pass form: var = E[x^2] - mu^2 (same in kernel & reference)
    mu = jnp.mean(x, axis=-1, keepdims=True)
    var = jnp.mean(x * x, axis=-1, keepdims=True) - mu * mu
    return (x - mu) * jax.lax.rsqrt(var + eps) * gamma + beta


def _bdot(a, b):
    # bf16 MXU matmul with f32 accumulation (same convention in kernel & ref).
    return jnp.dot(a.astype(jnp.bfloat16), b.astype(jnp.bfloat16),
                   preferred_element_type=jnp.float32)


def _bdot_nt(a, b):
    # a @ b.T without materializing the transpose (NT dot_general).
    return jax.lax.dot_general(
        a.astype(jnp.bfloat16), b.astype(jnp.bfloat16),
        dimension_numbers=(((1,), (1,)), ((), ())),
        preferred_element_type=jnp.float32)


def _bmatmul(a, b):
    # batched bf16 matmul (reference only).
    return jnp.matmul(a.astype(jnp.bfloat16), b.astype(jnp.bfloat16),
                      preferred_element_type=jnp.float32)


# --------------------------------------------------------------------------
# Encoder layer used inside the fused kernel (head-stacked attention).
# --------------------------------------------------------------------------
def _encoder_layer(x, bias, nhead, head_masks, wqkv, bqkv, wo, bo,
                   w1, b1, w2, b2, g1, be1, g2, be2):
    """One TransformerEncoderLayer on a flattened (N, D) slab.

    `bias` is an additive block-diagonal mask: (N, N) for nhead == 1, or
    (nhead*N, N) (vertically tiled) for the head-stacked multi-head path.
    The 1/sqrt(head_dim) scale is pre-folded into the Q columns of wqkv/bqkv.
    `head_masks` is a list of (1, D) 0/1 lane masks (one per head).
    """
    D = x.shape[-1]
    N = x.shape[0]
    qkv = _bdot(x, wqkv) + bqkv                       # (N, 3D), f32
    q = qkv[:, :D]
    k = qkv[:, D:2 * D]
    v = qkv[:, 2 * D:3 * D]

    if nhead == 1:
        q_st = q                                      # (N, D)
    else:
        # stack heads along sublanes: one tall matmul instead of a head loop
        q_st = jnp.concatenate([q * m for m in head_masks], axis=0)  # (H*N, D)

    s = _bdot_nt(q_st, k) + bias                      # (H*N, N)
    s = s - jnp.max(s, axis=-1, keepdims=True)
    e = jnp.exp(s)
    p = e / jnp.sum(e, axis=-1, keepdims=True)        # exact softmax
    pv = _bdot(p, v)                                  # (H*N, D)

    if nhead == 1:
        attn = pv
    else:
        attn = pv[:N, :] * head_masks[0]
        for h in range(1, nhead):
            attn = attn + pv[h * N:(h + 1) * N, :] * head_masks[h]

    attn = _bdot(attn, wo) + bo
    src = _layer_norm(x + attn, g1, be1, LN_EPS)
    ff = _bdot(_gelu_exact(_bdot(src, w1) + b1), w2) + b2
    return _layer_norm(src + ff, g2, be2, LN_EPS)


# --------------------------------------------------------------------------
# Fused Pallas kernel: 3 inputs (tokens, bf16 weight slab, f32 param slab).
# --------------------------------------------------------------------------
def hier_xfmr_kernel(x_ref, w_ref, p_ref, o_ref, *, batch, nw):
    D = x_ref.shape[1]
    SW = SLIDING_WINDOW
    NL = x_ref.shape[0]                 # batch * nw * SW
    NH = batch * (nw + 1)
    HD = D // NHEAD_LOW
    shift = int(np.log2(SW))            # SW is a power of two

    # ---- in-kernel constants (iota + shift/compare; no operand DMAs) -------
    ri = jax.lax.broadcasted_iota(jnp.int32, (NL, NL), 0)
    ci = jax.lax.broadcasted_iota(jnp.int32, (NL, NL), 1)
    same_win = jnp.right_shift(ri, shift) == jnp.right_shift(ci, shift)
    low_bias1 = jnp.where(same_win, 0.0, NEG_INF).astype(jnp.float32)
    low_bias = jnp.concatenate([low_bias1] * NHEAD_LOW, axis=0)   # (H*NL, NL)

    lane = jax.lax.broadcasted_iota(jnp.int32, (1, D), 1)
    head_masks = [((lane >= h * HD) & (lane < (h + 1) * HD)).astype(jnp.float32)
                  for h in range(NHEAD_LOW)]

    # pooling matrix: rows [0,batch) are CLS rows (all-zero), row batch+w
    # averages the SW tokens of window w.
    rp = jax.lax.broadcasted_iota(jnp.int32, (NH, NL), 0)
    cp = jax.lax.broadcasted_iota(jnp.int32, (NH, NL), 1)
    pool = jnp.where((rp >= batch) &
                     (jnp.right_shift(cp, shift) == rp - batch),
                     1.0 / SW, 0.0).astype(jnp.float32)
    rr = jax.lax.broadcasted_iota(jnp.int32, (NH, 1), 0)
    cls_mask = (rr < batch).astype(jnp.float32)

    high_bias = p_ref[ROW_HIGH_BIAS:ROW_HIGH_BIAS + NH, :NH]      # (NH, NH)

    # ---- static slab slicing helpers ---------------------------------------
    def layer_weights(L):
        base = 4 * D * L
        return (w_ref[base:base + D, :3 * D],            # Wqkv^T (scaled Q)
                w_ref[base + D:base + 2 * D, :D],        # Wo^T
                w_ref[base + 2 * D:base + 3 * D, :D],    # W1^T
                w_ref[base + 3 * D:base + 4 * D, :D])    # W2^T

    def layer_params(L):
        base = ROWS_PER_LAYER * L
        return (p_ref[base + 0:base + 1, :3 * D],        # bqkv (scaled Q)
                p_ref[base + 1:base + 2, :D],            # bo
                p_ref[base + 2:base + 3, :D],            # b1
                p_ref[base + 3:base + 4, :D],            # b2
                p_ref[base + 4:base + 5, :D],            # g1
                p_ref[base + 5:base + 6, :D],            # be1
                p_ref[base + 6:base + 7, :D],            # g2
                p_ref[base + 7:base + 8, :D])            # be2

    # ---- low-level transformer on the flattened (b*nw*SW, D) token slab ----
    x = x_ref[...]
    for L in range(NUM_LAYERS):
        wqkv, wo, w1, w2 = layer_weights(L)
        bqkv, bo, b1, b2, g1, be1, g2, be2 = layer_params(L)
        x = _encoder_layer(x, low_bias, NHEAD_LOW, head_masks,
                           wqkv, bqkv, wo, bo, w1, b1, w2, b2,
                           g1, be1, g2, be2)
    # TODO(synk): the low-level Head output `llt` is discarded by
    # HierXFMR.forward, so it is not computed here.

    # ---- window-mean pooling + class token (CLS rows first in the slab) ----
    # tiny matmul; HIGHEST precision so it matches an exact f32 mean.
    ce = p_ref[ROW_CLS_EMB:ROW_CLS_EMB + 1, :D]
    xh = jnp.dot(pool, x, preferred_element_type=jnp.float32,
                 precision=jax.lax.Precision.HIGHEST) + cls_mask * ce
    # (the fresh zeros position Parameter in HighLevelTransformer is a no-op)

    # ---- high-level transformer (nhead=1) over the (b*(nw+1), D) slab ------
    for L in range(NUM_LAYERS):
        wqkv, wo, w1, w2 = layer_weights(NUM_LAYERS + L)
        bqkv, bo, b1, b2, g1, be1, g2, be2 = layer_params(NUM_LAYERS + L)
        xh = _encoder_layer(xh, high_bias, NHEAD_HIGH, None,
                            wqkv, bqkv, wo, bo, w1, b1, w2, b2,
                            g1, be1, g2, be2)

    # ---- classification head (mode2='class'): CLS rows are rows [0, batch) -
    cls = _layer_norm(xh[:batch, :],
                      p_ref[ROW_HEAD_G:ROW_HEAD_G + 1, :D],
                      p_ref[ROW_HEAD_B:ROW_HEAD_B + 1, :D], HEAD_LN_EPS)
    head_w = w_ref[4 * D * N_ENC:4 * D * N_ENC + D, :]            # (D, 128)
    head_bias = p_ref[ROW_HEAD_BIAS:ROW_HEAD_BIAS + 1, :]         # (1, 128)
    o_ref[...] = (_bdot(cls, head_w) + head_bias).astype(o_ref.dtype)


# --------------------------------------------------------------------------
# Host-side glue: tokenizer and slab packing.
# --------------------------------------------------------------------------
def tokenize(x):
    """'b h c (s d) -> (b h s) (d c)' + torch.unfold windowing -> (b*nw,SW,D)."""
    b, h, c, L = x.shape
    s = L // PATCH_LEN
    D = PATCH_LEN * c
    xt = x.reshape(b, h, c, s, PATCH_LEN)
    xt = jnp.transpose(xt, (0, 1, 3, 4, 2)).reshape(b, h * s, D)
    step = SLIDING_WINDOW // 2
    nw = (h * s - SLIDING_WINDOW) // step + 1          # cfg.seq_len_hlt
    idx = np.arange(nw)[:, None] * step + np.arange(SLIDING_WINDOW)[None, :]
    xw = xt[:, idx, :]                                  # (b, nw, SW, D)
    return xw.reshape(b * nw, SLIDING_WINDOW, D), nw


def _pad_lanes(a, width=C_PAD):
    a = jnp.asarray(a, jnp.float32)
    pad = width - a.shape[-1]
    if pad <= 0:
        return a[..., :width]
    return jnp.pad(a, [(0, 0)] * (a.ndim - 1) + [(0, pad)])


def pack_weight_slab(params, D):
    """One bf16 slab: per layer [Wqkv^T | Wo^T | W1^T | W2^T] row blocks of
    D rows each (lanes zero-padded to 128), low layers then high layers,
    followed by the (D,128) class-head weight.  QKV fused; 1/sqrt(hd) folded
    into the Q columns."""
    rows = []
    for layers, nhead in ((params["low_layers"], NHEAD_LOW),
                          (params["high_layers"], NHEAD_HIGH)):
        scale = 1.0 / np.sqrt(D // nhead)
        for (wqkv, bqkv, wo, bo, w1, b1, w2, b2, g1, be1, g2, be2) in layers:
            wq, wk, wv = wqkv[:D], wqkv[D:2 * D], wqkv[2 * D:]
            wqkv_t = jnp.concatenate([wq.T * scale, wk.T, wv.T], axis=1)
            for w in (wqkv_t, wo.T, w1.T, w2.T):
                rows.append(_pad_lanes(w))
    wh = params["head"][2]
    rows.append(_pad_lanes(wh.T))                       # (D, 128)
    return jnp.concatenate(rows, axis=0).astype(jnp.bfloat16)


def pack_param_slab(params, D, b, nw):
    """One f32 slab: all biases / LN params / head params / class embedding
    (one lane-padded (1,128) row each) + the (NH,NH) high-level attention
    bias for the reordered slab [CLS rows first, then window means]."""
    def row(v):
        return _pad_lanes(jnp.asarray(v, jnp.float32).reshape(1, -1))

    rows = []
    for layers, nhead in ((params["low_layers"], NHEAD_LOW),
                          (params["high_layers"], NHEAD_HIGH)):
        scale = 1.0 / np.sqrt(D // nhead)
        for (wqkv, bqkv, wo, bo, w1, b1, w2, b2, g1, be1, g2, be2) in layers:
            bq, bk, bv = bqkv[:D], bqkv[D:2 * D], bqkv[2 * D:]
            rows += [row(jnp.concatenate([bq * scale, bk, bv])),
                     row(bo), row(b1), row(b2),
                     row(g1), row(be1), row(g2), row(be2)]
    g, beta, wh, bh = params["head"]
    rows += [row(g), row(beta), row(bh), row(params["class_embedding"])]

    # high-level block-diagonal bias (needs div by nw -> built on host).
    seq = np.concatenate([np.arange(b), np.repeat(np.arange(b), nw)])
    hb = np.where(seq[:, None] == seq[None, :], 0.0, NEG_INF).astype(np.float32)
    rows.append(_pad_lanes(jnp.asarray(hb)))
    return jnp.concatenate(rows, axis=0)


def hier_xfmr_forward_pallas(x, params):
    b = x.shape[0]
    D = PATCH_LEN * x.shape[2]
    xw, nw = tokenize(x)                               # (b*nw, SW, D)
    x_flat = xw.reshape(b * nw * SLIDING_WINDOW, D)

    w_slab = pack_weight_slab(params, D)               # (17*D, 128) bf16
    p_slab = pack_param_slab(params, D, b, nw)         # (36+NH, 128) f32

    kernel = functools.partial(hier_xfmr_kernel, batch=b, nw=nw)
    out = pl.pallas_call(                              # no grid: all in VMEM
        kernel,
        out_shape=jax.ShapeDtypeStruct((b, C_PAD), jnp.float32),
    )(x_flat, w_slab, p_slab)
    # TODO(synk): batch more samples per call / shard windows across v7x's two
    # TensorCores with a parallel grid once the token slab grows.
    return out[:, :N_CLASSES]


# --------------------------------------------------------------------------
# Pure-JAX reference (PyTorch semantics, same bf16 matmul precision).
# --------------------------------------------------------------------------
def encoder_layer_ref(x, lp, nhead):
    wqkv, bqkv, wo, bo, w1, b1, w2, b2, g1, be1, g2, be2 = lp
    B, S, D = x.shape
    hd = D // nhead
    wq, wk, wv = wqkv[:D], wqkv[D:2 * D], wqkv[2 * D:]
    bq, bk, bv = bqkv[:D], bqkv[D:2 * D], bqkv[2 * D:]
    q = _bdot(x, wq.T) + bq
    k = _bdot(x, wk.T) + bk
    v = _bdot(x, wv.T) + bv
    q = q.reshape(B, S, nhead, hd).transpose(0, 2, 1, 3) / np.sqrt(hd)
    k = k.reshape(B, S, nhead, hd).transpose(0, 2, 1, 3)
    v = v.reshape(B, S, nhead, hd).transpose(0, 2, 1, 3)
    s = _bmatmul(q, k.transpose(0, 1, 3, 2))
    s = s - jnp.max(s, axis=-1, keepdims=True)
    e = jnp.exp(s)
    p = e / jnp.sum(e, axis=-1, keepdims=True)
    a = _bmatmul(p, v)
    a = a.transpose(0, 2, 1, 3).reshape(B, S, D)
    a = _bdot(a, wo.T) + bo
    src = _layer_norm(x + a, g1, be1, LN_EPS)
    ff = _bdot(_gelu_exact(_bdot(src, w1.T) + b1), w2.T) + b2
    return _layer_norm(src + ff, g2, be2, LN_EPS)


def hier_xfmr_forward_ref(x, params):
    b = x.shape[0]
    D = PATCH_LEN * x.shape[2]
    xw, nw = tokenize(x)
    for lp in params["low_layers"]:
        xw = encoder_layer_ref(xw, lp, NHEAD_LOW)
    xh = jnp.mean(xw, axis=1).reshape(b, nw, D)
    cls = jnp.broadcast_to(params["class_embedding"].reshape(1, 1, D), (b, 1, D))
    xh = jnp.concatenate([cls, xh], axis=1)
    for lp in params["high_layers"]:
        xh = encoder_layer_ref(xh, lp, NHEAD_HIGH)
    g, bta, wh, bh = params["head"]
    xn = _layer_norm(xh, g, bta, HEAD_LN_EPS)
    return _bdot(xn[:, 0, :], wh.T) + bh


# --------------------------------------------------------------------------
# Deterministic parameter init (PyTorch-shaped raw parameters).
# --------------------------------------------------------------------------
def init_encoder_layer(key, D, scale=0.05):
    ks = jax.random.split(key, 8)
    f32 = jnp.float32
    wqkv = scale * jax.random.normal(ks[0], (3 * D, D), f32)
    bqkv = 0.02 * jax.random.normal(ks[1], (3 * D,), f32)
    wo = scale * jax.random.normal(ks[2], (D, D), f32)
    bo = 0.02 * jax.random.normal(ks[3], (D,), f32)
    w1 = scale * jax.random.normal(ks[4], (D, D), f32)
    b1 = 0.02 * jax.random.normal(ks[5], (D,), f32)
    w2 = scale * jax.random.normal(ks[6], (D, D), f32)
    b2 = 0.02 * jax.random.normal(ks[7], (D,), f32)
    g1 = jnp.ones((D,), f32); be1 = jnp.zeros((D,), f32)
    g2 = jnp.ones((D,), f32); be2 = jnp.zeros((D,), f32)
    return (wqkv, bqkv, wo, bo, w1, b1, w2, b2, g1, be1, g2, be2)


def init_params(key, D, n_classes):
    keys = jax.random.split(key, 2 * NUM_LAYERS + 3)
    low = [init_encoder_layer(keys[i], D) for i in range(NUM_LAYERS)]
    high = [init_encoder_layer(keys[NUM_LAYERS + i], D)
            for i in range(NUM_LAYERS)]
    wh = 0.05 * jax.random.normal(keys[-3], (n_classes, D), jnp.float32)
    bh = 0.02 * jax.random.normal(keys[-2], (n_classes,), jnp.float32)
    head = (jnp.ones((D,), jnp.float32), jnp.zeros((D,), jnp.float32), wh, bh)
    cls_emb = 0.02 * jax.random.normal(keys[-1], (1, 1, D), jnp.float32)
    return {"low_layers": low, "high_layers": high,
            "class_embedding": cls_emb, "head": head}
# TODO(synk): the low-level Head ('global' mode) and PositionEmbedding
# parameters are omitted since HierXFMR.forward never uses their outputs.


if __name__ == "__main__":
    key = jax.random.PRNGKey(0)
    kx, kp = jax.random.split(key)

    # Input consistent with the tokenizer: (b, h, c, L), L = s * patch_len
    b, h, c, L = 2, 2, 4, 32
    D = PATCH_LEN * c                                   # d_model = 32
    x = jax.random.normal(kx, (b, h, c, L), jnp.float32)
    params = init_params(kp, D, N_CLASSES)

    fwd_pallas = jax.jit(lambda xx: hier_xfmr_forward_pallas(xx, params))
    out = jax.block_until_ready(fwd_pallas(x))          # (b, n_classes)
    assert out.shape == (b, N_CLASSES)

    ref = hier_xfmr_forward_ref(x, params)
    np.testing.assert_allclose(np.asarray(out), np.asarray(ref),
                               rtol=2e-3, atol=2e-3)
    print("KERNEL_OK")
</pallas_src>

<mosaic_0001>
module attributes {stable_mosaic.version = 11 : i64} {
  func.func @hier_xfmr_kernel(%arg0: memref<24x32xf32, #tpu.memory_space<vmem>>, %arg1: memref<544x128xbf16, #tpu.memory_space<vmem>>, %arg2: memref<44x128xf32, #tpu.memory_space<vmem>>, %arg3: memref<2x128xf32, #tpu.memory_space<vmem>>) attributes {dimension_semantics = [], scalar_prefetch = 0 : i64, scratch_operands = 0 : i64, tpu.core_type = #tpu.core_type<tc>} {
    %0 = tpu.iota {dimensions = array<i32: 0>} : vector<24x24xi32>
    %1 = tpu.iota {dimensions = array<i32: 1>} : vector<24x24xi32>
    %c2_i32 = arith.constant 2 : i32
    %2 = vector.broadcast %c2_i32 : i32 to vector<24x24xi32>
    %3 = arith.shrsi %0, %2 : vector<24x24xi32>
    %c2_i32_0 = arith.constant 2 : i32
    %4 = vector.broadcast %c2_i32_0 : i32 to vector<24x24xi32>
    %5 = arith.shrsi %1, %4 : vector<24x24xi32>
    %6 = arith.cmpi eq, %3, %5 : vector<24x24xi32>
    %cst = arith.constant 0.000000e+00 : f32
    %cst_1 = arith.constant -1.000000e+30 : f32
    %7 = vector.broadcast %cst : f32 to vector<24x24xf32>
    %8 = vector.broadcast %cst_1 : f32 to vector<24x24xf32>
    %9 = arith.select %6, %7, %8 : vector<24x24xi1>, vector<24x24xf32>
    %10 = tpu.concatenate %9, %9 in 0 : vector<24x24xf32>, vector<24x24xf32> -> vector<48x24xf32>
    %11 = tpu.iota {dimensions = array<i32: 1>} : vector<1x32xi32>
    %c0_i32 = arith.constant 0 : i32
    %12 = vector.broadcast %c0_i32 : i32 to vector<1x32xi32>
    %13 = arith.cmpi sge, %11, %12 : vector<1x32xi32>
    %c16_i32 = arith.constant 16 : i32
    %14 = vector.broadcast %c16_i32 : i32 to vector<1x32xi32>
    %15 = arith.cmpi slt, %11, %14 : vector<1x32xi32>
    %16 = arith.andi %13, %15 : vector<1x32xi1>
    %17 = arith.extui %16 : vector<1x32xi1> to vector<1x32xi32>
    %18 = arith.sitofp %17 : vector<1x32xi32> to vector<1x32xf32>
    %c16_i32_2 = arith.constant 16 : i32
    %19 = vector.broadcast %c16_i32_2 : i32 to vector<1x32xi32>
    %20 = arith.cmpi sge, %11, %19 : vector<1x32xi32>
    %c32_i32 = arith.constant 32 : i32
    %21 = vector.broadcast %c32_i32 : i32 to vector<1x32xi32>
    %22 = arith.cmpi slt, %11, %21 : vector<1x32xi32>
    %23 = arith.andi %20, %22 : vector<1x32xi1>
    %24 = arith.extui %23 : vector<1x32xi1> to vector<1x32xi32>
    %25 = arith.sitofp %24 : vector<1x32xi32> to vector<1x32xf32>
    %26 = tpu.iota {dimensions = array<i32: 0>} : vector<8x24xi32>
    %27 = tpu.iota {dimensions = array<i32: 1>} : vector<8x24xi32>
    %c2_i32_3 = arith.constant 2 : i32
    %28 = vector.broadcast %c2_i32_3 : i32 to vector<8x24xi32>
    %29 = arith.cmpi sge, %26, %28 : vector<8x24xi32>
    %c2_i32_4 = arith.constant 2 : i32
    %30 = vector.broadcast %c2_i32_4 : i32 to vector<8x24xi32>
    %31 = arith.shrsi %27, %30 : vector<8x24xi32>
    %c2_i32_5 = arith.constant 2 : i32
    %32 = vector.broadcast %c2_i32_5 : i32 to vector<8x24xi32>
    %33 = arith.subi %26, %32 : vector<8x24xi32>
    %34 = arith.cmpi eq, %31, %33 : vector<8x24xi32>
    %35 = arith.andi %29, %34 : vector<8x24xi1>
    %cst_6 = arith.constant 2.500000e-01 : f32
    %cst_7 = arith.constant 0.000000e+00 : f32
    %36 = vector.broadcast %cst_6 : f32 to vector<8x24xf32>
    %37 = vector.broadcast %cst_7 : f32 to vector<8x24xf32>
    %38 = arith.select %35, %36, %37 : vector<8x24xi1>, vector<8x24xf32>
    %39 = tpu.iota {dimensions = array<i32: 0>} : vector<8x1xi32>
    %c2_i32_8 = arith.constant 2 : i32
    %40 = vector.broadcast %c2_i32_8 : i32 to vector<8x1xi32>
    %41 = arith.cmpi slt, %39, %40 : vector<8x1xi32>
    %42 = arith.extui %41 : vector<8x1xi1> to vector<8x1xi32>
    %43 = arith.sitofp %42 : vector<8x1xi32> to vector<8x1xf32>
    %c36 = arith.constant 36 : index
    %c0 = arith.constant 0 : index
    %44 = vector.load %arg2[%c36, %c0] : memref<44x128xf32, #tpu.memory_space<vmem>>, vector<8x8xf32>
    %c0_9 = arith.constant 0 : index
    %c0_10 = arith.constant 0 : index
    %45 = vector.load %arg0[%c0_9, %c0_10] : memref<24x32xf32, #tpu.memory_space<vmem>>, vector<24x32xf32>
    %c0_11 = arith.constant 0 : index
    %c0_12 = arith.constant 0 : index
    %46 = vector.load %arg1[%c0_11, %c0_12] : memref<544x128xbf16, #tpu.memory_space<vmem>>, vector<32x96xbf16>
    %c32 = arith.constant 32 : index
    %c0_13 = arith.constant 0 : index
    %47 = vector.load %arg1[%c32, %c0_13] : memref<544x128xbf16, #tpu.memory_space<vmem>>, vector<32x32xbf16>
    %c64 = arith.constant 64 : index
    %c0_14 = arith.constant 0 : index
    %48 = vector.load %arg1[%c64, %c0_14] : memref<544x128xbf16, #tpu.memory_space<vmem>>, vector<32x32xbf16>
    %c96 = arith.constant 96 : index
    %c0_15 = arith.constant 0 : index
    %49 = vector.load %arg1[%c96, %c0_15] : memref<544x128xbf16, #tpu.memory_space<vmem>>, vector<32x32xbf16>
    %c0_16 = arith.constant 0 : index
    %c0_17 = arith.constant 0 : index
    %50 = vector.load %arg2[%c0_16, %c0_17] : memref<44x128xf32, #tpu.memory_space<vmem>>, vector<1x96xf32>
    %c1 = arith.constant 1 : index
    %c0_18 = arith.constant 0 : index
    %51 = vector.load %arg2[%c1, %c0_18] : memref<44x128xf32, #tpu.memory_space<vmem>>, vector<1x32xf32>
    %c2 = arith.constant 2 : index
    %c0_19 = arith.constant 0 : index
    %52 = vector.load %arg2[%c2, %c0_19] : memref<44x128xf32, #tpu.memory_space<vmem>>, vector<1x32xf32>
    %c3 = arith.constant 3 : index
    %c0_20 = arith.constant 0 : index
    %53 = vector.load %arg2[%c3, %c0_20] : memref<44x128xf32, #tpu.memory_space<vmem>>, vector<1x32xf32>
    %c4 = arith.constant 4 : index
    %c0_21 = arith.constant 0 : index
    %54 = vector.load %arg2[%c4, %c0_21] : memref<44x128xf32, #tpu.memory_space<vmem>>, vector<1x32xf32>
    %c5 = arith.constant 5 : index
    %c0_22 = arith.constant 0 : index
    %55 = vector.load %arg2[%c5, %c0_22] : memref<44x128xf32, #tpu.memory_space<vmem>>, vector<1x32xf32>
    %c6 = arith.constant 6 : index
    %c0_23 = arith.constant 0 : index
    %56 = vector.load %arg2[%c6, %c0_23] : memref<44x128xf32, #tpu.memory_space<vmem>>, vector<1x32xf32>
    %c7 = arith.constant 7 : index
    %c0_24 = arith.constant 0 : index
    %57 = vector.load %arg2[%c7, %c0_24] : memref<44x128xf32, #tpu.memory_space<vmem>>, vector<1x32xf32>
    %58 = arith.truncf %45 : vector<24x32xf32> to vector<24x32xbf16>
    %cst_25 = arith.constant dense<0.000000e+00> : vector<24x96xf32>
    %59 = tpu.matmul %58, %46, %cst_25 {dimension_numbers = #tpu.dot_dimension_numbers<[1], [0], [0], [1], [0, 0, 1, 1], [], []>} : vector<24x32xbf16>, vector<32x96xbf16>, vector<24x96xf32> -> vector<24x96xf32>
    %60 = vector.broadcast %50 : vector<1x96xf32> to vector<24x96xf32>
    %61 = arith.addf %59, %60 : vector<24x96xf32>
    %62 = vector.extract_strided_slice %61 {offsets = [0, 0], sizes = [24, 32], strides = [1, 1]} : vector<24x96xf32> to vector<24x32xf32>
    %63 = vector.extract_strided_slice %61 {offsets = [0, 32], sizes = [24, 32], strides = [1, 1]} : vector<24x96xf32> to vector<24x32xf32>
    %64 = vector.extract_strided_slice %61 {offsets = [0, 64], sizes = [24, 32], strides = [1, 1]} : vector<24x96xf32> to vector<24x32xf32>
    %65 = vector.broadcast %18 : vector<1x32xf32> to vector<24x32xf32>
    %66 = arith.mulf %62, %65 : vector<24x32xf32>
    %67 = vector.broadcast %25 : vector<1x32xf32> to vector<24x32xf32>
    %68 = arith.mulf %62, %67 : vector<24x32xf32>
    %69 = tpu.concatenate %66, %68 in 0 : vector<24x32xf32>, vector<24x32xf32> -> vector<48x32xf32>
    %70 = arith.truncf %69 : vector<48x32xf32> to vector<48x32xbf16>
    %71 = arith.truncf %63 : vector<24x32xf32> to vector<24x32xbf16>
    %cst_26 = arith.constant dense<0.000000e+00> : vector<48x24xf32>
    %72 = tpu.matmul %70, %71, %cst_26 {dimension_numbers = #tpu.dot_dimension_numbers<[1], [1], [0], [0], [0, 0, 1, 0], [], []>} : vector<48x32xbf16>, vector<24x32xbf16>, vector<48x24xf32> -> vector<48x24xf32>
    %73 = arith.addf %72, %10 : vector<48x24xf32>
    %cst_27 = arith.constant dense<0xFF800000> : vector<48xf32>
    %74 = vector.multi_reduction <maximumf>, %73, %cst_27 [1] : vector<48x24xf32> to vector<48xf32>
    %75 = vector.shape_cast %74 : vector<48xf32> to vector<48x1xf32>
    %76 = vector.broadcast %75 : vector<48x1xf32> to vector<48x24xf32>
    %77 = arith.subf %73, %76 : vector<48x24xf32>
    %78 = math.exp %77 : vector<48x24xf32>
    %cst_28 = arith.constant dense<0.000000e+00> : vector<48xf32>
    %79 = vector.multi_reduction <add>, %78, %cst_28 [1] : vector<48x24xf32> to vector<48xf32>
    %80 = vector.shape_cast %79 : vector<48xf32> to vector<48x1xf32>
    %81 = vector.broadcast %80 : vector<48x1xf32> to vector<48x24xf32>
    %82 = arith.divf %78, %81 : vector<48x24xf32>
    %83 = arith.truncf %82 : vector<48x24xf32> to vector<48x24xbf16>
    %84 = arith.truncf %64 : vector<24x32xf32> to vector<24x32xbf16>
    %cst_29 = arith.constant dense<0.000000e+00> : vector<48x32xf32>
    %85 = tpu.matmul %83, %84, %cst_29 {dimension_numbers = #tpu.dot_dimension_numbers<[1], [0], [0], [1], [0, 0, 1, 1], [], []>} : vector<48x24xbf16>, vector<24x32xbf16>, vector<48x32xf32> -> vector<48x32xf32>
    %86 = vector.extract_strided_slice %85 {offsets = [0, 0], sizes = [24, 32], strides = [1, 1]} : vector<48x32xf32> to vector<24x32xf32>
    %87 = vector.broadcast %18 : vector<1x32xf32> to vector<24x32xf32>
    %88 = arith.mulf %86, %87 : vector<24x32xf32>
    %89 = vector.extract_strided_slice %85 {offsets = [24, 0], sizes = [24, 32], strides = [1, 1]} : vector<48x32xf32> to vector<24x32xf32>
    %90 = vector.broadcast %25 : vector<1x32xf32> to vector<24x32xf32>
    %91 = arith.mulf %89, %90 : vector<24x32xf32>
    %92 = arith.addf %88, %91 : vector<24x32xf32>
    %93 = arith.truncf %92 : vector<24x32xf32> to vector<24x32xbf16>
    %cst_30 = arith.constant dense<0.000000e+00> : vector<24x32xf32>
    %94 = tpu.matmul %93, %47, %cst_30 {dimension_numbers = #tpu.dot_dimension_numbers<[1], [0], [0], [1], [0, 0, 1, 1], [], []>} : vector<24x32xbf16>, vector<32x32xbf16>, vector<24x32xf32> -> vector<24x32xf32>
    %95 = vector.broadcast %51 : vector<1x32xf32> to vector<24x32xf32>
    %96 = arith.addf %94, %95 : vector<24x32xf32>
    %97 = arith.addf %45, %96 : vector<24x32xf32>
    %cst_31 = arith.constant dense<0.000000e+00> : vector<24xf32>
    %98 = vector.multi_reduction <add>, %97, %cst_31 [1] : vector<24x32xf32> to vector<24xf32>
    %99 = vector.shape_cast %98 : vector<24xf32> to vector<24x1xf32>
    %cst_32 = arith.constant 3.200000e+01 : f32
    %100 = vector.broadcast %cst_32 : f32 to vector<24x1xf32>
    %101 = arith.divf %99, %100 : vector<24x1xf32>
    %102 = arith.mulf %97, %97 : vector<24x32xf32>
    %cst_33 = arith.constant dense<0.000000e+00> : vector<24xf32>
    %103 = vector.multi_reduction <add>, %102, %cst_33 [1] : vector<24x32xf32> to vector<24xf32>
    %104 = vector.shape_cast %103 : vector<24xf32> to vector<24x1xf32>
    %cst_34 = arith.constant 3.200000e+01 : f32
    %105 = vector.broadcast %cst_34 : f32 to vector<24x1xf32>
    %106 = arith.divf %104, %105 : vector<24x1xf32>
    %107 = arith.mulf %101, %101 : vector<24x1xf32>
    %108 = arith.subf %106, %107 : vector<24x1xf32>
    %109 = vector.broadcast %101 : vector<24x1xf32> to vector<24x32xf32>
    %110 = arith.subf %97, %109 : vector<24x32xf32>
    %cst_35 = arith.constant 9.99999974E-6 : f32
    %111 = vector.broadcast %cst_35 : f32 to vector<24x1xf32>
    %112 = arith.addf %108, %111 : vector<24x1xf32>
    %113 = math.rsqrt %112 : vector<24x1xf32>
    %114 = vector.broadcast %113 : vector<24x1xf32> to vector<24x32xf32>
    %115 = arith.mulf %110, %114 : vector<24x32xf32>
    %116 = vector.broadcast %54 : vector<1x32xf32> to vector<24x32xf32>
    %117 = arith.mulf %115, %116 : vector<24x32xf32>
    %118 = vector.broadcast %55 : vector<1x32xf32> to vector<24x32xf32>
    %119 = arith.addf %117, %118 : vector<24x32xf32>
    %120 = arith.truncf %119 : vector<24x32xf32> to vector<24x32xbf16>
    %cst_36 = arith.constant dense<0.000000e+00> : vector<24x32xf32>
    %121 = tpu.matmul %120, %48, %cst_36 {dimension_numbers = #tpu.dot_dimension_numbers<[1], [0], [0], [1], [0, 0, 1, 1], [], []>} : vector<24x32xbf16>, vector<32x32xbf16>, vector<24x32xf32> -> vector<24x32xf32>
    %122 = vector.broadcast %52 : vector<1x32xf32> to vector<24x32xf32>
    %123 = arith.addf %121, %122 : vector<24x32xf32>
    %cst_37 = arith.constant 5.000000e-01 : f32
    %124 = vector.broadcast %cst_37 : f32 to vector<24x32xf32>
    %125 = arith.mulf %124, %123 : vector<24x32xf32>
    %cst_38 = arith.constant 0.707106769 : f32
    %126 = vector.broadcast %cst_38 : f32 to vector<24x32xf32>
    %127 = arith.mulf %123, %126 : vector<24x32xf32>
    %cst_39 = arith.constant 0.000000e+00 : f32
    %128 = vector.broadcast %cst_39 : f32 to vector<24x32xf32>
    %129 = arith.cmpf oge, %127, %128 : vector<24x32xf32>
    %cst_40 = arith.constant 1.000000e+00 : f32
    %cst_41 = arith.constant -1.000000e+00 : f32
    %130 = vector.broadcast %cst_40 : f32 to vector<24x32xf32>
    %131 = vector.broadcast %cst_41 : f32 to vector<24x32xf32>
    %132 = arith.select %129, %130, %131 : vector<24x32xi1>, vector<24x32xf32>
    %133 = math.absf %127 : vector<24x32xf32>
    %cst_42 = arith.constant 0.327591091 : f32
    %134 = vector.broadcast %cst_42 : f32 to vector<24x32xf32>
    %135 = arith.mulf %134, %133 : vector<24x32xf32>
    %cst_43 = arith.constant 1.000000e+00 : f32
    %136 = vector.broadcast %cst_43 : f32 to vector<24x32xf32>
    %137 = arith.addf %136, %135 : vector<24x32xf32>
    %cst_44 = arith.constant 1.000000e+00 : f32
    %138 = vector.broadcast %cst_44 : f32 to vector<24x32xf32>
    %139 = arith.divf %138, %137 : vector<24x32xf32>
    %cst_45 = arith.constant 1.06140542 : f32
    %140 = vector.broadcast %cst_45 : f32 to vector<24x32xf32>
    %141 = arith.mulf %140, %139 : vector<24x32xf32>
    %cst_46 = arith.constant -1.45315206 : f32
    %142 = vector.broadcast %cst_46 : f32 to vector<24x32xf32>
    %143 = arith.addf %141, %142 : vector<24x32xf32>
    %144 = arith.mulf %143, %139 : vector<24x32xf32>
    %cst_47 = arith.constant 1.42141378 : f32
    %145 = vector.broadcast %cst_47 : f32 to vector<24x32xf32>
    %146 = arith.addf %144, %145 : vector<24x32xf32>
    %147 = arith.mulf %146, %139 : vector<24x32xf32>
    %cst_48 = arith.constant -0.284496725 : f32
    %148 = vector.broadcast %cst_48 : f32 to vector<24x32xf32>
    %149 = arith.addf %147, %148 : vector<24x32xf32>
    %150 = arith.mulf %149, %139 : vector<24x32xf32>
    %cst_49 = arith.constant 0.254829586 : f32
    %151 = vector.broadcast %cst_49 : f32 to vector<24x32xf32>
    %152 = arith.addf %150, %151 : vector<24x32xf32>
    %153 = arith.mulf %152, %139 : vector<24x32xf32>
    %cst_50 = arith.constant 0.000000e+00 : f32
    %154 = vector.broadcast %cst_50 : f32 to vector<24x32xf32>
    %155 = arith.subf %154, %133 : vector<24x32xf32>
    %156 = arith.mulf %155, %133 : vector<24x32xf32>
    %157 = math.exp %156 : vector<24x32xf32>
    %158 = arith.mulf %153, %157 : vector<24x32xf32>
    %cst_51 = arith.constant 1.000000e+00 : f32
    %159 = vector.broadcast %cst_51 : f32 to vector<24x32xf32>
    %160 = arith.subf %159, %158 : vector<24x32xf32>
    %161 = arith.mulf %132, %160 : vector<24x32xf32>
    %cst_52 = arith.constant 1.000000e+00 : f32
    %162 = vector.broadcast %cst_52 : f32 to vector<24x32xf32>
    %163 = arith.addf %162, %161 : vector<24x32xf32>
    %164 = arith.mulf %125, %163 : vector<24x32xf32>
    %165 = arith.truncf %164 : vector<24x32xf32> to vector<24x32xbf16>
    %cst_53 = arith.constant dense<0.000000e+00> : vector<24x32xf32>
    %166 = tpu.matmul %165, %49, %cst_53 {dimension_numbers = #tpu.dot_dimension_numbers<[1], [0], [0], [1], [0, 0, 1, 1], [], []>} : vector<24x32xbf16>, vector<32x32xbf16>, vector<24x32xf32> -> vector<24x32xf32>
    %167 = vector.broadcast %53 : vector<1x32xf32> to vector<24x32xf32>
    %168 = arith.addf %166, %167 : vector<24x32xf32>
    %169 = arith.addf %119, %168 : vector<24x32xf32>
    %cst_54 = arith.constant dense<0.000000e+00> : vector<24xf32>
    %170 = vector.multi_reduction <add>, %169, %cst_54 [1] : vector<24x32xf32> to vector<24xf32>
    %171 = vector.shape_cast %170 : vector<24xf32> to vector<24x1xf32>
    %cst_55 = arith.constant 3.200000e+01 : f32
    %172 = vector.broadcast %cst_55 : f32 to vector<24x1xf32>
    %173 = arith.divf %171, %172 : vector<24x1xf32>
    %174 = arith.mulf %169, %169 : vector<24x32xf32>
    %cst_56 = arith.constant dense<0.000000e+00> : vector<24xf32>
    %175 = vector.multi_reduction <add>, %174, %cst_56 [1] : vector<24x32xf32> to vector<24xf32>
    %176 = vector.shape_cast %175 : vector<24xf32> to vector<24x1xf32>
    %cst_57 = arith.constant 3.200000e+01 : f32
    %177 = vector.broadcast %cst_57 : f32 to vector<24x1xf32>
    %178 = arith.divf %176, %177 : vector<24x1xf32>
    %179 = arith.mulf %173, %173 : vector<24x1xf32>
    %180 = arith.subf %178, %179 : vector<24x1xf32>
    %181 = vector.broadcast %173 : vector<24x1xf32> to vector<24x32xf32>
    %182 = arith.subf %169, %181 : vector<24x32xf32>
    %cst_58 = arith.constant 9.99999974E-6 : f32
    %183 = vector.broadcast %cst_58 : f32 to vector<24x1xf32>
    %184 = arith.addf %180, %183 : vector<24x1xf32>
    %185 = math.rsqrt %184 : vector<24x1xf32>
    %186 = vector.broadcast %185 : vector<24x1xf32> to vector<24x32xf32>
    %187 = arith.mulf %182, %186 : vector<24x32xf32>
    %188 = vector.broadcast %56 : vector<1x32xf32> to vector<24x32xf32>
    %189 = arith.mulf %187, %188 : vector<24x32xf32>
    %190 = vector.broadcast %57 : vector<1x32xf32> to vector<24x32xf32>
    %191 = arith.addf %189, %190 : vector<24x32xf32>
    %c128 = arith.constant 128 : index
    %c0_59 = arith.constant 0 : index
    %192 = vector.load %arg1[%c128, %c0_59] : memref<544x128xbf16, #tpu.memory_space<vmem>>, vector<32x96xbf16>
    %c160 = arith.constant 160 : index
    %c0_60 = arith.constant 0 : index
    %193 = vector.load %arg1[%c160, %c0_60] : memref<544x128xbf16, #tpu.memory_space<vmem>>, vector<32x32xbf16>
    %c192 = arith.constant 192 : index
    %c0_61 = arith.constant 0 : index
    %194 = vector.load %arg1[%c192, %c0_61] : memref<544x128xbf16, #tpu.memory_space<vmem>>, vector<32x32xbf16>
    %c224 = arith.constant 224 : index
    %c0_62 = arith.constant 0 : index
    %195 = vector.load %arg1[%c224, %c0_62] : memref<544x128xbf16, #tpu.memory_space<vmem>>, vector<32x32xbf16>
    %c8 = arith.constant 8 : index
    %c0_63 = arith.constant 0 : index
    %196 = vector.load %arg2[%c8, %c0_63] : memref<44x128xf32, #tpu.memory_space<vmem>>, vector<1x96xf32>
    %c9 = arith.constant 9 : index
    %c0_64 = arith.constant 0 : index
    %197 = vector.load %arg2[%c9, %c0_64] : memref<44x128xf32, #tpu.memory_space<vmem>>, vector<1x32xf32>
    %c10 = arith.constant 10 : index
    %c0_65 = arith.constant 0 : index
    %198 = vector.load %arg2[%c10, %c0_65] : memref<44x128xf32, #tpu.memory_space<vmem>>, vector<1x32xf32>
    %c11 = arith.constant 11 : index
    %c0_66 = arith.constant 0 : index
    %199 = vector.load %arg2[%c11, %c0_66] : memref<44x128xf32, #tpu.memory_space<vmem>>, vector<1x32xf32>
    %c12 = arith.constant 12 : index
    %c0_67 = arith.constant 0 : index
    %200 = vector.load %arg2[%c12, %c0_67] : memref<44x128xf32, #tpu.memory_space<vmem>>, vector<1x32xf32>
    %c13 = arith.constant 13 : index
    %c0_68 = arith.constant 0 : index
    %201 = vector.load %arg2[%c13, %c0_68] : memref<44x128xf32, #tpu.memory_space<vmem>>, vector<1x32xf32>
    %c14 = arith.constant 14 : index
    %c0_69 = arith.constant 0 : index
    %202 = vector.load %arg2[%c14, %c0_69] : memref<44x128xf32, #tpu.memory_space<vmem>>, vector<1x32xf32>
    %c15 = arith.constant 15 : index
    %c0_70 = arith.constant 0 : index
    %203 = vector.load %arg2[%c15, %c0_70] : memref<44x128xf32, #tpu.memory_space<vmem>>, vector<1x32xf32>
    %204 = arith.truncf %191 : vector<24x32xf32> to vector<24x32xbf16>
    %cst_71 = arith.constant dense<0.000000e+00> : vector<24x96xf32>
    %205 = tpu.matmul %204, %192, %cst_71 {dimension_numbers = #tpu.dot_dimension_numbers<[1], [0], [0], [1], [0, 0, 1, 1], [], []>} : vector<24x32xbf16>, vector<32x96xbf16>, vector<24x96xf32> -> vector<24x96xf32>
    %206 = vector.broadcast %196 : vector<1x96xf32> to vector<24x96xf32>
    %207 = arith.addf %205, %206 : vector<24x96xf32>
    %208 = vector.extract_strided_slice %207 {offsets = [0, 0], sizes = [24, 32], strides = [1, 1]} : vector<24x96xf32> to vector<24x32xf32>
    %209 = vector.extract_strided_slice %207 {offsets = [0, 32], sizes = [24, 32], strides = [1, 1]} : vector<24x96xf32> to vector<24x32xf32>
    %210 = vector.extract_strided_slice %207 {offsets = [0, 64], sizes = [24, 32], strides = [1, 1]} : vector<24x96xf32> to vector<24x32xf32>
    %211 = vector.broadcast %18 : vector<1x32xf32> to vector<24x32xf32>
    %212 = arith.mulf %208, %211 : vector<24x32xf32>
    %213 = vector.broadcast %25 : vector<1x32xf32> to vector<24x32xf32>
    %214 = arith.mulf %208, %213 : vector<24x32xf32>
    %215 = tpu.concatenate %212, %214 in 0 : vector<24x32xf32>, vector<24x32xf32> -> vector<48x32xf32>
    %216 = arith.truncf %215 : vector<48x32xf32> to vector<48x32xbf16>
    %217 = arith.truncf %209 : vector<24x32xf32> to vector<24x32xbf16>
    %cst_72 = arith.constant dense<0.000000e+00> : vector<48x24xf32>
    %218 = tpu.matmul %216, %217, %cst_72 {dimension_numbers = #tpu.dot_dimension_numbers<[1], [1], [0], [0], [0, 0, 1, 0], [], []>} : vector<48x32xbf16>, vector<24x32xbf16>, vector<48x24xf32> -> vector<48x24xf32>
    %219 = arith.addf %218, %10 : vector<48x24xf32>
    %cst_73 = arith.constant dense<0xFF800000> : vector<48xf32>
    %220 = vector.multi_reduction <maximumf>, %219, %cst_73 [1] : vector<48x24xf32> to vector<48xf32>
    %221 = vector.shape_cast %220 : vector<48xf32> to vector<48x1xf32>
    %222 = vector.broadcast %221 : vector<48x1xf32> to vector<48x24xf32>
    %223 = arith.subf %219, %222 : vector<48x24xf32>
    %224 = math.exp %223 : vector<48x24xf32>
    %cst_74 = arith.constant dense<0.000000e+00> : vector<48xf32>
    %225 = vector.multi_reduction <add>, %224, %cst_74 [1] : vector<48x24xf32> to vector<48xf32>
    %226 = vector.shape_cast %225 : vector<48xf32> to vector<48x1xf32>
    %227 = vector.broadcast %226 : vector<48x1xf32> to vector<48x24xf32>
    %228 = arith.divf %224, %227 : vector<48x24xf32>
    %229 = arith.truncf %228 : vector<48x24xf32> to vector<48x24xbf16>
    %230 = arith.truncf %210 : vector<24x32xf32> to vector<24x32xbf16>
    %cst_75 = arith.constant dense<0.000000e+00> : vector<48x32xf32>
    %231 = tpu.matmul %229, %230, %cst_75 {dimension_numbers = #tpu.dot_dimension_numbers<[1], [0], [0], [1], [0, 0, 1, 1], [], []>} : vector<48x24xbf16>, vector<24x32xbf16>, vector<48x32xf32> -> vector<48x32xf32>
    %232 = vector.extract_strided_slice %231 {offsets = [0, 0], sizes = [24, 32], strides = [1, 1]} : vector<48x32xf32> to vector<24x32xf32>
    %233 = vector.broadcast %18 : vector<1x32xf32> to vector<24x32xf32>
    %234 = arith.mulf %232, %233 : vector<24x32xf32>
    %235 = vector.extract_strided_slice %231 {offsets = [24, 0], sizes = [24, 32], strides = [1, 1]} : vector<48x32xf32> to vector<24x32xf32>
    %236 = vector.broadcast %25 : vector<1x32xf32> to vector<24x32xf32>
    %237 = arith.mulf %235, %236 : vector<24x32xf32>
    %238 = arith.addf %234, %237 : vector<24x32xf32>
    %239 = arith.truncf %238 : vector<24x32xf32> to vector<24x32xbf16>
    %cst_76 = arith.constant dense<0.000000e+00> : vector<24x32xf32>
    %240 = tpu.matmul %239, %193, %cst_76 {dimension_numbers = #tpu.dot_dimension_numbers<[1], [0], [0], [1], [0, 0, 1, 1], [], []>} : vector<24x32xbf16>, vector<32x32xbf16>, vector<24x32xf32> -> vector<24x32xf32>
    %241 = vector.broadcast %197 : vector<1x32xf32> to vector<24x32xf32>
    %242 = arith.addf %240, %241 : vector<24x32xf32>
    %243 = arith.addf %191, %242 : vector<24x32xf32>
    %cst_77 = arith.constant dense<0.000000e+00> : vector<24xf32>
    %244 = vector.multi_reduction <add>, %243, %cst_77 [1] : vector<24x32xf32> to vector<24xf32>
    %245 = vector.shape_cast %244 : vector<24xf32> to vector<24x1xf32>
    %cst_78 = arith.constant 3.200000e+01 : f32
    %246 = vector.broadcast %cst_78 : f32 to vector<24x1xf32>
    %247 = arith.divf %245, %246 : vector<24x1xf32>
    %248 = arith.mulf %243, %243 : vector<24x32xf32>
    %cst_79 = arith.constant dense<0.000000e+00> : vector<24xf32>
    %249 = vector.multi_reduction <add>, %248, %cst_79 [1] : vector<24x32xf32> to vector<24xf32>
    %250 = vector.shape_cast %249 : vector<24xf32> to vector<24x1xf32>
    %cst_80 = arith.constant 3.200000e+01 : f32
    %251 = vector.broadcast %cst_80 : f32 to vector<24x1xf32>
    %252 = arith.divf %250, %251 : vector<24x1xf32>
    %253 = arith.mulf %247, %247 : vector<24x1xf32>
    %254 = arith.subf %252, %253 : vector<24x1xf32>
    %255 = vector.broadcast %247 : vector<24x1xf32> to vector<24x32xf32>
    %256 = arith.subf %243, %255 : vector<24x32xf32>
    %cst_81 = arith.constant 9.99999974E-6 : f32
    %257 = vector.broadcast %cst_81 : f32 to vector<24x1xf32>
    %258 = arith.addf %254, %257 : vector<24x1xf32>
    %259 = math.rsqrt %258 : vector<24x1xf32>
    %260 = vector.broadcast %259 : vector<24x1xf32> to vector<24x32xf32>
    %261 = arith.mulf %256, %260 : vector<24x32xf32>
    %262 = vector.broadcast %200 : vector<1x32xf32> to vector<24x32xf32>
    %263 = arith.mulf %261, %262 : vector<24x32xf32>
    %264 = vector.broadcast %201 : vector<1x32xf32> to vector<24x32xf32>
    %265 = arith.addf %263, %264 : vector<24x32xf32>
    %266 = arith.truncf %265 : vector<24x32xf32> to vector<24x32xbf16>
    %cst_82 = arith.constant dense<0.000000e+00> : vector<24x32xf32>
    %267 = tpu.matmul %266, %194, %cst_82 {dimension_numbers = #tpu.dot_dimension_numbers<[1], [0], [0], [1], [0, 0, 1, 1], [], []>} : vector<24x32xbf16>, vector<32x32xbf16>, vector<24x32xf32> -> vector<24x32xf32>
    %268 = vector.broadcast %198 : vector<1x32xf32> to vector<24x32xf32>
    %269 = arith.addf %267, %268 : vector<24x32xf32>
    %cst_83 = arith.constant 5.000000e-01 : f32
    %270 = vector.broadcast %cst_83 : f32 to vector<24x32xf32>
    %271 = arith.mulf %270, %269 : vector<24x32xf32>
    %cst_84 = arith.constant 0.707106769 : f32
    %272 = vector.broadcast %cst_84 : f32 to vector<24x32xf32>
    %273 = arith.mulf %269, %272 : vector<24x32xf32>
    %cst_85 = arith.constant 0.000000e+00 : f32
    %274 = vector.broadcast %cst_85 : f32 to vector<24x32xf32>
    %275 = arith.cmpf oge, %273, %274 : vector<24x32xf32>
    %cst_86 = arith.constant 1.000000e+00 : f32
    %cst_87 = arith.constant -1.000000e+00 : f32
    %276 = vector.broadcast %cst_86 : f32 to vector<24x32xf32>
    %277 = vector.broadcast %cst_87 : f32 to vector<24x32xf32>
    %278 = arith.select %275, %276, %277 : vector<24x32xi1>, vector<24x32xf32>
    %279 = math.absf %273 : vector<24x32xf32>
    %cst_88 = arith.constant 0.327591091 : f32
    %280 = vector.broadcast %cst_88 : f32 to vector<24x32xf32>
    %281 = arith.mulf %280, %279 : vector<24x32xf32>
    %cst_89 = arith.constant 1.000000e+00 : f32
    %282 = vector.broadcast %cst_89 : f32 to vector<24x32xf32>
    %283 = arith.addf %282, %281 : vector<24x32xf32>
    %cst_90 = arith.constant 1.000000e+00 : f32
    %284 = vector.broadcast %cst_90 : f32 to vector<24x32xf32>
    %285 = arith.divf %284, %283 : vector<24x32xf32>
    %cst_91 = arith.constant 1.06140542 : f32
    %286 = vector.broadcast %cst_91 : f32 to vector<24x32xf32>
    %287 = arith.mulf %286, %285 : vector<24x32xf32>
    %cst_92 = arith.constant -1.45315206 : f32
    %288 = vector.broadcast %cst_92 : f32 to vector<24x32xf32>
    %289 = arith.addf %287, %288 : vector<24x32xf32>
    %290 = arith.mulf %289, %285 : vector<24x32xf32>
    %cst_93 = arith.constant 1.42141378 : f32
    %291 = vector.broadcast %cst_93 : f32 to vector<24x32xf32>
    %292 = arith.addf %290, %291 : vector<24x32xf32>
    %293 = arith.mulf %292, %285 : vector<24x32xf32>
    %cst_94 = arith.constant -0.284496725 : f32
    %294 = vector.broadcast %cst_94 : f32 to vector<24x32xf32>
    %295 = arith.addf %293, %294 : vector<24x32xf32>
    %296 = arith.mulf %295, %285 : vector<24x32xf32>
    %cst_95 = arith.constant 0.254829586 : f32
    %297 = vector.broadcast %cst_95 : f32 to vector<24x32xf32>
    %298 = arith.addf %296, %297 : vector<24x32xf32>
    %299 = arith.mulf %298, %285 : vector<24x32xf32>
    %cst_96 = arith.constant 0.000000e+00 : f32
    %300 = vector.broadcast %cst_96 : f32 to vector<24x32xf32>
    %301 = arith.subf %300, %279 : vector<24x32xf32>
    %302 = arith.mulf %301, %279 : vector<24x32xf32>
    %303 = math.exp %302 : vector<24x32xf32>
    %304 = arith.mulf %299, %303 : vector<24x32xf32>
    %cst_97 = arith.constant 1.000000e+00 : f32
    %305 = vector.broadcast %cst_97 : f32 to vector<24x32xf32>
    %306 = arith.subf %305, %304 : vector<24x32xf32>
    %307 = arith.mulf %278, %306 : vector<24x32xf32>
    %cst_98 = arith.constant 1.000000e+00 : f32
    %308 = vector.broadcast %cst_98 : f32 to vector<24x32xf32>
    %309 = arith.addf %308, %307 : vector<24x32xf32>
    %310 = arith.mulf %271, %309 : vector<24x32xf32>
    %311 = arith.truncf %310 : vector<24x32xf32> to vector<24x32xbf16>
    %cst_99 = arith.constant dense<0.000000e+00> : vector<24x32xf32>
    %312 = tpu.matmul %311, %195, %cst_99 {dimension_numbers = #tpu.dot_dimension_numbers<[1], [0], [0], [1], [0, 0, 1, 1], [], []>} : vector<24x32xbf16>, vector<32x32xbf16>, vector<24x32xf32> -> vector<24x32xf32>
    %313 = vector.broadcast %199 : vector<1x32xf32> to vector<24x32xf32>
    %314 = arith.addf %312, %313 : vector<24x32xf32>
    %315 = arith.addf %265, %314 : vector<24x32xf32>
    %cst_100 = arith.constant dense<0.000000e+00> : vector<24xf32>
    %316 = vector.multi_reduction <add>, %315, %cst_100 [1] : vector<24x32xf32> to vector<24xf32>
    %317 = vector.shape_cast %316 : vector<24xf32> to vector<24x1xf32>
    %cst_101 = arith.constant 3.200000e+01 : f32
    %318 = vector.broadcast %cst_101 : f32 to vector<24x1xf32>
    %319 = arith.divf %317, %318 : vector<24x1xf32>
    %320 = arith.mulf %315, %315 : vector<24x32xf32>
    %cst_102 = arith.constant dense<0.000000e+00> : vector<24xf32>
    %321 = vector.multi_reduction <add>, %320, %cst_102 [1] : vector<24x32xf32> to vector<24xf32>
    %322 = vector.shape_cast %321 : vector<24xf32> to vector<24x1xf32>
    %cst_103 = arith.constant 3.200000e+01 : f32
    %323 = vector.broadcast %cst_103 : f32 to vector<24x1xf32>
    %324 = arith.divf %322, %323 : vector<24x1xf32>
    %325 = arith.mulf %319, %319 : vector<24x1xf32>
    %326 = arith.subf %324, %325 : vector<24x1xf32>
    %327 = vector.broadcast %319 : vector<24x1xf32> to vector<24x32xf32>
    %328 = arith.subf %315, %327 : vector<24x32xf32>
    %cst_104 = arith.constant 9.99999974E-6 : f32
    %329 = vector.broadcast %cst_104 : f32 to vector<24x1xf32>
    %330 = arith.addf %326, %329 : vector<24x1xf32>
    %331 = math.rsqrt %330 : vector<24x1xf32>
    %332 = vector.broadcast %331 : vector<24x1xf32> to vector<24x32xf32>
    %333 = arith.mulf %328, %332 : vector<24x32xf32>
    %334 = vector.broadcast %202 : vector<1x32xf32> to vector<24x32xf32>
    %335 = arith.mulf %333, %334 : vector<24x32xf32>
    %336 = vector.broadcast %203 : vector<1x32xf32> to vector<24x32xf32>
    %337 = arith.addf %335, %336 : vector<24x32xf32>
    %c35 = arith.constant 35 : index
    %c0_105 = arith.constant 0 : index
    %338 = vector.load %arg2[%c35, %c0_105] : memref<44x128xf32, #tpu.memory_space<vmem>>, vector<1x32xf32>
    %cst_106 = arith.constant dense<0.000000e+00> : vector<8x32xf32>
    %339 = tpu.matmul %38, %337, %cst_106 {dimension_numbers = #tpu.dot_dimension_numbers<[1], [0], [0], [1], [0, 0, 1, 1], [], []>, precision = #tpu.contract_precision<fp32>} : vector<8x24xf32>, vector<24x32xf32>, vector<8x32xf32> -> vector<8x32xf32>
    %340 = vector.broadcast %43 : vector<8x1xf32> to vector<8x32xf32>
    %341 = vector.broadcast %338 : vector<1x32xf32> to vector<8x32xf32>
    %342 = arith.mulf %340, %341 : vector<8x32xf32>
    %343 = arith.addf %339, %342 : vector<8x32xf32>
    %c256 = arith.constant 256 : index
    %c0_107 = arith.constant 0 : index
    %344 = vector.load %arg1[%c256, %c0_107] : memref<544x128xbf16, #tpu.memory_space<vmem>>, vector<32x96xbf16>
    %c288 = arith.constant 288 : index
    %c0_108 = arith.constant 0 : index
    %345 = vector.load %arg1[%c288, %c0_108] : memref<544x128xbf16, #tpu.memory_space<vmem>>, vector<32x32xbf16>
    %c320 = arith.constant 320 : index
    %c0_109 = arith.constant 0 : index
    %346 = vector.load %arg1[%c320, %c0_109] : memref<544x128xbf16, #tpu.memory_space<vmem>>, vector<32x32xbf16>
    %c352 = arith.constant 352 : index
    %c0_110 = arith.constant 0 : index
    %347 = vector.load %arg1[%c352, %c0_110] : memref<544x128xbf16, #tpu.memory_space<vmem>>, vector<32x32xbf16>
    %c16 = arith.constant 16 : index
    %c0_111 = arith.constant 0 : index
    %348 = vector.load %arg2[%c16, %c0_111] : memref<44x128xf32, #tpu.memory_space<vmem>>, vector<1x96xf32>
    %c17 = arith.constant 17 : index
    %c0_112 = arith.constant 0 : index
    %349 = vector.load %arg2[%c17, %c0_112] : memref<44x128xf32, #tpu.memory_space<vmem>>, vector<1x32xf32>
    %c18 = arith.constant 18 : index
    %c0_113 = arith.constant 0 : index
    %350 = vector.load %arg2[%c18, %c0_113] : memref<44x128xf32, #tpu.memory_space<vmem>>, vector<1x32xf32>
    %c19 = arith.constant 19 : index
    %c0_114 = arith.constant 0 : index
    %351 = vector.load %arg2[%c19, %c0_114] : memref<44x128xf32, #tpu.memory_space<vmem>>, vector<1x32xf32>
    %c20 = arith.constant 20 : index
    %c0_115 = arith.constant 0 : index
    %352 = vector.load %arg2[%c20, %c0_115] : memref<44x128xf32, #tpu.memory_space<vmem>>, vector<1x32xf32>
    %c21 = arith.constant 21 : index
    %c0_116 = arith.constant 0 : index
    %353 = vector.load %arg2[%c21, %c0_116] : memref<44x128xf32, #tpu.memory_space<vmem>>, vector<1x32xf32>
    %c22 = arith.constant 22 : index
    %c0_117 = arith.constant 0 : index
    %354 = vector.load %arg2[%c22, %c0_117] : memref<44x128xf32, #tpu.memory_space<vmem>>, vector<1x32xf32>
    %c23 = arith.constant 23 : index
    %c0_118 = arith.constant 0 : index
    %355 = vector.load %arg2[%c23, %c0_118] : memref<44x128xf32, #tpu.memory_space<vmem>>, vector<1x32xf32>
    %356 = arith.truncf %343 : vector<8x32xf32> to vector<8x32xbf16>
    %cst_119 = arith.constant dense<0.000000e+00> : vector<8x96xf32>
    %357 = tpu.matmul %356, %344, %cst_119 {dimension_numbers = #tpu.dot_dimension_numbers<[1], [0], [0], [1], [0, 0, 1, 1], [], []>} : vector<8x32xbf16>, vector<32x96xbf16>, vector<8x96xf32> -> vector<8x96xf32>
    %358 = vector.broadcast %348 : vector<1x96xf32> to vector<8x96xf32>
    %359 = arith.addf %357, %358 : vector<8x96xf32>
    %360 = vector.extract_strided_slice %359 {offsets = [0, 0], sizes = [8, 32], strides = [1, 1]} : vector<8x96xf32> to vector<8x32xf32>
    %361 = vector.extract_strided_slice %359 {offsets = [0, 32], sizes = [8, 32], strides = [1, 1]} : vector<8x96xf32> to vector<8x32xf32>
    %362 = vector.extract_strided_slice %359 {offsets = [0, 64], sizes = [8, 32], strides = [1, 1]} : vector<8x96xf32> to vector<8x32xf32>
    %363 = arith.truncf %360 : vector<8x32xf32> to vector<8x32xbf16>
    %364 = arith.truncf %361 : vector<8x32xf32> to vector<8x32xbf16>
    %cst_120 = arith.constant dense<0.000000e+00> : vector<8x8xf32>
    %365 = tpu.matmul %363, %364, %cst_120 {dimension_numbers = #tpu.dot_dimension_numbers<[1], [1], [0], [0], [0, 0, 1, 0], [], []>} : vector<8x32xbf16>, vector<8x32xbf16>, vector<8x8xf32> -> vector<8x8xf32>
    %366 = arith.addf %365, %44 : vector<8x8xf32>
    %cst_121 = arith.constant dense<0xFF800000> : vector<8xf32>
    %367 = vector.multi_reduction <maximumf>, %366, %cst_121 [1] : vector<8x8xf32> to vector<8xf32>
    %368 = vector.shape_cast %367 : vector<8xf32> to vector<8x1xf32>
    %369 = vector.broadcast %368 : vector<8x1xf32> to vector<8x8xf32>
    %370 = arith.subf %366, %369 : vector<8x8xf32>
    %371 = math.exp %370 : vector<8x8xf32>
    %cst_122 = arith.constant dense<0.000000e+00> : vector<8xf32>
    %372 = vector.multi_reduction <add>, %371, %cst_122 [1] : vector<8x8xf32> to vector<8xf32>
    %373 = vector.shape_cast %372 : vector<8xf32> to vector<8x1xf32>
    %374 = vector.broadcast %373 : vector<8x1xf32> to vector<8x8xf32>
    %375 = arith.divf %371, %374 : vector<8x8xf32>
    %376 = arith.truncf %375 : vector<8x8xf32> to vector<8x8xbf16>
    %377 = arith.truncf %362 : vector<8x32xf32> to vector<8x32xbf16>
    %cst_123 = arith.constant dense<0.000000e+00> : vector<8x32xf32>
    %378 = tpu.matmul %376, %377, %cst_123 {dimension_numbers = #tpu.dot_dimension_numbers<[1], [0], [0], [1], [0, 0, 1, 1], [], []>} : vector<8x8xbf16>, vector<8x32xbf16>, vector<8x32xf32> -> vector<8x32xf32>
    %379 = arith.truncf %378 : vector<8x32xf32> to vector<8x32xbf16>
    %cst_124 = arith.constant dense<0.000000e+00> : vector<8x32xf32>
    %380 = tpu.matmul %379, %345, %cst_124 {dimension_numbers = #tpu.dot_dimension_numbers<[1], [0], [0], [1], [0, 0, 1, 1], [], []>} : vector<8x32xbf16>, vector<32x32xbf16>, vector<8x32xf32> -> vector<8x32xf32>
    %381 = vector.broadcast %349 : vector<1x32xf32> to vector<8x32xf32>
    %382 = arith.addf %380, %381 : vector<8x32xf32>
    %383 = arith.addf %343, %382 : vector<8x32xf32>
    %cst_125 = arith.constant dense<0.000000e+00> : vector<8xf32>
    %384 = vector.multi_reduction <add>, %383, %cst_125 [1] : vector<8x32xf32> to vector<8xf32>
    %385 = vector.shape_cast %384 : vector<8xf32> to vector<8x1xf32>
    %cst_126 = arith.constant 3.200000e+01 : f32
    %386 = vector.broadcast %cst_126 : f32 to vector<8x1xf32>
    %387 = arith.divf %385, %386 : vector<8x1xf32>
    %388 = arith.mulf %383, %383 : vector<8x32xf32>
    %cst_127 = arith.constant dense<0.000000e+00> : vector<8xf32>
    %389 = vector.multi_reduction <add>, %388, %cst_127 [1] : vector<8x32xf32> to vector<8xf32>
    %390 = vector.shape_cast %389 : vector<8xf32> to vector<8x1xf32>
    %cst_128 = arith.constant 3.200000e+01 : f32
    %391 = vector.broadcast %cst_128 : f32 to vector<8x1xf32>
    %392 = arith.divf %390, %391 : vector<8x1xf32>
    %393 = arith.mulf %387, %387 : vector<8x1xf32>
    %394 = arith.subf %392, %393 : vector<8x1xf32>
    %395 = vector.broadcast %387 : vector<8x1xf32> to vector<8x32xf32>
    %396 = arith.subf %383, %395 : vector<8x32xf32>
    %cst_129 = arith.constant 9.99999974E-6 : f32
    %397 = vector.broadcast %cst_129 : f32 to vector<8x1xf32>
    %398 = arith.addf %394, %397 : vector<8x1xf32>
    %399 = math.rsqrt %398 : vector<8x1xf32>
    %400 = vector.broadcast %399 : vector<8x1xf32> to vector<8x32xf32>
    %401 = arith.mulf %396, %400 : vector<8x32xf32>
    %402 = vector.broadcast %352 : vector<1x32xf32> to vector<8x32xf32>
    %403 = arith.mulf %401, %402 : vector<8x32xf32>
    %404 = vector.broadcast %353 : vector<1x32xf32> to vector<8x32xf32>
    %405 = arith.addf %403, %404 : vector<8x32xf32>
    %406 = arith.truncf %405 : vector<8x32xf32> to vector<8x32xbf16>
    %cst_130 = arith.constant dense<0.000000e+00> : vector<8x32xf32>
    %407 = tpu.matmul %406, %346, %cst_130 {dimension_numbers = #tpu.dot_dimension_numbers<[1], [0], [0], [1], [0, 0, 1, 1], [], []>} : vector<8x32xbf16>, vector<32x32xbf16>, vector<8x32xf32> -> vector<8x32xf32>
    %408 = vector.broadcast %350 : vector<1x32xf32> to vector<8x32xf32>
    %409 = arith.addf %407, %408 : vector<8x32xf32>
    %cst_131 = arith.constant 5.000000e-01 : f32
    %410 = vector.broadcast %cst_131 : f32 to vector<8x32xf32>
    %411 = arith.mulf %410, %409 : vector<8x32xf32>
    %cst_132 = arith.constant 0.707106769 : f32
    %412 = vector.broadcast %cst_132 : f32 to vector<8x32xf32>
    %413 = arith.mulf %409, %412 : vector<8x32xf32>
    %cst_133 = arith.constant 0.000000e+00 : f32
    %414 = vector.broadcast %cst_133 : f32 to vector<8x32xf32>
    %415 = arith.cmpf oge, %413, %414 : vector<8x32xf32>
    %cst_134 = arith.constant 1.000000e+00 : f32
    %cst_135 = arith.constant -1.000000e+00 : f32
    %416 = vector.broadcast %cst_134 : f32 to vector<8x32xf32>
    %417 = vector.broadcast %cst_135 : f32 to vector<8x32xf32>
    %418 = arith.select %415, %416, %417 : vector<8x32xi1>, vector<8x32xf32>
    %419 = math.absf %413 : vector<8x32xf32>
    %cst_136 = arith.constant 0.327591091 : f32
    %420 = vector.broadcast %cst_136 : f32 to vector<8x32xf32>
    %421 = arith.mulf %420, %419 : vector<8x32xf32>
    %cst_137 = arith.constant 1.000000e+00 : f32
    %422 = vector.broadcast %cst_137 : f32 to vector<8x32xf32>
    %423 = arith.addf %422, %421 : vector<8x32xf32>
    %cst_138 = arith.constant 1.000000e+00 : f32
    %424 = vector.broadcast %cst_138 : f32 to vector<8x32xf32>
    %425 = arith.divf %424, %423 : vector<8x32xf32>
    %cst_139 = arith.constant 1.06140542 : f32
    %426 = vector.broadcast %cst_139 : f32 to vector<8x32xf32>
    %427 = arith.mulf %426, %425 : vector<8x32xf32>
    %cst_140 = arith.constant -1.45315206 : f32
    %428 = vector.broadcast %cst_140 : f32 to vector<8x32xf32>
    %429 = arith.addf %427, %428 : vector<8x32xf32>
    %430 = arith.mulf %429, %425 : vector<8x32xf32>
    %cst_141 = arith.constant 1.42141378 : f32
    %431 = vector.broadcast %cst_141 : f32 to vector<8x32xf32>
    %432 = arith.addf %430, %431 : vector<8x32xf32>
    %433 = arith.mulf %432, %425 : vector<8x32xf32>
    %cst_142 = arith.constant -0.284496725 : f32
    %434 = vector.broadcast %cst_142 : f32 to vector<8x32xf32>
    %435 = arith.addf %433, %434 : vector<8x32xf32>
    %436 = arith.mulf %435, %425 : vector<8x32xf32>
    %cst_143 = arith.constant 0.254829586 : f32
    %437 = vector.broadcast %cst_143 : f32 to vector<8x32xf32>
    %438 = arith.addf %436, %437 : vector<8x32xf32>
    %439 = arith.mulf %438, %425 : vector<8x32xf32>
    %cst_144 = arith.constant 0.000000e+00 : f32
    %440 = vector.broadcast %cst_144 : f32 to vector<8x32xf32>
    %441 = arith.subf %440, %419 : vector<8x32xf32>
    %442 = arith.mulf %441, %419 : vector<8x32xf32>
    %443 = math.exp %442 : vector<8x32xf32>
    %444 = arith.mulf %439, %443 : vector<8x32xf32>
    %cst_145 = arith.constant 1.000000e+00 : f32
    %445 = vector.broadcast %cst_145 : f32 to vector<8x32xf32>
    %446 = arith.subf %445, %444 : vector<8x32xf32>
    %447 = arith.mulf %418, %446 : vector<8x32xf32>
    %cst_146 = arith.constant 1.000000e+00 : f32
    %448 = vector.broadcast %cst_146 : f32 to vector<8x32xf32>
    %449 = arith.addf %448, %447 : vector<8x32xf32>
    %450 = arith.mulf %411, %449 : vector<8x32xf32>
    %451 = arith.truncf %450 : vector<8x32xf32> to vector<8x32xbf16>
    %cst_147 = arith.constant dense<0.000000e+00> : vector<8x32xf32>
    %452 = tpu.matmul %451, %347, %cst_147 {dimension_numbers = #tpu.dot_dimension_numbers<[1], [0], [0], [1], [0, 0, 1, 1], [], []>} : vector<8x32xbf16>, vector<32x32xbf16>, vector<8x32xf32> -> vector<8x32xf32>
    %453 = vector.broadcast %351 : vector<1x32xf32> to vector<8x32xf32>
    %454 = arith.addf %452, %453 : vector<8x32xf32>
    %455 = arith.addf %405, %454 : vector<8x32xf32>
    %cst_148 = arith.constant dense<0.000000e+00> : vector<8xf32>
    %456 = vector.multi_reduction <add>, %455, %cst_148 [1] : vector<8x32xf32> to vector<8xf32>
    %457 = vector.shape_cast %456 : vector<8xf32> to vector<8x1xf32>
    %cst_149 = arith.constant 3.200000e+01 : f32
    %458 = vector.broadcast %cst_149 : f32 to vector<8x1xf32>
    %459 = arith.divf %457, %458 : vector<8x1xf32>
    %460 = arith.mulf %455, %455 : vector<8x32xf32>
    %cst_150 = arith.constant dense<0.000000e+00> : vector<8xf32>
    %461 = vector.multi_reduction <add>, %460, %cst_150 [1] : vector<8x32xf32> to vector<8xf32>
    %462 = vector.shape_cast %461 : vector<8xf32> to vector<8x1xf32>
    %cst_151 = arith.constant 3.200000e+01 : f32
    %463 = vector.broadcast %cst_151 : f32 to vector<8x1xf32>
    %464 = arith.divf %462, %463 : vector<8x1xf32>
    %465 = arith.mulf %459, %459 : vector<8x1xf32>
    %466 = arith.subf %464, %465 : vector<8x1xf32>
    %467 = vector.broadcast %459 : vector<8x1xf32> to vector<8x32xf32>
    %468 = arith.subf %455, %467 : vector<8x32xf32>
    %cst_152 = arith.constant 9.99999974E-6 : f32
    %469 = vector.broadcast %cst_152 : f32 to vector<8x1xf32>
    %470 = arith.addf %466, %469 : vector<8x1xf32>
    %471 = math.rsqrt %470 : vector<8x1xf32>
    %472 = vector.broadcast %471 : vector<8x1xf32> to vector<8x32xf32>
    %473 = arith.mulf %468, %472 : vector<8x32xf32>
    %474 = vector.broadcast %354 : vector<1x32xf32> to vector<8x32xf32>
    %475 = arith.mulf %473, %474 : vector<8x32xf32>
    %476 = vector.broadcast %355 : vector<1x32xf32> to vector<8x32xf32>
    %477 = arith.addf %475, %476 : vector<8x32xf32>
    %c384 = arith.constant 384 : index
    %c0_153 = arith.constant 0 : index
    %478 = vector.load %arg1[%c384, %c0_153] : memref<544x128xbf16, #tpu.memory_space<vmem>>, vector<32x96xbf16>
    %c416 = arith.constant 416 : index
    %c0_154 = arith.constant 0 : index
    %479 = vector.load %arg1[%c416, %c0_154] : memref<544x128xbf16, #tpu.memory_space<vmem>>, vector<32x32xbf16>
    %c448 = arith.constant 448 : index
    %c0_155 = arith.constant 0 : index
    %480 = vector.load %arg1[%c448, %c0_155] : memref<544x128xbf16, #tpu.memory_space<vmem>>, vector<32x32xbf16>
    %c480 = arith.constant 480 : index
    %c0_156 = arith.constant 0 : index
    %481 = vector.load %arg1[%c480, %c0_156] : memref<544x128xbf16, #tpu.memory_space<vmem>>, vector<32x32xbf16>
    %c24 = arith.constant 24 : index
    %c0_157 = arith.constant 0 : index
    %482 = vector.load %arg2[%c24, %c0_157] : memref<44x128xf32, #tpu.memory_space<vmem>>, vector<1x96xf32>
    %c25 = arith.constant 25 : index
    %c0_158 = arith.constant 0 : index
    %483 = vector.load %arg2[%c25, %c0_158] : memref<44x128xf32, #tpu.memory_space<vmem>>, vector<1x32xf32>
    %c26 = arith.constant 26 : index
    %c0_159 = arith.constant 0 : index
    %484 = vector.load %arg2[%c26, %c0_159] : memref<44x128xf32, #tpu.memory_space<vmem>>, vector<1x32xf32>
    %c27 = arith.constant 27 : index
    %c0_160 = arith.constant 0 : index
    %485 = vector.load %arg2[%c27, %c0_160] : memref<44x128xf32, #tpu.memory_space<vmem>>, vector<1x32xf32>
    %c28 = arith.constant 28 : index
    %c0_161 = arith.constant 0 : index
    %486 = vector.load %arg2[%c28, %c0_161] : memref<44x128xf32, #tpu.memory_space<vmem>>, vector<1x32xf32>
    %c29 = arith.constant 29 : index
    %c0_162 = arith.constant 0 : index
    %487 = vector.load %arg2[%c29, %c0_162] : memref<44x128xf32, #tpu.memory_space<vmem>>, vector<1x32xf32>
    %c30 = arith.constant 30 : index
    %c0_163 = arith.constant 0 : index
    %488 = vector.load %arg2[%c30, %c0_163] : memref<44x128xf32, #tpu.memory_space<vmem>>, vector<1x32xf32>
    %c31 = arith.constant 31 : index
    %c0_164 = arith.constant 0 : index
    %489 = vector.load %arg2[%c31, %c0_164] : memref<44x128xf32, #tpu.memory_space<vmem>>, vector<1x32xf32>
    %490 = arith.truncf %477 : vector<8x32xf32> to vector<8x32xbf16>
    %cst_165 = arith.constant dense<0.000000e+00> : vector<8x96xf32>
    %491 = tpu.matmul %490, %478, %cst_165 {dimension_numbers = #tpu.dot_dimension_numbers<[1], [0], [0], [1], [0, 0, 1, 1], [], []>} : vector<8x32xbf16>, vector<32x96xbf16>, vector<8x96xf32> -> vector<8x96xf32>
    %492 = vector.broadcast %482 : vector<1x96xf32> to vector<8x96xf32>
    %493 = arith.addf %491, %492 : vector<8x96xf32>
    %494 = vector.extract_strided_slice %493 {offsets = [0, 0], sizes = [8, 32], strides = [1, 1]} : vector<8x96xf32> to vector<8x32xf32>
    %495 = vector.extract_strided_slice %493 {offsets = [0, 32], sizes = [8, 32], strides = [1, 1]} : vector<8x96xf32> to vector<8x32xf32>
    %496 = vector.extract_strided_slice %493 {offsets = [0, 64], sizes = [8, 32], strides = [1, 1]} : vector<8x96xf32> to vector<8x32xf32>
    %497 = arith.truncf %494 : vector<8x32xf32> to vector<8x32xbf16>
    %498 = arith.truncf %495 : vector<8x32xf32> to vector<8x32xbf16>
    %cst_166 = arith.constant dense<0.000000e+00> : vector<8x8xf32>
    %499 = tpu.matmul %497, %498, %cst_166 {dimension_numbers = #tpu.dot_dimension_numbers<[1], [1], [0], [0], [0, 0, 1, 0], [], []>} : vector<8x32xbf16>, vector<8x32xbf16>, vector<8x8xf32> -> vector<8x8xf32>
    %500 = arith.addf %499, %44 : vector<8x8xf32>
    %cst_167 = arith.constant dense<0xFF800000> : vector<8xf32>
    %501 = vector.multi_reduction <maximumf>, %500, %cst_167 [1] : vector<8x8xf32> to vector<8xf32>
    %502 = vector.shape_cast %501 : vector<8xf32> to vector<8x1xf32>
    %503 = vector.broadcast %502 : vector<8x1xf32> to vector<8x8xf32>
    %504 = arith.subf %500, %503 : vector<8x8xf32>
    %505 = math.exp %504 : vector<8x8xf32>
    %cst_168 = arith.constant dense<0.000000e+00> : vector<8xf32>
    %506 = vector.multi_reduction <add>, %505, %cst_168 [1] : vector<8x8xf32> to vector<8xf32>
    %507 = vector.shape_cast %506 : vector<8xf32> to vector<8x1xf32>
    %508 = vector.broadcast %507 : vector<8x1xf32> to vector<8x8xf32>
    %509 = arith.divf %505, %508 : vector<8x8xf32>
    %510 = arith.truncf %509 : vector<8x8xf32> to vector<8x8xbf16>
    %511 = arith.truncf %496 : vector<8x32xf32> to vector<8x32xbf16>
    %cst_169 = arith.constant dense<0.000000e+00> : vector<8x32xf32>
    %512 = tpu.matmul %510, %511, %cst_169 {dimension_numbers = #tpu.dot_dimension_numbers<[1], [0], [0], [1], [0, 0, 1, 1], [], []>} : vector<8x8xbf16>, vector<8x32xbf16>, vector<8x32xf32> -> vector<8x32xf32>
    %513 = arith.truncf %512 : vector<8x32xf32> to vector<8x32xbf16>
    %cst_170 = arith.constant dense<0.000000e+00> : vector<8x32xf32>
    %514 = tpu.matmul %513, %479, %cst_170 {dimension_numbers = #tpu.dot_dimension_numbers<[1], [0], [0], [1], [0, 0, 1, 1], [], []>} : vector<8x32xbf16>, vector<32x32xbf16>, vector<8x32xf32> -> vector<8x32xf32>
    %515 = vector.broadcast %483 : vector<1x32xf32> to vector<8x32xf32>
    %516 = arith.addf %514, %515 : vector<8x32xf32>
    %517 = arith.addf %477, %516 : vector<8x32xf32>
    %cst_171 = arith.constant dense<0.000000e+00> : vector<8xf32>
    %518 = vector.multi_reduction <add>, %517, %cst_171 [1] : vector<8x32xf32> to vector<8xf32>
    %519 = vector.shape_cast %518 : vector<8xf32> to vector<8x1xf32>
    %cst_172 = arith.constant 3.200000e+01 : f32
    %520 = vector.broadcast %cst_172 : f32 to vector<8x1xf32>
    %521 = arith.divf %519, %520 : vector<8x1xf32>
    %522 = arith.mulf %517, %517 : vector<8x32xf32>
    %cst_173 = arith.constant dense<0.000000e+00> : vector<8xf32>
    %523 = vector.multi_reduction <add>, %522, %cst_173 [1] : vector<8x32xf32> to vector<8xf32>
    %524 = vector.shape_cast %523 : vector<8xf32> to vector<8x1xf32>
    %cst_174 = arith.constant 3.200000e+01 : f32
    %525 = vector.broadcast %cst_174 : f32 to vector<8x1xf32>
    %526 = arith.divf %524, %525 : vector<8x1xf32>
    %527 = arith.mulf %521, %521 : vector<8x1xf32>
    %528 = arith.subf %526, %527 : vector<8x1xf32>
    %529 = vector.broadcast %521 : vector<8x1xf32> to vector<8x32xf32>
    %530 = arith.subf %517, %529 : vector<8x32xf32>
    %cst_175 = arith.constant 9.99999974E-6 : f32
    %531 = vector.broadcast %cst_175 : f32 to vector<8x1xf32>
    %532 = arith.addf %528, %531 : vector<8x1xf32>
    %533 = math.rsqrt %532 : vector<8x1xf32>
    %534 = vector.broadcast %533 : vector<8x1xf32> to vector<8x32xf32>
    %535 = arith.mulf %530, %534 : vector<8x32xf32>
    %536 = vector.broadcast %486 : vector<1x32xf32> to vector<8x32xf32>
    %537 = arith.mulf %535, %536 : vector<8x32xf32>
    %538 = vector.broadcast %487 : vector<1x32xf32> to vector<8x32xf32>
    %539 = arith.addf %537, %538 : vector<8x32xf32>
    %540 = arith.truncf %539 : vector<8x32xf32> to vector<8x32xbf16>
    %cst_176 = arith.constant dense<0.000000e+00> : vector<8x32xf32>
    %541 = tpu.matmul %540, %480, %cst_176 {dimension_numbers = #tpu.dot_dimension_numbers<[1], [0], [0], [1], [0, 0, 1, 1], [], []>} : vector<8x32xbf16>, vector<32x32xbf16>, vector<8x32xf32> -> vector<8x32xf32>
    %542 = vector.broadcast %484 : vector<1x32xf32> to vector<8x32xf32>
    %543 = arith.addf %541, %542 : vector<8x32xf32>
    %cst_177 = arith.constant 5.000000e-01 : f32
    %544 = vector.broadcast %cst_177 : f32 to vector<8x32xf32>
    %545 = arith.mulf %544, %543 : vector<8x32xf32>
    %cst_178 = arith.constant 0.707106769 : f32
    %546 = vector.broadcast %cst_178 : f32 to vector<8x32xf32>
    %547 = arith.mulf %543, %546 : vector<8x32xf32>
    %cst_179 = arith.constant 0.000000e+00 : f32
    %548 = vector.broadcast %cst_179 : f32 to vector<8x32xf32>
    %549 = arith.cmpf oge, %547, %548 : vector<8x32xf32>
    %cst_180 = arith.constant 1.000000e+00 : f32
    %cst_181 = arith.constant -1.000000e+00 : f32
    %550 = vector.broadcast %cst_180 : f32 to vector<8x32xf32>
    %551 = vector.broadcast %cst_181 : f32 to vector<8x32xf32>
    %552 = arith.select %549, %550, %551 : vector<8x32xi1>, vector<8x32xf32>
    %553 = math.absf %547 : vector<8x32xf32>
    %cst_182 = arith.constant 0.327591091 : f32
    %554 = vector.broadcast %cst_182 : f32 to vector<8x32xf32>
    %555 = arith.mulf %554, %553 : vector<8x32xf32>
    %cst_183 = arith.constant 1.000000e+00 : f32
    %556 = vector.broadcast %cst_183 : f32 to vector<8x32xf32>
    %557 = arith.addf %556, %555 : vector<8x32xf32>
    %cst_184 = arith.constant 1.000000e+00 : f32
    %558 = vector.broadcast %cst_184 : f32 to vector<8x32xf32>
    %559 = arith.divf %558, %557 : vector<8x32xf32>
    %cst_185 = arith.constant 1.06140542 : f32
    %560 = vector.broadcast %cst_185 : f32 to vector<8x32xf32>
    %561 = arith.mulf %560, %559 : vector<8x32xf32>
    %cst_186 = arith.constant -1.45315206 : f32
    %562 = vector.broadcast %cst_186 : f32 to vector<8x32xf32>
    %563 = arith.addf %561, %562 : vector<8x32xf32>
    %564 = arith.mulf %563, %559 : vector<8x32xf32>
    %cst_187 = arith.constant 1.42141378 : f32
    %565 = vector.broadcast %cst_187 : f32 to vector<8x32xf32>
    %566 = arith.addf %564, %565 : vector<8x32xf32>
    %567 = arith.mulf %566, %559 : vector<8x32xf32>
    %cst_188 = arith.constant -0.284496725 : f32
    %568 = vector.broadcast %cst_188 : f32 to vector<8x32xf32>
    %569 = arith.addf %567, %568 : vector<8x32xf32>
    %570 = arith.mulf %569, %559 : vector<8x32xf32>
    %cst_189 = arith.constant 0.254829586 : f32
    %571 = vector.broadcast %cst_189 : f32 to vector<8x32xf32>
    %572 = arith.addf %570, %571 : vector<8x32xf32>
    %573 = arith.mulf %572, %559 : vector<8x32xf32>
    %cst_190 = arith.constant 0.000000e+00 : f32
    %574 = vector.broadcast %cst_190 : f32 to vector<8x32xf32>
    %575 = arith.subf %574, %553 : vector<8x32xf32>
    %576 = arith.mulf %575, %553 : vector<8x32xf32>
    %577 = math.exp %576 : vector<8x32xf32>
    %578 = arith.mulf %573, %577 : vector<8x32xf32>
    %cst_191 = arith.constant 1.000000e+00 : f32
    %579 = vector.broadcast %cst_191 : f32 to vector<8x32xf32>
    %580 = arith.subf %579, %578 : vector<8x32xf32>
    %581 = arith.mulf %552, %580 : vector<8x32xf32>
    %cst_192 = arith.constant 1.000000e+00 : f32
    %582 = vector.broadcast %cst_192 : f32 to vector<8x32xf32>
    %583 = arith.addf %582, %581 : vector<8x32xf32>
    %584 = arith.mulf %545, %583 : vector<8x32xf32>
    %585 = arith.truncf %584 : vector<8x32xf32> to vector<8x32xbf16>
    %cst_193 = arith.constant dense<0.000000e+00> : vector<8x32xf32>
    %586 = tpu.matmul %585, %481, %cst_193 {dimension_numbers = #tpu.dot_dimension_numbers<[1], [0], [0], [1], [0, 0, 1, 1], [], []>} : vector<8x32xbf16>, vector<32x32xbf16>, vector<8x32xf32> -> vector<8x32xf32>
    %587 = vector.broadcast %485 : vector<1x32xf32> to vector<8x32xf32>
    %588 = arith.addf %586, %587 : vector<8x32xf32>
    %589 = arith.addf %539, %588 : vector<8x32xf32>
    %cst_194 = arith.constant dense<0.000000e+00> : vector<8xf32>
    %590 = vector.multi_reduction <add>, %589, %cst_194 [1] : vector<8x32xf32> to vector<8xf32>
    %591 = vector.shape_cast %590 : vector<8xf32> to vector<8x1xf32>
    %cst_195 = arith.constant 3.200000e+01 : f32
    %592 = vector.broadcast %cst_195 : f32 to vector<8x1xf32>
    %593 = arith.divf %591, %592 : vector<8x1xf32>
    %594 = arith.mulf %589, %589 : vector<8x32xf32>
    %cst_196 = arith.constant dense<0.000000e+00> : vector<8xf32>
    %595 = vector.multi_reduction <add>, %594, %cst_196 [1] : vector<8x32xf32> to vector<8xf32>
    %596 = vector.shape_cast %595 : vector<8xf32> to vector<8x1xf32>
    %cst_197 = arith.constant 3.200000e+01 : f32
    %597 = vector.broadcast %cst_197 : f32 to vector<8x1xf32>
    %598 = arith.divf %596, %597 : vector<8x1xf32>
    %599 = arith.mulf %593, %593 : vector<8x1xf32>
    %600 = arith.subf %598, %599 : vector<8x1xf32>
    %601 = vector.broadcast %593 : vector<8x1xf32> to vector<8x32xf32>
    %602 = arith.subf %589, %601 : vector<8x32xf32>
    %cst_198 = arith.constant 9.99999974E-6 : f32
    %603 = vector.broadcast %cst_198 : f32 to vector<8x1xf32>
    %604 = arith.addf %600, %603 : vector<8x1xf32>
    %605 = math.rsqrt %604 : vector<8x1xf32>
    %606 = vector.broadcast %605 : vector<8x1xf32> to vector<8x32xf32>
    %607 = arith.mulf %602, %606 : vector<8x32xf32>
    %608 = vector.broadcast %488 : vector<1x32xf32> to vector<8x32xf32>
    %609 = arith.mulf %607, %608 : vector<8x32xf32>
    %610 = vector.broadcast %489 : vector<1x32xf32> to vector<8x32xf32>
    %611 = arith.addf %609, %610 : vector<8x32xf32>
    %612 = vector.extract_strided_slice %611 {offsets = [0, 0], sizes = [2, 32], strides = [1, 1]} : vector<8x32xf32> to vector<2x32xf32>
    %c32_199 = arith.constant 32 : index
    %c0_200 = arith.constant 0 : index
    %613 = vector.load %arg2[%c32_199, %c0_200] : memref<44x128xf32, #tpu.memory_space<vmem>>, vector<1x32xf32>
    %c33 = arith.constant 33 : index
    %c0_201 = arith.constant 0 : index
    %614 = vector.load %arg2[%c33, %c0_201] : memref<44x128xf32, #tpu.memory_space<vmem>>, vector<1x32xf32>
    %cst_202 = arith.constant dense<0.000000e+00> : vector<2xf32>
    %615 = vector.multi_reduction <add>, %612, %cst_202 [1] : vector<2x32xf32> to vector<2xf32>
    %616 = vector.shape_cast %615 : vector<2xf32> to vector<2x1xf32>
    %cst_203 = arith.constant 3.200000e+01 : f32
    %617 = vector.broadcast %cst_203 : f32 to vector<2x1xf32>
    %618 = arith.divf %616, %617 : vector<2x1xf32>
    %619 = arith.mulf %612, %612 : vector<2x32xf32>
    %cst_204 = arith.constant dense<0.000000e+00> : vector<2xf32>
    %620 = vector.multi_reduction <add>, %619, %cst_204 [1] : vector<2x32xf32> to vector<2xf32>
    %621 = vector.shape_cast %620 : vector<2xf32> to vector<2x1xf32>
    %cst_205 = arith.constant 3.200000e+01 : f32
    %622 = vector.broadcast %cst_205 : f32 to vector<2x1xf32>
    %623 = arith.divf %621, %622 : vector<2x1xf32>
    %624 = arith.mulf %618, %618 : vector<2x1xf32>
    %625 = arith.subf %623, %624 : vector<2x1xf32>
    %626 = vector.broadcast %618 : vector<2x1xf32> to vector<2x32xf32>
    %627 = arith.subf %612, %626 : vector<2x32xf32>
    %cst_206 = arith.constant 9.99999997E-7 : f32
    %628 = vector.broadcast %cst_206 : f32 to vector<2x1xf32>
    %629 = arith.addf %625, %628 : vector<2x1xf32>
    %630 = math.rsqrt %629 : vector<2x1xf32>
    %631 = vector.broadcast %630 : vector<2x1xf32> to vector<2x32xf32>
    %632 = arith.mulf %627, %631 : vector<2x32xf32>
    %633 = vector.broadcast %613 : vector<1x32xf32> to vector<2x32xf32>
    %634 = arith.mulf %632, %633 : vector<2x32xf32>
    %635 = vector.broadcast %614 : vector<1x32xf32> to vector<2x32xf32>
    %636 = arith.addf %634, %635 : vector<2x32xf32>
    %c512 = arith.constant 512 : index
    %c0_207 = arith.constant 0 : index
    %637 = vector.load %arg1[%c512, %c0_207] : memref<544x128xbf16, #tpu.memory_space<vmem>>, vector<32x128xbf16>
    %c34 = arith.constant 34 : index
    %c0_208 = arith.constant 0 : index
    %638 = vector.load %arg2[%c34, %c0_208] : memref<44x128xf32, #tpu.memory_space<vmem>>, vector<1x128xf32>
    %639 = arith.truncf %636 : vector<2x32xf32> to vector<2x32xbf16>
    %cst_209 = arith.constant dense<0.000000e+00> : vector<2x128xf32>
    %640 = tpu.matmul %639, %637, %cst_209 {dimension_numbers = #tpu.dot_dimension_numbers<[1], [0], [0], [1], [0, 0, 1, 1], [], []>} : vector<2x32xbf16>, vector<32x128xbf16>, vector<2x128xf32> -> vector<2x128xf32>
    %641 = vector.broadcast %638 : vector<1x128xf32> to vector<2x128xf32>
    %642 = arith.addf %640, %641 : vector<2x128xf32>
    %c0_210 = arith.constant 0 : index
    %c0_211 = arith.constant 0 : index
    %643 = vector.load %arg3[%c0_210, %c0_211] : memref<2x128xf32, #tpu.memory_space<vmem>>, vector<2x128xf32>
    tpu.vector_store %arg3[%c0_210, %c0_211], %642 {strides = array<i32>} : memref<2x128xf32, #tpu.memory_space<vmem>>, vector<2x128xf32>,
    return
  }
}

</mosaic_0001>

<llo_original>
// kernel: _lambda_.1
$region0: #{_lambda_.1}
  #allocation0 [shape = 'u32[]', space=smem, size = 0x4, offset = 0x4, fixed_abs, tag = 'smem constant byte address 0x4 - core index']
  #allocation1 [shape = 'u32[144,128]{1,0:T(1,128)}', space=vmem, size = 0x12000, scoped, tag = 'internal scratch']
  %s0 = inlined_call_operand.vmem [shape: f32[24,32], index: 0, kind: input, shape index: {}]
  %s1 = inlined_call_operand.vmem [shape: bf16[544,128], index: 1, kind: input, shape index: {}]
  %s2 = inlined_call_operand.vmem [shape: f32[44,128], index: 2, kind: input, shape index: {}]
  %s3 = inlined_call_operand.hbm [shape: f32[2,128], index: 3, kind: output, shape index: {}]
  %s4 = sld [smem:[#allocation0]]
  $region22: #{_lambda_.1} parent=0
    _
  %s6 = ssub.s32 1, %s4
  %s7 = scalar_select 0, %s6, %s4
  $region1: #{_lambda_.1} parent=0
    #allocation2 [shape = 'u8[1024]{0}', space=vmem, size = 0x400, scoped, tag = 'output window, operand 0, single buffered']
    #allocation3 [shape = 's32[1]{0}', space=sflag, size = 0x4, scoped, tag = 'scoped memory for _lambda_.1']
    %8 = vsyncpa [#allocation3], 0
    // Predicated region
    $region2: #{_lambda_.1} parent=1 // pred_check
      _
    $region3: #{_lambda_.1} parent=1 // pred_check_branch
      %10 = sbr.rel (0) target = $region5
    $region4: #{_lambda_.1} parent=1 // pred_region
      _
    $region5: #{_lambda_.1} parent=1 // pred_fallthru
      _
    // Predicated region
    $region6: #{_lambda_.1} parent=1 // pred_check
      _
    $region7: #{_lambda_.1} parent=1 // pred_check_branch
      %12 = sbr.rel (0) target = $region9
    $region8: #{_lambda_.1} parent=1 // pred_region
      _
    $region9: #{_lambda_.1} parent=1 // pred_fallthru
      _
    // Predicated region
    $region10: #{_lambda_.1} parent=1 // pred_check
      _
    $region11: #{_lambda_.1} parent=1 // pred_check_branch
      %14 = sbr.rel (0) target = $region13
    $region12: #{_lambda_.1} parent=1 // pred_region
      _
    $region13: #{_lambda_.1} parent=1 // pred_fallthru
      _
    %v16 = vlaneseq
    %v17 = vshrl.u32 %v16, 7
    %v18 = vadd.s32 %v17, 8
    %v19 = vadd.s32 %v17, 16
    %v20 = vlaneseq
    %v21 = vand.u32 %v20, 127
    %v22 = vshra.s32 %v17, 2
    %v23 = vshra.s32 %v18, 2
    %v24 = vshra.s32 %v19, 2
    %v25 = vshra.s32 %v21, 2
    %vm26 = vcmp.eq.s32.totalorder %v22, %v25
    %vm27 = vcmp.eq.s32.totalorder %v23, %v25
    %vm28 = vcmp.eq.s32.totalorder %v24, %v25
    %v29 = vsel %vm26, 0.0, -1e+30
    %v30 = vsel %vm27, 0.0, -1e+30
    %v31 = vsel %vm28, 0.0, -1e+30
    %vm32 = vcmp.ge.s32.totalorder %v21, 0
    %vm33 = vcmp.lt.s32.totalorder %v21, 16
    %vm34 = vmand %vm32, %vm33
    %v35 = vsel %vm34, 1, 0
    %v36 = vcvt.s32.f32 %v35
    %vm37 = vcmp.ge.s32.totalorder %v21, 16
    %vm38 = vcmp.lt.s32.totalorder %v21, 32
    %vm39 = vmand %vm37, %vm38
    %v40 = vsel %vm39, 1, 0
    %v41 = vcvt.s32.f32 %v40
    %vm42 = vcmp.ge.s32.totalorder %v17, 2
    %v43 = vsub.s32 %v17, 2
    %vm44 = vcmp.eq.s32.totalorder %v25, %v43
    %vm45 = vmand %vm42, %vm44
    %v46 = vsel %vm45, 0.25, 0.0
    %vm47 = vcmp.lt.s32.totalorder %v17, 2
    %v48 = vsel %vm47, 1, 0
    %v49 = vcvt.s32.f32 %v48
    %v50 = vld [vmem:[%s2 + $0x24] sm:$0xff]
    %v51 = vld [vmem:[%s0] sm:$0xff]
    %v52 = vld [vmem:[%s0 + $0x8] sm:$0xff]
    %v53 = vld [vmem:[%s0 + $0x10] sm:$0xff]
    %v54 = vld [vmem:[%s1] sm:$0xf]
    %v55 = vld [vmem:[%s1 + $0x4] sm:$0xf]
    %v56 = vld [vmem:[%s1 + $0x8] sm:$0xf]
    %v57 = vld [vmem:[%s1 + $0xc] sm:$0xf]
    %v58 = vld [vmem:[%s1 + $0x10] sm:$0xf]
    %v59 = vld [vmem:[%s1 + $0x14] sm:$0xf]
    %v60 = vld [vmem:[%s1 + $0x18] sm:$0xf]
    %v61 = vld [vmem:[%s1 + $0x1c] sm:$0xf]
    %v62 = vld [vmem:[%s1 + $0x20] sm:$0xf]
    %v63 = vld [vmem:[%s1 + $0x24] sm:$0xf]
    %v64 = vld [vmem:[%s1 + $0x28] sm:$0xf]
    %v65 = vld [vmem:[%s1 + $0x2c] sm:$0xf]
    %v66 = vld [vmem:[%s1 + $0x30] sm:$0xf]
    %v67 = vld [vmem:[%s1 + $0x34] sm:$0xf]
    %v68 = vld [vmem:[%s1 + $0x38] sm:$0xf]
    %v69 = vld [vmem:[%s1 + $0x3c] sm:$0xf]
    %v70 = vld [vmem:[%s2] sm:$0x1]
    %v71 = vld [vmem:[%s2 + $0x1] sm:$0x1]
    %v72 = vld [vmem:[%s2 + $0x2] sm:$0x1]
    %v73 = vld [vmem:[%s2 + $0x3] sm:$0x1]
    %v74 = vld [vmem:[%s2 + $0x4] sm:$0x1]
    %v75 = vld [vmem:[%s2 + $0x5] sm:$0x1]
    %v76 = vld [vmem:[%s2 + $0x6] sm:$0x1]
    %v77 = vld [vmem:[%s2 + $0x7] sm:$0x1]
    %v78 = vpack.c.bf16 %v52, %v51
    %v79 = vpack.c.bf16 %v53, %v53
    %v80 = vlaneseq
    %v81 = vshrl.u32 %v80, 7
    %v82 = vsub.s32 0, %v81
    %v83 = vrot.slane %v70, %v82
    %v88 = vunpack.c.l.b16 %v54
    %v89 = vunpack.c.l.b16 %v55
    %v90 = vunpack.c.l.b16 %v56
    %v91 = vunpack.c.l.b16 %v57
    %v92 = vpack.c.b16 %v89, %v88
    %v93 = vpack.c.b16 %v91, %v90
    %vm96 = vcmask 261120
    %v98 = vsel %vm96, %v78, 0
    %v101 = vsel %vm96, %v79, 0
    %103 = vmatprep.subr.bf16.mxu0 0
    %104 = vmatpush1.bf16.msra.mxu0 %v92
    %105 = vmatprep.subr.bf16.mxu0 0
    %106 = vmatpush1.bf16.msra.mxu0 %v93
    %107 = vmatprep.subr.bf16.mxu0 0
    %108 = vmatpush1.bf16.msra.mxu0 0
    %109 = vmatprep.subr.bf16.mxu0 0
    %110 = vmatpush1.bf16.msra.mxu0 0
    %111 = vmatprep.subr.bf16.mxu0 0
    %112 = vmatpush1.bf16.msra.mxu0 0
    %113 = vmatprep.subr.bf16.mxu0 0
    %114 = vmatpush1.bf16.msra.mxu0 0
    %115 = vmatprep.subr.bf16.mxu0 0
    %116 = vmatpush1.bf16.msra.mxu0 0
    %117 = vmatprep.subr.bf16.mxu0 0
    %118 = vmatpush1.bf16.msra.mxu0 0
    %119 = vmatprep.subr.bf16.mxu0 0
    %120 = vmatpush1.bf16.msra.mxu0 0
    %121 = vmatprep.subr.bf16.mxu0 0
    %122 = vmatpush1.bf16.msra.mxu0 0
    %123 = vmatprep.subr.bf16.mxu0 0
    %124 = vmatpush1.bf16.msra.mxu0 0
    %125 = vmatprep.subr.bf16.mxu0 0
    %126 = vmatpush1.bf16.msra.mxu0 0
    %127 = vmatprep.subr.bf16.mxu0 0
    %128 = vmatpush1.bf16.msra.mxu0 0
    %129 = vmatprep.subr.bf16.mxu0 0
    %130 = vmatpush1.bf16.msra.mxu0 0
    %131 = vmatprep.subr.bf16.mxu0 0
    %132 = vmatpush1.bf16.msra.mxu0 0
    %133 = vmatprep.subr.bf16.mxu0 0
    %134 = vmatpush1.bf16.msra.mxu0 0
    %135 = vmatprep.mubr.bf16.mxu0 0
    %136 = vmatmul.mubr.bf16.gmra.mrb[0].mxu0 %v98
    %v137 = vpop.f32.mrb[0].mxu0
    %v138 = vadd.f32 %v83, %v137
    %v139 = vpop.f32.mrb[0].mxu0
    %v140 = vpop.f32.mrb[0].mxu0
    %v141 = vadd.f32 %v83, %v140
    %v142 = vpop.f32.mrb[0].mxu0
    %143 = vmatprep.mubr.bf16.mxu0 0
    %144 = vmatmul.mubr.bf16.gmra.mrb[0].mxu0 %v101
    %v145 = vpop.f32.mrb[0].mxu0
    %v146 = vadd.f32 %v83, %v145
    %v147 = vpop.f32.mrb[0].mxu0
    %v148 = vpop.f32.mrb[0].mxu0
    %v149 = vpop.f32.mrb[0].mxu0
    %150 = vdwg.mxu0
    %v151 = vmul.f32 %v138, %v36
    %v152 = vmul.f32 %v141, %v36
    %v153 = vmul.f32 %v146, %v36
    %v154 = vmul.f32 %v138, %v41
    %v155 = vmul.f32 %v141, %v41
    %v156 = vmul.f32 %v146, %v41
    %v157 = vpack.c.bf16 %v152, %v151
    %v158 = vpack.c.bf16 %v154, %v153
    %v159 = vpack.c.bf16 %v156, %v155
    %v160 = vpack.c.bf16 %v141, %v138
    %v161 = vpack.c.bf16 %v146, %v146
    %164 = vrot.lane.b32.xlu0 %v160, 96
    %v165 = vpop.permute.xlu0 %164
    %166 = vrot.lane.b32.xlu0 %v161, 96
    %v167 = vpop.permute.xlu0 %166
    %v169 = vsel %vm96, %v157, 0
    %v172 = vsel %vm96, %v158, 0
    %v175 = vsel %vm96, %v159, 0
    %v178 = vsel %vm96, %v165, 0
    %v181 = vsel %vm96, %v167, 0
    %183 = vmatprep.subr.bf16.mxu0 0
    %184 = vmatpush1.bf16.xpose.msra.mxu0 %v178
    %185 = vmatprep.subr.bf16.mxu0 0
    %186 = vmatpush1.bf16.xpose.msra.mxu0 %v181
    %187 = vmatprep.subr.bf16.mxu0 0
    %188 = vmatpush1.bf16.xpose.msra.mxu0 0
    %189 = vmatprep.subr.bf16.mxu0 0
    %190 = vmatpush1.bf16.xpose.msra.mxu0 0
    %191 = vmatprep.subr.bf16.mxu0 0
    %192 = vmatpush1.bf16.xpose.msra.mxu0 0
    %193 = vmatprep.subr.bf16.mxu0 0
    %194 = vmatpush1.bf16.xpose.msra.mxu0 0
    %195 = vmatprep.subr.bf16.mxu0 0
    %196 = vmatpush1.bf16.xpose.msra.mxu0 0
    %197 = vmatprep.subr.bf16.mxu0 0
    %198 = vmatpush1.bf16.xpose.msra.mxu0 0
    %199 = vmatprep.subr.bf16.mxu0 0
    %200 = vmatpush1.bf16.xpose.msra.mxu0 0
    %201 = vmatprep.subr.bf16.mxu0 0
    %202 = vmatpush1.bf16.xpose.msra.mxu0 0
    %203 = vmatprep.subr.bf16.mxu0 0
    %204 = vmatpush1.bf16.xpose.msra.mxu0 0
    %205 = vmatprep.subr.bf16.mxu0 0
    %206 = vmatpush1.bf16.xpose.msra.mxu0 0
    %207 = vmatprep.subr.bf16.mxu0 0
    %208 = vmatpush1.bf16.xpose.msra.mxu0 0
    %209 = vmatprep.subr.bf16.mxu0 0
    %210 = vmatpush1.bf16.xpose.msra.mxu0 0
    %211 = vmatprep.subr.bf16.mxu0 0
    %212 = vmatpush1.bf16.xpose.msra.mxu0 0
    %213 = vmatprep.subr.bf16.mxu0 0
    %214 = vmatpush1.bf16.xpose.msra.mxu0 0
    %215 = vmatprep.mubr.bf16.mxu0 0
    %216 = vmatmul.mubr.bf16.gmra.mrb[0].mxu0 %v169
    %v217 = vpop.f32.mrb[0].mxu0
    %v218 = vadd.f32 %v29, %v217
    %v219 = vpop.f32.mrb[0].mxu0
    %v220 = vpop.f32.mrb[0].mxu0
    %v221 = vadd.f32 %v30, %v220
    %v222 = vpop.f32.mrb[0].mxu0
    %223 = vmatprep.mubr.bf16.mxu0 0
    %224 = vmatmul.mubr.bf16.gmra.mrb[0].mxu0 %v172
    %v225 = vpop.f32.mrb[0].mxu0
    %v226 = vadd.f32 %v31, %v225
    %v227 = vpop.f32.mrb[0].mxu0
    %v228 = vpop.f32.mrb[0].mxu0
    %v229 = vadd.f32 %v29, %v228
    %v230 = vpop.f32.mrb[0].mxu0
    %231 = vmatprep.mubr.bf16.mxu0 0
    %232 = vmatmul.mubr.bf16.gmra.mrb[0].mxu0 %v175
    %v233 = vpop.f32.mrb[0].mxu0
    %v234 = vadd.f32 %v30, %v233
    %v235 = vpop.f32.mrb[0].mxu0
    %v236 = vpop.f32.mrb[0].mxu0
    %v237 = vadd.f32 %v31, %v236
    %v238 = vpop.f32.mrb[0].mxu0
    %239 = vdwg.mxu0
    %vm240 = vcmask 195584
    %v241 = vsel %vm240, %v218, -inf
    %242 = vmax.xlane.f32.xlu0 %v241
    %v243 = vpop.xlane.xlu0 %242
    %v244 = vsel %vm240, %v221, -inf
    %245 = vmax.xlane.f32.xlu0 %v244
    %v246 = vpop.xlane.xlu0 %245
    %v247 = vsel %vm240, %v226, -inf
    %248 = vmax.xlane.f32.xlu0 %v247
    %v249 = vpop.xlane.xlu0 %248
    %v250 = vsel %vm240, %v229, -inf
    %251 = vmax.xlane.f32.xlu0 %v250
    %v252 = vpop.xlane.xlu0 %251
    %v253 = vsel %vm240, %v234, -inf
    %254 = vmax.xlane.f32.xlu0 %v253
    %v255 = vpop.xlane.xlu0 %254
    %v256 = vsel %vm240, %v237, -inf
    %257 = vmax.xlane.f32.xlu0 %v256
    %v258 = vpop.xlane.xlu0 %257
    %v259 = vsub.f32 %v218, %v243
    %v260 = vsub.f32 %v221, %v246
    %v261 = vsub.f32 %v226, %v249
    %v262 = vsub.f32 %v229, %v252
    %v263 = vsub.f32 %v234, %v255
    %v264 = vsub.f32 %v237, %v258
    %v265 = vmul.f32 %v259, 1.442695
    %v266 = vpow.pop %v265
    %v267 = vmul.f32 %v260, 1.442695
    %v268 = vpow.pop %v267
    %v269 = vmul.f32 %v261, 1.442695
    %v270 = vpow.pop %v269
    %v271 = vmul.f32 %v262, 1.442695
    %v272 = vpow.pop %v271
    %v273 = vmul.f32 %v263, 1.442695
    %v274 = vpow.pop %v273
    %v275 = vmul.f32 %v264, 1.442695
    %v276 = vpow.pop %v275
    %v277 = vsel %vm240, %v266, 0.0
    %278 = vadd.xlane.f32.xlu0 %v277
    %v279 = vpop.xlane.xlu0 %278
    %v280 = vsel %vm240, %v268, 0.0
    %281 = vadd.xlane.f32.xlu0 %v280
    %v282 = vpop.xlane.xlu0 %281
    %v283 = vsel %vm240, %v270, 0.0
    %284 = vadd.xlane.f32.xlu0 %v283
    %v285 = vpop.xlane.xlu0 %284
    %v286 = vsel %vm240, %v272, 0.0
    %287 = vadd.xlane.f32.xlu0 %v286
    %v288 = vpop.xlane.xlu0 %287
    %v289 = vsel %vm240, %v274, 0.0
    %290 = vadd.xlane.f32.xlu0 %v289
    %v291 = vpop.xlane.xlu0 %290
    %v292 = vsel %vm240, %v276, 0.0
    %293 = vadd.xlane.f32.xlu0 %v292
    %v294 = vpop.xlane.xlu0 %293
    %v295 = vrcp.pop %v279
    %v296 = vmul.f32 %v266, %v295
    %v297 = vrcp.pop %v282
    %v298 = vmul.f32 %v268, %v297
    %v299 = vrcp.pop %v285
    %v300 = vmul.f32 %v270, %v299
    %v301 = vrcp.pop %v288
    %v302 = vmul.f32 %v272, %v301
    %v303 = vrcp.pop %v291
    %v304 = vmul.f32 %v274, %v303
    %v305 = vrcp.pop %v294
    %v306 = vmul.f32 %v276, %v305
    %v307 = vpack.c.bf16 %v298, %v296
    %v308 = vpack.c.bf16 %v302, %v300
    %v309 = vpack.c.bf16 %v306, %v304
    %310 = vrot.lane.b32.xlu0 %v160, 64
    %v311 = vpop.permute.xlu0 %310
    %312 = vrot.lane.b32.xlu0 %v161, 64
    %v313 = vpop.permute.xlu0 %312
    %v316 = vsel %vm240, %v307, 0
    %v319 = vsel %vm240, %v308, 0
    %v322 = vsel %vm240, %v309, 0
    %vm324 = vcmask 1043456
    %v326 = vsel %vm324, %v313, 0
    %328 = vmatprep.subr.bf16.mxu0 0
    %329 = vmatpush1.bf16.msra.mxu0 %v311
    %330 = vmatprep.subr.bf16.mxu0 0
    %331 = vmatpush1.bf16.msra.mxu0 %v326
    %332 = vmatprep.subr.bf16.mxu0 0
    %333 = vmatpush1.bf16.msra.mxu0 0
    %334 = vmatprep.subr.bf16.mxu0 0
    %335 = vmatpush1.bf16.msra.mxu0 0
    %336 = vmatprep.subr.bf16.mxu0 0
    %337 = vmatpush1.bf16.msra.mxu0 0
    %338 = vmatprep.subr.bf16.mxu0 0
    %339 = vmatpush1.bf16.msra.mxu0 0
    %340 = vmatprep.subr.bf16.mxu0 0
    %341 = vmatpush1.bf16.msra.mxu0 0
    %342 = vmatprep.subr.bf16.mxu0 0
    %343 = vmatpush1.bf16.msra.mxu0 0
    %344 = vmatprep.subr.bf16.mxu0 0
    %345 = vmatpush1.bf16.msra.mxu0 0
    %346 = vmatprep.subr.bf16.mxu0 0
    %347 = vmatpush1.bf16.msra.mxu0 0
    %348 = vmatprep.subr.bf16.mxu0 0
    %349 = vmatpush1.bf16.msra.mxu0 0
    %350 = vmatprep.subr.bf16.mxu0 0
    %351 = vmatpush1.bf16.msra.mxu0 0
    %352 = vmatprep.subr.bf16.mxu0 0
    %353 = vmatpush1.bf16.msra.mxu0 0
    %354 = vmatprep.subr.bf16.mxu0 0
    %355 = vmatpush1.bf16.msra.mxu0 0
    %356 = vmatprep.subr.bf16.mxu0 0
    %357 = vmatpush1.bf16.msra.mxu0 0
    %358 = vmatprep.subr.bf16.mxu0 0
    %359 = vmatpush1.bf16.msra.mxu0 0
    %360 = vmatprep.mubr.bf16.mxu0 0
    %361 = vmatmul.mubr.bf16.gmra.mrb[0].mxu0 %v316
    %v362 = vpop.f32.mrb[0].mxu0
    %v363 = vadd.f32 0.0, %v362
    %v364 = vpop.f32.mrb[0].mxu0
    %v365 = vpop.f32.mrb[0].mxu0
    %v366 = vadd.f32 0.0, %v365
    %v367 = vpop.f32.mrb[0].mxu0
    %368 = vmatprep.mubr.bf16.mxu0 0
    %369 = vmatmul.mubr.bf16.gmra.mrb[0].mxu0 %v319
    %v370 = vpop.f32.mrb[0].mxu0
    %v371 = vadd.f32 0.0, %v370
    %v372 = vpop.f32.mrb[0].mxu0
    %v373 = vpop.f32.mrb[0].mxu0
    %v374 = vadd.f32 0.0, %v373
    %v375 = vpop.f32.mrb[0].mxu0
    %376 = vmatprep.mubr.bf16.mxu0 0
    %377 = vmatmul.mubr.bf16.gmra.mrb[0].mxu0 %v322
    %v378 = vpop.f32.mrb[0].mxu0
    %v379 = vadd.f32 0.0, %v378
    %v380 = vpop.f32.mrb[0].mxu0
    %v381 = vpop.f32.mrb[0].mxu0
    %v382 = vadd.f32 0.0, %v381
    %v383 = vpop.f32.mrb[0].mxu0
    %384 = vdwg.mxu0
    %v385 = vmul.f32 %v363, %v36
    %v386 = vmul.f32 %v366, %v36
    %v387 = vmul.f32 %v371, %v36
    %v388 = vmul.f32 %v374, %v41
    %v389 = vmul.f32 %v379, %v41
    %v390 = vmul.f32 %v382, %v41
    %v391 = vadd.f32 %v385, %v388
    %v392 = vadd.f32 %v386, %v389
    %v393 = vadd.f32 %v387, %v390
    %v394 = vpack.c.bf16 %v392, %v391
    %v395 = vpack.c.bf16 %v393, %v393
    %v396 = vlaneseq
    %v397 = vshrl.u32 %v396, 7
    %v398 = vsub.s32 0, %v397
    %v399 = vrot.slane %v71, %v398
    %v404 = vunpack.c.l.b16 %v58
    %v405 = vunpack.c.l.b16 %v59
    %v406 = vunpack.c.l.b16 %v60
    %v407 = vunpack.c.l.b16 %v61
    %v408 = vpack.c.b16 %v405, %v404
    %v409 = vpack.c.b16 %v407, %v406
    %v413 = vsel %vm96, %v394, 0
    %v416 = vsel %vm96, %v395, 0
    %418 = vmatprep.subr.bf16.mxu0 0
    %419 = vmatpush1.bf16.msra.mxu0 %v408
    %420 = vmatprep.subr.bf16.mxu0 0
    %421 = vmatpush1.bf16.msra.mxu0 %v409
    %422 = vmatprep.subr.bf16.mxu0 0
    %423 = vmatpush1.bf16.msra.mxu0 0
    %424 = vmatprep.subr.bf16.mxu0 0
    %425 = vmatpush1.bf16.msra.mxu0 0
    %426 = vmatprep.subr.bf16.mxu0 0
    %427 = vmatpush1.bf16.msra.mxu0 0
    %428 = vmatprep.subr.bf16.mxu0 0
    %429 = vmatpush1.bf16.msra.mxu0 0
    %430 = vmatprep.subr.bf16.mxu0 0
    %431 = vmatpush1.bf16.msra.mxu0 0
    %432 = vmatprep.subr.bf16.mxu0 0
    %433 = vmatpush1.bf16.msra.mxu0 0
    %434 = vmatprep.subr.bf16.mxu0 0
    %435 = vmatpush1.bf16.msra.mxu0 0
    %436 = vmatprep.subr.bf16.mxu0 0
    %437 = vmatpush1.bf16.msra.mxu0 0
    %438 = vmatprep.subr.bf16.mxu0 0
    %439 = vmatpush1.bf16.msra.mxu0 0
    %440 = vmatprep.subr.bf16.mxu0 0
    %441 = vmatpush1.bf16.msra.mxu0 0
    %442 = vmatprep.subr.bf16.mxu0 0
    %443 = vmatpush1.bf16.msra.mxu0 0
    %444 = vmatprep.subr.bf16.mxu0 0
    %445 = vmatpush1.bf16.msra.mxu0 0
    %446 = vmatprep.subr.bf16.mxu0 0
    %447 = vmatpush1.bf16.msra.mxu0 0
    %448 = vmatprep.subr.bf16.mxu0 0
    %449 = vmatpush1.bf16.msra.mxu0 0
    %450 = vmatprep.mubr.bf16.mxu0 0
    %451 = vmatmul.mubr.bf16.gmra.mrb[0].mxu0 %v413
    %v452 = vpop.f32.mrb[0].mxu0
    %v453 = vadd.f32 %v399, %v452
    %v454 = vpop.f32.mrb[0].mxu0
    %v455 = vpop.f32.mrb[0].mxu0
    %v456 = vadd.f32 %v399, %v455
    %v457 = vpop.f32.mrb[0].mxu0
    %458 = vmatprep.mubr.bf16.mxu0 0
    %459 = vmatmul.mubr.bf16.gmra.mrb[0].mxu0 %v416
    %v460 = vpop.f32.mrb[0].mxu0
    %v461 = vadd.f32 %v399, %v460
    %v462 = vpop.f32.mrb[0].mxu0
    %v463 = vpop.f32.mrb[0].mxu0
    %v464 = vpop.f32.mrb[0].mxu0
    %465 = vdwg.mxu0
    %v466 = vadd.f32 %v51, %v453
    %v467 = vadd.f32 %v52, %v456
    %v468 = vadd.f32 %v53, %v461
    %v469 = vsel %vm96, %v466, 0.0
    %470 = vadd.xlane.f32.xlu0 %v469
    %v471 = vpop.xlane.xlu0 %470
    %v472 = vsel %vm96, %v467, 0.0
    %473 = vadd.xlane.f32.xlu0 %v472
    %v474 = vpop.xlane.xlu0 %473
    %v475 = vsel %vm96, %v468, 0.0
    %476 = vadd.xlane.f32.xlu0 %v475
    %v477 = vpop.xlane.xlu0 %476
    %v478 = vrcp.pop 32.0
    %v479 = vmul.f32 %v471, %v478
    %v480 = vmul.f32 %v474, %v478
    %v481 = vmul.f32 %v477, %v478
    %v482 = vmul.f32 %v466, %v466
    %v483 = vmul.f32 %v467, %v467
    %v484 = vmul.f32 %v468, %v468
    %v485 = vsel %vm96, %v482, 0.0
    %486 = vadd.xlane.f32.xlu0 %v485
    %v487 = vpop.xlane.xlu0 %486
    %v488 = vsel %vm96, %v483, 0.0
    %489 = vadd.xlane.f32.xlu0 %v488
    %v490 = vpop.xlane.xlu0 %489
    %v491 = vsel %vm96, %v484, 0.0
    %492 = vadd.xlane.f32.xlu0 %v491
    %v493 = vpop.xlane.xlu0 %492
    %v494 = vmul.f32 %v487, %v478
    %v495 = vmul.f32 %v490, %v478
    %v496 = vmul.f32 %v493, %v478
    %v497 = vmul.f32 %v479, %v479
    %v498 = vmul.f32 %v480, %v480
    %v499 = vmul.f32 %v481, %v481
    %v500 = vsub.f32 %v494, %v497
    %v501 = vsub.f32 %v495, %v498
    %v502 = vsub.f32 %v496, %v499
    %v503 = vsub.f32 %v466, %v479
    %v504 = vsub.f32 %v467, %v480
    %v505 = vsub.f32 %v468, %v481
    %v506 = vadd.f32 %v500, 1e-05
    %v507 = vadd.f32 %v501, 1e-05
    %v508 = vadd.f32 %v502, 1e-05
    %v509 = vrsqrt.pop %v506
    %v510 = vrsqrt.pop %v507
    %v511 = vrsqrt.pop %v508
    %v512 = vmul.f32 %v503, %v509
    %v513 = vmul.f32 %v504, %v510
    %v514 = vmul.f32 %v505, %v511
    %v515 = vlaneseq
    %v516 = vshrl.u32 %v515, 7
    %v517 = vsub.s32 0, %v516
    %v518 = vrot.slane %v74, %v517
    %v519 = vmul.f32 %v512, %v518
    %v520 = vmul.f32 %v513, %v518
    %v521 = vmul.f32 %v514, %v518
    %v522 = vlaneseq
    %v523 = vshrl.u32 %v522, 7
    %v524 = vsub.s32 0, %v523
    %v525 = vrot.slane %v75, %v524
    %v526 = vadd.f32 %v519, %v525
    %v527 = vadd.f32 %v520, %v525
    %v528 = vadd.f32 %v521, %v525
    %v529 = vpack.c.bf16 %v527, %v526
    %v530 = vpack.c.bf16 %v528, %v528
    %v531 = vlaneseq
    %v532 = vshrl.u32 %v531, 7
    %v533 = vsub.s32 0, %v532
    %v534 = vrot.slane %v72, %v533
    %v539 = vunpack.c.l.b16 %v62
    %v540 = vunpack.c.l.b16 %v63
    %v541 = vunpack.c.l.b16 %v64
    %v542 = vunpack.c.l.b16 %v65
    %v543 = vpack.c.b16 %v540, %v539
    %v544 = vpack.c.b16 %v542, %v541
    %v548 = vsel %vm96, %v529, 0
    %v551 = vsel %vm96, %v530, 0
    %553 = vmatprep.subr.bf16.mxu0 0
    %554 = vmatpush1.bf16.msra.mxu0 %v543
    %555 = vmatprep.subr.bf16.mxu0 0
    %556 = vmatpush1.bf16.msra.mxu0 %v544
    %557 = vmatprep.subr.bf16.mxu0 0
    %558 = vmatpush1.bf16.msra.mxu0 0
    %559 = vmatprep.subr.bf16.mxu0 0
    %560 = vmatpush1.bf16.msra.mxu0 0
    %561 = vmatprep.subr.bf16.mxu0 0
    %562 = vmatpush1.bf16.msra.mxu0 0
    %563 = vmatprep.subr.bf16.mxu0 0
    %564 = vmatpush1.bf16.msra.mxu0 0
    %565 = vmatprep.subr.bf16.mxu0 0
    %566 = vmatpush1.bf16.msra.mxu0 0
    %567 = vmatprep.subr.bf16.mxu0 0
    %568 = vmatpush1.bf16.msra.mxu0 0
    %569 = vmatprep.subr.bf16.mxu0 0
    %570 = vmatpush1.bf16.msra.mxu0 0
    %571 = vmatprep.subr.bf16.mxu0 0
    %572 = vmatpush1.bf16.msra.mxu0 0
    %573 = vmatprep.subr.bf16.mxu0 0
    %574 = vmatpush1.bf16.msra.mxu0 0
    %575 = vmatprep.subr.bf16.mxu0 0
    %576 = vmatpush1.bf16.msra.mxu0 0
    %577 = vmatprep.subr.bf16.mxu0 0
    %578 = vmatpush1.bf16.msra.mxu0 0
    %579 = vmatprep.subr.bf16.mxu0 0
    %580 = vmatpush1.bf16.msra.mxu0 0
    %581 = vmatprep.subr.bf16.mxu0 0
    %582 = vmatpush1.bf16.msra.mxu0 0
    %583 = vmatprep.subr.bf16.mxu0 0
    %584 = vmatpush1.bf16.msra.mxu0 0
    %585 = vmatprep.mubr.bf16.mxu0 0
    %586 = vmatmul.mubr.bf16.gmra.mrb[0].mxu0 %v548
    %v587 = vpop.f32.mrb[0].mxu0
    %v588 = vadd.f32 %v534, %v587
    %v589 = vpop.f32.mrb[0].mxu0
    %v590 = vpop.f32.mrb[0].mxu0
    %v591 = vadd.f32 %v534, %v590
    %v592 = vpop.f32.mrb[0].mxu0
    %593 = vmatprep.mubr.bf16.mxu0 0
    %594 = vmatmul.mubr.bf16.gmra.mrb[0].mxu0 %v551
    %v595 = vpop.f32.mrb[0].mxu0
    %v596 = vadd.f32 %v534, %v595
    %v597 = vpop.f32.mrb[0].mxu0
    %v598 = vpop.f32.mrb[0].mxu0
    %v599 = vpop.f32.mrb[0].mxu0
    %600 = vdwg.mxu0
    %v601 = vmul.f32 %v588, 0.5
    %v602 = vmul.f32 %v591, 0.5
    %v603 = vmul.f32 %v596, 0.5
    %v604 = vmul.f32 %v588, 0.70710677
    %v605 = vmul.f32 %v591, 0.70710677
    %v606 = vmul.f32 %v596, 0.70710677
    %vm607 = vcmp.ge.f32.partialorder %v604, 0.0
    %vm608 = vcmp.ge.f32.partialorder %v605, 0.0
    %vm609 = vcmp.ge.f32.partialorder %v606, 0.0
    %v610 = vsel %vm607, 1.0, -1.0
    %v611 = vsel %vm608, 1.0, -1.0
    %v612 = vsel %vm609, 1.0, -1.0
    %v613 = vand.u32 2147483647, %v604
    %v614 = vand.u32 2147483647, %v605
    %v615 = vand.u32 2147483647, %v606
    %v616 = vmul.f32 %v613, 0.3275911
    %v617 = vmul.f32 %v614, 0.3275911
    %v618 = vmul.f32 %v615, 0.3275911
    %v619 = vadd.f32 %v616, 1.0
    %v620 = vadd.f32 %v617, 1.0
    %v621 = vadd.f32 %v618, 1.0
    %v622 = vrcp.pop %v619
    %v623 = vmul.f32 1.0, %v622
    %v624 = vrcp.pop %v620
    %v625 = vmul.f32 1.0, %v624
    %v626 = vrcp.pop %v621
    %v627 = vmul.f32 1.0, %v626
    %v628 = vmul.f32 %v623, 1.0614054
    %v629 = vmul.f32 %v625, 1.0614054
    %v630 = vmul.f32 %v627, 1.0614054
    %v631 = vadd.f32 %v628, -1.4531521
    %v632 = vadd.f32 %v629, -1.4531521
    %v633 = vadd.f32 %v630, -1.4531521
    %v634 = vmul.f32 %v631, %v623
    %v635 = vmul.f32 %v632, %v625
    %v636 = vmul.f32 %v633, %v627
    %v637 = vadd.f32 %v634, 1.4214138
    %v638 = vadd.f32 %v635, 1.4214138
    %v639 = vadd.f32 %v636, 1.4214138
    %v640 = vmul.f32 %v637, %v623
    %v641 = vmul.f32 %v638, %v625
    %v642 = vmul.f32 %v639, %v627
    %v643 = vadd.f32 %v640, -0.28449672
    %v644 = vadd.f32 %v641, -0.28449672
    %v645 = vadd.f32 %v642, -0.28449672
    %v646 = vmul.f32 %v643, %v623
    %v647 = vmul.f32 %v644, %v625
    %v648 = vmul.f32 %v645, %v627
    %v649 = vadd.f32 %v646, 0.2548296
    %v650 = vadd.f32 %v647, 0.2548296
    %v651 = vadd.f32 %v648, 0.2548296
    %v652 = vmul.f32 %v649, %v623
    %v653 = vmul.f32 %v650, %v625
    %v654 = vmul.f32 %v651, %v627
    %v655 = vsub.f32 0.0, %v613
    %v656 = vsub.f32 0.0, %v614
    %v657 = vsub.f32 0.0, %v615
    %v658 = vmul.f32 %v655, %v613
    %v659 = vmul.f32 %v656, %v614
    %v660 = vmul.f32 %v657, %v615
    %v661 = vmul.f32 %v658, 1.442695
    %v662 = vpow.pop %v661
    %v663 = vmul.f32 %v659, 1.442695
    %v664 = vpow.pop %v663
    %v665 = vmul.f32 %v660, 1.442695
    %v666 = vpow.pop %v665
    %v667 = vmul.f32 %v652, %v662
    %v668 = vmul.f32 %v653, %v664
    %v669 = vmul.f32 %v654, %v666
    %v670 = vsub.f32 1.0, %v667
    %v671 = vsub.f32 1.0, %v668
    %v672 = vsub.f32 1.0, %v669
    %v673 = vmul.f32 %v610, %v670
    %v674 = vmul.f32 %v611, %v671
    %v675 = vmul.f32 %v612, %v672
    %v676 = vadd.f32 %v673, 1.0
    %v677 = vadd.f32 %v674, 1.0
    %v678 = vadd.f32 %v675, 1.0
    %v679 = vmul.f32 %v601, %v676
    %v680 = vmul.f32 %v602, %v677
    %v681 = vmul.f32 %v603, %v678
    %v682 = vpack.c.bf16 %v680, %v679
    %v683 = vpack.c.bf16 %v681, %v681
    %v684 = vlaneseq
    %v685 = vshrl.u32 %v684, 7
    %v686 = vsub.s32 0, %v685
    %v687 = vrot.slane %v73, %v686
    %v692 = vunpack.c.l.b16 %v66
    %v693 = vunpack.c.l.b16 %v67
    %v694 = vunpack.c.l.b16 %v68
    %v695 = vunpack.c.l.b16 %v69
    %v696 = vpack.c.b16 %v693, %v692
    %v697 = vpack.c.b16 %v695, %v694
    %v701 = vsel %vm96, %v682, 0
    %v704 = vsel %vm96, %v683, 0
    %706 = vmatprep.subr.bf16.mxu0 0
    %707 = vmatpush1.bf16.msra.mxu0 %v696
    %708 = vmatprep.subr.bf16.mxu0 0
    %709 = vmatpush1.bf16.msra.mxu0 %v697
    %710 = vmatprep.subr.bf16.mxu0 0
    %711 = vmatpush1.bf16.msra.mxu0 0
    %712 = vmatprep.subr.bf16.mxu0 0
    %713 = vmatpush1.bf16.msra.mxu0 0
    %714 = vmatprep.subr.bf16.mxu0 0
    %715 = vmatpush1.bf16.msra.mxu0 0
    %716 = vmatprep.subr.bf16.mxu0 0
    %717 = vmatpush1.bf16.msra.mxu0 0
    %718 = vmatprep.subr.bf16.mxu0 0
    %719 = vmatpush1.bf16.msra.mxu0 0
    %720 = vmatprep.subr.bf16.mxu0 0
    %721 = vmatpush1.bf16.msra.mxu0 0
    %722 = vmatprep.subr.bf16.mxu0 0
    %723 = vmatpush1.bf16.msra.mxu0 0
    %724 = vmatprep.subr.bf16.mxu0 0
    %725 = vmatpush1.bf16.msra.mxu0 0
    %726 = vmatprep.subr.bf16.mxu0 0
    %727 = vmatpush1.bf16.msra.mxu0 0
    %728 = vmatprep.subr.bf16.mxu0 0
    %729 = vmatpush1.bf16.msra.mxu0 0
    %730 = vmatprep.subr.bf16.mxu0 0
    %731 = vmatpush1.bf16.msra.mxu0 0
    %732 = vmatprep.subr.bf16.mxu0 0
    %733 = vmatpush1.bf16.msra.mxu0 0
    %734 = vmatprep.subr.bf16.mxu0 0
    %735 = vmatpush1.bf16.msra.mxu0 0
    %736 = vmatprep.subr.bf16.mxu0 0
    %737 = vmatpush1.bf16.msra.mxu0 0
    %738 = vmatprep.mubr.bf16.mxu0 0
    %739 = vmatmul.mubr.bf16.gmra.mrb[0].mxu0 %v701
    %v740 = vpop.f32.mrb[0].mxu0
    %v741 = vadd.f32 %v687, %v740
    %v742 = vpop.f32.mrb[0].mxu0
    %v743 = vpop.f32.mrb[0].mxu0
    %v744 = vadd.f32 %v687, %v743
    %v745 = vpop.f32.mrb[0].mxu0
    %746 = vmatprep.mubr.bf16.mxu0 0
    %747 = vmatmul.mubr.bf16.gmra.mrb[0].mxu0 %v704
    %v748 = vpop.f32.mrb[0].mxu0
    %v749 = vadd.f32 %v687, %v748
    %v750 = vpop.f32.mrb[0].mxu0
    %v751 = vpop.f32.mrb[0].mxu0
    %v752 = vpop.f32.mrb[0].mxu0
    %753 = vdwg.mxu0
    %v754 = vadd.f32 %v526, %v741
    %v755 = vadd.f32 %v527, %v744
    %v756 = vadd.f32 %v528, %v749
    %v757 = vsel %vm96, %v754, 0.0
    %758 = vadd.xlane.f32.xlu0 %v757
    %v759 = vpop.xlane.xlu0 %758
    %v760 = vsel %vm96, %v755, 0.0
    %761 = vadd.xlane.f32.xlu0 %v760
    %v762 = vpop.xlane.xlu0 %761
    %v763 = vsel %vm96, %v756, 0.0
    %764 = vadd.xlane.f32.xlu0 %v763
    %v765 = vpop.xlane.xlu0 %764
    %v766 = vmul.f32 %v759, %v478
    %v767 = vmul.f32 %v762, %v478
    %v768 = vmul.f32 %v765, %v478
    %v769 = vmul.f32 %v754, %v754
    %v770 = vmul.f32 %v755, %v755
    %v771 = vmul.f32 %v756, %v756
    %v772 = vsel %vm96, %v769, 0.0
    %773 = vadd.xlane.f32.xlu0 %v772
    %v774 = vpop.xlane.xlu0 %773
    %v775 = vsel %vm96, %v770, 0.0
    %776 = vadd.xlane.f32.xlu0 %v775
    %v777 = vpop.xlane.xlu0 %776
    %v778 = vsel %vm96, %v771, 0.0
    %779 = vadd.xlane.f32.xlu0 %v778
    %v780 = vpop.xlane.xlu0 %779
    %v781 = vmul.f32 %v774, %v478
    %v782 = vmul.f32 %v777, %v478
    %v783 = vmul.f32 %v780, %v478
    %v784 = vmul.f32 %v766, %v766
    %v785 = vmul.f32 %v767, %v767
    %v786 = vmul.f32 %v768, %v768
    %v787 = vsub.f32 %v781, %v784
    %v788 = vsub.f32 %v782, %v785
    %v789 = vsub.f32 %v783, %v786
    %v790 = vsub.f32 %v754, %v766
    %v791 = vsub.f32 %v755, %v767
    %v792 = vsub.f32 %v756, %v768
    %v793 = vadd.f32 %v787, 1e-05
    %v794 = vadd.f32 %v788, 1e-05
    %v795 = vadd.f32 %v789, 1e-05
    %v796 = vrsqrt.pop %v793
    %v797 = vrsqrt.pop %v794
    %v798 = vrsqrt.pop %v795
    %v799 = vmul.f32 %v790, %v796
    %v800 = vmul.f32 %v791, %v797
    %v801 = vmul.f32 %v792, %v798
    %v802 = vlaneseq
    %v803 = vshrl.u32 %v802, 7
    %v804 = vsub.s32 0, %v803
    %v805 = vrot.slane %v76, %v804
    %v806 = vmul.f32 %v799, %v805
    %v807 = vmul.f32 %v800, %v805
    %v808 = vmul.f32 %v801, %v805
    %v809 = vlaneseq
    %v810 = vshrl.u32 %v809, 7
    %v811 = vsub.s32 0, %v810
    %v812 = vrot.slane %v77, %v811
    %v813 = vadd.f32 %v806, %v812
    %v814 = vadd.f32 %v807, %v812
    %v815 = vadd.f32 %v808, %v812
    %v816 = vld [vmem:[%s1 + $0x40] sm:$0xf]
    %v817 = vld [vmem:[%s1 + $0x44] sm:$0xf]
    %v818 = vld [vmem:[%s1 + $0x48] sm:$0xf]
    %v819 = vld [vmem:[%s1 + $0x4c] sm:$0xf]
    %v820 = vld [vmem:[%s1 + $0x50] sm:$0xf]
    %v821 = vld [vmem:[%s1 + $0x54] sm:$0xf]
    %v822 = vld [vmem:[%s1 + $0x58] sm:$0xf]
    %v823 = vld [vmem:[%s1 + $0x5c] sm:$0xf]
    %v824 = vld [vmem:[%s1 + $0x60] sm:$0xf]
    %v825 = vld [vmem:[%s1 + $0x64] sm:$0xf]
    %v826 = vld [vmem:[%s1 + $0x68] sm:$0xf]
    %v827 = vld [vmem:[%s1 + $0x6c] sm:$0xf]
    %v828 = vld [vmem:[%s1 + $0x70] sm:$0xf]
    %v829 = vld [vmem:[%s1 + $0x74] sm:$0xf]
    %v830 = vld [vmem:[%s1 + $0x78] sm:$0xf]
    %v831 = vld [vmem:[%s1 + $0x7c] sm:$0xf]
    %v832 = vld [vmem:[%s2 + $0x8] sm:$0x1]
    %v833 = vld [vmem:[%s2 + $0x9] sm:$0x1]
    %v834 = vld [vmem:[%s2 + $0xa] sm:$0x1]
    %v835 = vld [vmem:[%s2 + $0xb] sm:$0x1]
    %v836 = vld [vmem:[%s2 + $0xc] sm:$0x1]
    %v837 = vld [vmem:[%s2 + $0xd] sm:$0x1]
    %v838 = vld [vmem:[%s2 + $0xe] sm:$0x1]
    %v839 = vld [vmem:[%s2 + $0xf] sm:$0x1]
    %v840 = vpack.c.bf16 %v814, %v813
    %v841 = vpack.c.bf16 %v815, %v815
    %v842 = vlaneseq
    %v843 = vshrl.u32 %v842, 7
    %v844 = vsub.s32 0, %v843
    %v845 = vrot.slane %v832, %v844
    %v850 = vunpack.c.l.b16 %v816
    %v851 = vunpack.c.l.b16 %v817
    %v852 = vunpack.c.l.b16 %v818
    %v853 = vunpack.c.l.b16 %v819
    %v854 = vpack.c.b16 %v851, %v850
    %v855 = vpack.c.b16 %v853, %v852
    %v859 = vsel %vm96, %v840, 0
    %v862 = vsel %vm96, %v841, 0
    %864 = vmatprep.subr.bf16.mxu0 0
    %865 = vmatpush1.bf16.msra.mxu0 %v854
    %866 = vmatprep.subr.bf16.mxu0 0
    %867 = vmatpush1.bf16.msra.mxu0 %v855
    %868 = vmatprep.subr.bf16.mxu0 0
    %869 = vmatpush1.bf16.msra.mxu0 0
    %870 = vmatprep.subr.bf16.mxu0 0
    %871 = vmatpush1.bf16.msra.mxu0 0
    %872 = vmatprep.subr.bf16.mxu0 0
    %873 = vmatpush1.bf16.msra.mxu0 0
    %874 = vmatprep.subr.bf16.mxu0 0
    %875 = vmatpush1.bf16.msra.mxu0 0
    %876 = vmatprep.subr.bf16.mxu0 0
    %877 = vmatpush1.bf16.msra.mxu0 0
    %878 = vmatprep.subr.bf16.mxu0 0
    %879 = vmatpush1.bf16.msra.mxu0 0
    %880 = vmatprep.subr.bf16.mxu0 0
    %881 = vmatpush1.bf16.msra.mxu0 0
    %882 = vmatprep.subr.bf16.mxu0 0
    %883 = vmatpush1.bf16.msra.mxu0 0
    %884 = vmatprep.subr.bf16.mxu0 0
    %885 = vmatpush1.bf16.msra.mxu0 0
    %886 = vmatprep.subr.bf16.mxu0 0
    %887 = vmatpush1.bf16.msra.mxu0 0
    %888 = vmatprep.subr.bf16.mxu0 0
    %889 = vmatpush1.bf16.msra.mxu0 0
    %890 = vmatprep.subr.bf16.mxu0 0
    %891 = vmatpush1.bf16.msra.mxu0 0
    %892 = vmatprep.subr.bf16.mxu0 0
    %893 = vmatpush1.bf16.msra.mxu0 0
    %894 = vmatprep.subr.bf16.mxu0 0
    %895 = vmatpush1.bf16.msra.mxu0 0
    %896 = vmatprep.mubr.bf16.mxu0 0
    %897 = vmatmul.mubr.bf16.gmra.mrb[0].mxu0 %v859
    %v898 = vpop.f32.mrb[0].mxu0
    %v899 = vadd.f32 %v845, %v898
    %v900 = vpop.f32.mrb[0].mxu0
    %v901 = vpop.f32.mrb[0].mxu0
    %v902 = vadd.f32 %v845, %v901
    %v903 = vpop.f32.mrb[0].mxu0
    %904 = vmatprep.mubr.bf16.mxu0 0
    %905 = vmatmul.mubr.bf16.gmra.mrb[0].mxu0 %v862
    %v906 = vpop.f32.mrb[0].mxu0
    %v907 = vadd.f32 %v845, %v906
    %v908 = vpop.f32.mrb[0].mxu0
    %v909 = vpop.f32.mrb[0].mxu0
    %v910 = vpop.f32.mrb[0].mxu0
    %911 = vdwg.mxu0
    %v912 = vmul.f32 %v899, %v36
    %v913 = vmul.f32 %v902, %v36
    %v914 = vmul.f32 %v907, %v36
    %v915 = vmul.f32 %v899, %v41
    %v916 = vmul.f32 %v902, %v41
    %v917 = vmul.f32 %v907, %v41
    %v918 = vpack.c.bf16 %v913, %v912
    %v919 = vpack.c.bf16 %v915, %v914
    %v920 = vpack.c.bf16 %v917, %v916
    %v921 = vpack.c.bf16 %v902, %v899
    %v922 = vpack.c.bf16 %v907, %v907
    %925 = vrot.lane.b32.xlu0 %v921, 96
    %v926 = vpop.permute.xlu0 %925
    %927 = vrot.lane.b32.xlu0 %v922, 96
    %v928 = vpop.permute.xlu0 %927
    %v930 = vsel %vm96, %v918, 0
    %v933 = vsel %vm96, %v919, 0
    %v936 = vsel %vm96, %v920, 0
    %v939 = vsel %vm96, %v926, 0
    %v942 = vsel %vm96, %v928, 0
    %944 = vmatprep.subr.bf16.mxu0 0
    %945 = vmatpush1.bf16.xpose.msra.mxu0 %v939
    %946 = vmatprep.subr.bf16.mxu0 0
    %947 = vmatpush1.bf16.xpose.msra.mxu0 %v942
    %948 = vmatprep.subr.bf16.mxu0 0
    %949 = vmatpush1.bf16.xpose.msra.mxu0 0
    %950 = vmatprep.subr.bf16.mxu0 0
    %951 = vmatpush1.bf16.xpose.msra.mxu0 0
    %952 = vmatprep.subr.bf16.mxu0 0
    %953 = vmatpush1.bf16.xpose.msra.mxu0 0
    %954 = vmatprep.subr.bf16.mxu0 0
    %955 = vmatpush1.bf16.xpose.msra.mxu0 0
    %956 = vmatprep.subr.bf16.mxu0 0
    %957 = vmatpush1.bf16.xpose.msra.mxu0 0
    %958 = vmatprep.subr.bf16.mxu0 0
    %959 = vmatpush1.bf16.xpose.msra.mxu0 0
    %960 = vmatprep.subr.bf16.mxu0 0
    %961 = vmatpush1.bf16.xpose.msra.mxu0 0
    %962 = vmatprep.subr.bf16.mxu0 0
    %963 = vmatpush1.bf16.xpose.msra.mxu0 0
    %964 = vmatprep.subr.bf16.mxu0 0
    %965 = vmatpush1.bf16.xpose.msra.mxu0 0
    %966 = vmatprep.subr.bf16.mxu0 0
    %967 = vmatpush1.bf16.xpose.msra.mxu0 0
    %968 = vmatprep.subr.bf16.mxu0 0
    %969 = vmatpush1.bf16.xpose.msra.mxu0 0
    %970 = vmatprep.subr.bf16.mxu0 0
    %971 = vmatpush1.bf16.xpose.msra.mxu0 0
    %972 = vmatprep.subr.bf16.mxu0 0
    %973 = vmatpush1.bf16.xpose.msra.mxu0 0
    %974 = vmatprep.subr.bf16.mxu0 0
    %975 = vmatpush1.bf16.xpose.msra.mxu0 0
    %976 = vmatprep.mubr.bf16.mxu0 0
    %977 = vmatmul.mubr.bf16.gmra.mrb[0].mxu0 %v930
    %v978 = vpop.f32.mrb[0].mxu0
    %v979 = vadd.f32 %v29, %v978
    %v980 = vpop.f32.mrb[0].mxu0
    %v981 = vpop.f32.mrb[0].mxu0
    %v982 = vadd.f32 %v30, %v981
    %v983 = vpop.f32.mrb[0].mxu0
    %984 = vmatprep.mubr.bf16.mxu0 0
    %985 = vmatmul.mubr.bf16.gmra.mrb[0].mxu0 %v933
    %v986 = vpop.f32.mrb[0].mxu0
    %v987 = vadd.f32 %v31, %v986
    %v988 = vpop.f32.mrb[0].mxu0
    %v989 = vpop.f32.mrb[0].mxu0
    %v990 = vadd.f32 %v29, %v989
    %v991 = vpop.f32.mrb[0].mxu0
    %992 = vmatprep.mubr.bf16.mxu0 0
    %993 = vmatmul.mubr.bf16.gmra.mrb[0].mxu0 %v936
    %v994 = vpop.f32.mrb[0].mxu0
    %v995 = vadd.f32 %v30, %v994
    %v996 = vpop.f32.mrb[0].mxu0
    %v997 = vpop.f32.mrb[0].mxu0
    %v998 = vadd.f32 %v31, %v997
    %v999 = vpop.f32.mrb[0].mxu0
    %1000 = vdwg.mxu0
    %v1001 = vsel %vm240, %v979, -inf
    %1002 = vmax.xlane.f32.xlu0 %v1001
    %v1003 = vpop.xlane.xlu0 %1002
    %v1004 = vsel %vm240, %v982, -inf
    %1005 = vmax.xlane.f32.xlu0 %v1004
    %v1006 = vpop.xlane.xlu0 %1005
    %v1007 = vsel %vm240, %v987, -inf
    %1008 = vmax.xlane.f32.xlu0 %v1007
    %v1009 = vpop.xlane.xlu0 %1008
    %v1010 = vsel %vm240, %v990, -inf
    %1011 = vmax.xlane.f32.xlu0 %v1010
    %v1012 = vpop.xlane.xlu0 %1011
    %v1013 = vsel %vm240, %v995, -inf
    %1014 = vmax.xlane.f32.xlu0 %v1013
    %v1015 = vpop.xlane.xlu0 %1014
    %v1016 = vsel %vm240, %v998, -inf
    %1017 = vmax.xlane.f32.xlu0 %v1016
    %v1018 = vpop.xlane.xlu0 %1017
    %v1019 = vsub.f32 %v979, %v1003
    %v1020 = vsub.f32 %v982, %v1006
    %v1021 = vsub.f32 %v987, %v1009
    %v1022 = vsub.f32 %v990, %v1012
    %v1023 = vsub.f32 %v995, %v1015
    %v1024 = vsub.f32 %v998, %v1018
    %v1025 = vmul.f32 %v1019, 1.442695
    %v1026 = vpow.pop %v1025
    %v1027 = vmul.f32 %v1020, 1.442695
    %v1028 = vpow.pop %v1027
    %v1029 = vmul.f32 %v1021, 1.442695
    %v1030 = vpow.pop %v1029
    %v1031 = vmul.f32 %v1022, 1.442695
    %v1032 = vpow.pop %v1031
    %v1033 = vmul.f32 %v1023, 1.442695
    %v1034 = vpow.pop %v1033
    %v1035 = vmul.f32 %v1024, 1.442695
    %v1036 = vpow.pop %v1035
    %v1037 = vsel %vm240, %v1026, 0.0
    %1038 = vadd.xlane.f32.xlu0 %v1037
    %v1039 = vpop.xlane.xlu0 %1038
    %v1040 = vsel %vm240, %v1028, 0.0
    %1041 = vadd.xlane.f32.xlu0 %v1040
    %v1042 = vpop.xlane.xlu0 %1041
    %v1043 = vsel %vm240, %v1030, 0.0
    %1044 = vadd.xlane.f32.xlu0 %v1043
    %v1045 = vpop.xlane.xlu0 %1044
    %v1046 = vsel %vm240, %v1032, 0.0
    %1047 = vadd.xlane.f32.xlu0 %v1046
    %v1048 = vpop.xlane.xlu0 %1047
    %v1049 = vsel %vm240, %v1034, 0.0
    %1050 = vadd.xlane.f32.xlu0 %v1049
    %v1051 = vpop.xlane.xlu0 %1050
    %v1052 = vsel %vm240, %v1036, 0.0
    %1053 = vadd.xlane.f32.xlu0 %v1052
    %v1054 = vpop.xlane.xlu0 %1053
    %v1055 = vrcp.pop %v1039
    %v1056 = vmul.f32 %v1026, %v1055
    %v1057 = vrcp.pop %v1042
    %v1058 = vmul.f32 %v1028, %v1057
    %v1059 = vrcp.pop %v1045
    %v1060 = vmul.f32 %v1030, %v1059
    %v1061 = vrcp.pop %v1048
    %v1062 = vmul.f32 %v1032, %v1061
    %v1063 = vrcp.pop %v1051
    %v1064 = vmul.f32 %v1034, %v1063
    %v1065 = vrcp.pop %v1054
    %v1066 = vmul.f32 %v1036, %v1065
    %v1067 = vpack.c.bf16 %v1058, %v1056
    %v1068 = vpack.c.bf16 %v1062, %v1060
    %v1069 = vpack.c.bf16 %v1066, %v1064
    %1070 = vrot.lane.b32.xlu0 %v921, 64
    %v1071 = vpop.permute.xlu0 %1070
    %1072 = vrot.lane.b32.xlu0 %v922, 64
    %v1073 = vpop.permute.xlu0 %1072
    %v1076 = vsel %vm240, %v1067, 0
    %v1079 = vsel %vm240, %v1068, 0
    %v1082 = vsel %vm240, %v1069, 0
    %v1085 = vsel %vm324, %v1073, 0
    %1087 = vmatprep.subr.bf16.mxu0 0
    %1088 = vmatpush1.bf16.msra.mxu0 %v1071
    %1089 = vmatprep.subr.bf16.mxu0 0
    %1090 = vmatpush1.bf16.msra.mxu0 %v1085
    %1091 = vmatprep.subr.bf16.mxu0 0
    %1092 = vmatpush1.bf16.msra.mxu0 0
    %1093 = vmatprep.subr.bf16.mxu0 0
    %1094 = vmatpush1.bf16.msra.mxu0 0
    %1095 = vmatprep.subr.bf16.mxu0 0
    %1096 = vmatpush1.bf16.msra.mxu0 0
    %1097 = vmatprep.subr.bf16.mxu0 0
    %1098 = vmatpush1.bf16.msra.mxu0 0
    %1099 = vmatprep.subr.bf16.mxu0 0
    %1100 = vmatpush1.bf16.msra.mxu0 0
    %1101 = vmatprep.subr.bf16.mxu0 0
    %1102 = vmatpush1.bf16.msra.mxu0 0
    %1103 = vmatprep.subr.bf16.mxu0 0
    %1104 = vmatpush1.bf16.msra.mxu0 0
    %1105 = vmatprep.subr.bf16.mxu0 0
    %1106 = vmatpush1.bf16.msra.mxu0 0
    %1107 = vmatprep.subr.bf16.mxu0 0
    %1108 = vmatpush1.bf16.msra.mxu0 0
    %1109 = vmatprep.subr.bf16.mxu0 0
    %1110 = vmatpush1.bf16.msra.mxu0 0
    %1111 = vmatprep.subr.bf16.mxu0 0
    %1112 = vmatpush1.bf16.msra.mxu0 0
    %1113 = vmatprep.subr.bf16.mxu0 0
    %1114 = vmatpush1.bf16.msra.mxu0 0
    %1115 = vmatprep.subr.bf16.mxu0 0
    %1116 = vmatpush1.bf16.msra.mxu0 0
    %1117 = vmatprep.subr.bf16.mxu0 0
    %1118 = vmatpush1.bf16.msra.mxu0 0
    %1119 = vmatprep.mubr.bf16.mxu0 0
    %1120 = vmatmul.mubr.bf16.gmra.mrb[0].mxu0 %v1076
    %v1121 = vpop.f32.mrb[0].mxu0
    %v1122 = vadd.f32 0.0, %v1121
    %v1123 = vpop.f32.mrb[0].mxu0
    %v1124 = vpop.f32.mrb[0].mxu0
    %v1125 = vadd.f32 0.0, %v1124
    %v1126 = vpop.f32.mrb[0].mxu0
    %1127 = vmatprep.mubr.bf16.mxu0 0
    %1128 = vmatmul.mubr.bf16.gmra.mrb[0].mxu0 %v1079
    %v1129 = vpop.f32.mrb[0].mxu0
    %v1130 = vadd.f32 0.0, %v1129
    %v1131 = vpop.f32.mrb[0].mxu0
    %v1132 = vpop.f32.mrb[0].mxu0
    %v1133 = vadd.f32 0.0, %v1132
    %v1134 = vpop.f32.mrb[0].mxu0
    %1135 = vmatprep.mubr.bf16.mxu0 0
    %1136 = vmatmul.mubr.bf16.gmra.mrb[0].mxu0 %v1082
    %v1137 = vpop.f32.mrb[0].mxu0
    %v1138 = vadd.f32 0.0, %v1137
    %v1139 = vpop.f32.mrb[0].mxu0
    %v1140 = vpop.f32.mrb[0].mxu0
    %v1141 = vadd.f32 0.0, %v1140
    %v1142 = vpop.f32.mrb[0].mxu0
    %1143 = vdwg.mxu0
    %v1144 = vmul.f32 %v1122, %v36
    %v1145 = vmul.f32 %v1125, %v36
    %v1146 = vmul.f32 %v1130, %v36
    %v1147 = vmul.f32 %v1133, %v41
    %v1148 = vmul.f32 %v1138, %v41
    %v1149 = vmul.f32 %v1141, %v41
    %v1150 = vadd.f32 %v1144, %v1147
    %v1151 = vadd.f32 %v1145, %v1148
    %v1152 = vadd.f32 %v1146, %v1149
    %v1153 = vpack.c.bf16 %v1151, %v1150
    %v1154 = vpack.c.bf16 %v1152, %v1152
    %v1155 = vlaneseq
    %v1156 = vshrl.u32 %v1155, 7
    %v1157 = vsub.s32 0, %v1156
    %v1158 = vrot.slane %v833, %v1157
    %v1163 = vunpack.c.l.b16 %v820
    %v1164 = vunpack.c.l.b16 %v821
    %v1165 = vunpack.c.l.b16 %v822
    %v1166 = vunpack.c.l.b16 %v823
    %v1167 = vpack.c.b16 %v1164, %v1163
    %v1168 = vpack.c.b16 %v1166, %v1165
    %v1172 = vsel %vm96, %v1153, 0
    %v1175 = vsel %vm96, %v1154, 0
    %1177 = vmatprep.subr.bf16.mxu0 0
    %1178 = vmatpush1.bf16.msra.mxu0 %v1167
    %1179 = vmatprep.subr.bf16.mxu0 0
    %1180 = vmatpush1.bf16.msra.mxu0 %v1168
    %1181 = vmatprep.subr.bf16.mxu0 0
    %1182 = vmatpush1.bf16.msra.mxu0 0
    %1183 = vmatprep.subr.bf16.mxu0 0
    %1184 = vmatpush1.bf16.msra.mxu0 0
    %1185 = vmatprep.subr.bf16.mxu0 0
    %1186 = vmatpush1.bf16.msra.mxu0 0
    %1187 = vmatprep.subr.bf16.mxu0 0
    %1188 = vmatpush1.bf16.msra.mxu0 0
    %1189 = vmatprep.subr.bf16.mxu0 0
    %1190 = vmatpush1.bf16.msra.mxu0 0
    %1191 = vmatprep.subr.bf16.mxu0 0
    %1192 = vmatpush1.bf16.msra.mxu0 0
    %1193 = vmatprep.subr.bf16.mxu0 0
    %1194 = vmatpush1.bf16.msra.mxu0 0
    %1195 = vmatprep.subr.bf16.mxu0 0
    %1196 = vmatpush1.bf16.msra.mxu0 0
    %1197 = vmatprep.subr.bf16.mxu0 0
    %1198 = vmatpush1.bf16.msra.mxu0 0
    %1199 = vmatprep.subr.bf16.mxu0 0
    %1200 = vmatpush1.bf16.msra.mxu0 0
    %1201 = vmatprep.subr.bf16.mxu0 0
    %1202 = vmatpush1.bf16.msra.mxu0 0
    %1203 = vmatprep.subr.bf16.mxu0 0
    %1204 = vmatpush1.bf16.msra.mxu0 0
    %1205 = vmatprep.subr.bf16.mxu0 0
    %1206 = vmatpush1.bf16.msra.mxu0 0
    %1207 = vmatprep.subr.bf16.mxu0 0
    %1208 = vmatpush1.bf16.msra.mxu0 0
    %1209 = vmatprep.mubr.bf16.mxu0 0
    %1210 = vmatmul.mubr.bf16.gmra.mrb[0].mxu0 %v1172
    %v1211 = vpop.f32.mrb[0].mxu0
    %v1212 = vadd.f32 %v1158, %v1211
    %v1213 = vpop.f32.mrb[0].mxu0
    %v1214 = vpop.f32.mrb[0].mxu0
    %v1215 = vadd.f32 %v1158, %v1214
    %v1216 = vpop.f32.mrb[0].mxu0
    %1217 = vmatprep.mubr.bf16.mxu0 0
    %1218 = vmatmul.mubr.bf16.gmra.mrb[0].mxu0 %v1175
    %v1219 = vpop.f32.mrb[0].mxu0
    %v1220 = vadd.f32 %v1158, %v1219
    %v1221 = vpop.f32.mrb[0].mxu0
    %v1222 = vpop.f32.mrb[0].mxu0
    %v1223 = vpop.f32.mrb[0].mxu0
    %1224 = vdwg.mxu0
    %v1225 = vadd.f32 %v813, %v1212
    %v1226 = vadd.f32 %v814, %v1215
    %v1227 = vadd.f32 %v815, %v1220
    %v1228 = vsel %vm96, %v1225, 0.0
    %1229 = vadd.xlane.f32.xlu0 %v1228
    %v1230 = vpop.xlane.xlu0 %1229
    %v1231 = vsel %vm96, %v1226, 0.0
    %1232 = vadd.xlane.f32.xlu0 %v1231
    %v1233 = vpop.xlane.xlu0 %1232
    %v1234 = vsel %vm96, %v1227, 0.0
    %1235 = vadd.xlane.f32.xlu0 %v1234
    %v1236 = vpop.xlane.xlu0 %1235
    %v1237 = vmul.f32 %v1230, %v478
    %v1238 = vmul.f32 %v1233, %v478
    %v1239 = vmul.f32 %v1236, %v478
    %v1240 = vmul.f32 %v1225, %v1225
    %v1241 = vmul.f32 %v1226, %v1226
    %v1242 = vmul.f32 %v1227, %v1227
    %v1243 = vsel %vm96, %v1240, 0.0
    %1244 = vadd.xlane.f32.xlu0 %v1243
    %v1245 = vpop.xlane.xlu0 %1244
    %v1246 = vsel %vm96, %v1241, 0.0
    %1247 = vadd.xlane.f32.xlu0 %v1246
    %v1248 = vpop.xlane.xlu0 %1247
    %v1249 = vsel %vm96, %v1242, 0.0
    %1250 = vadd.xlane.f32.xlu0 %v1249
    %v1251 = vpop.xlane.xlu0 %1250
    %v1252 = vmul.f32 %v1245, %v478
    %v1253 = vmul.f32 %v1248, %v478
    %v1254 = vmul.f32 %v1251, %v478
    %v1255 = vmul.f32 %v1237, %v1237
    %v1256 = vmul.f32 %v1238, %v1238
    %v1257 = vmul.f32 %v1239, %v1239
    %v1258 = vsub.f32 %v1252, %v1255
    %v1259 = vsub.f32 %v1253, %v1256
    %v1260 = vsub.f32 %v1254, %v1257
    %v1261 = vsub.f32 %v1225, %v1237
    %v1262 = vsub.f32 %v1226, %v1238
    %v1263 = vsub.f32 %v1227, %v1239
    %v1264 = vadd.f32 %v1258, 1e-05
    %v1265 = vadd.f32 %v1259, 1e-05
    %v1266 = vadd.f32 %v1260, 1e-05
    %v1267 = vrsqrt.pop %v1264
    %v1268 = vrsqrt.pop %v1265
    %v1269 = vrsqrt.pop %v1266
    %v1270 = vmul.f32 %v1261, %v1267
    %v1271 = vmul.f32 %v1262, %v1268
    %v1272 = vmul.f32 %v1263, %v1269
    %v1273 = vlaneseq
    %v1274 = vshrl.u32 %v1273, 7
    %v1275 = vsub.s32 0, %v1274
    %v1276 = vrot.slane %v836, %v1275
    %v1277 = vmul.f32 %v1270, %v1276
    %v1278 = vmul.f32 %v1271, %v1276
    %v1279 = vmul.f32 %v1272, %v1276
    %v1280 = vlaneseq
    %v1281 = vshrl.u32 %v1280, 7
    %v1282 = vsub.s32 0, %v1281
    %v1283 = vrot.slane %v837, %v1282
    %v1284 = vadd.f32 %v1277, %v1283
    %v1285 = vadd.f32 %v1278, %v1283
    %v1286 = vadd.f32 %v1279, %v1283
    %v1287 = vpack.c.bf16 %v1285, %v1284
    %v1288 = vpack.c.bf16 %v1286, %v1286
    %v1289 = vlaneseq
    %v1290 = vshrl.u32 %v1289, 7
    %v1291 = vsub.s32 0, %v1290
    %v1292 = vrot.slane %v834, %v1291
    %v1297 = vunpack.c.l.b16 %v824
    %v1298 = vunpack.c.l.b16 %v825
    %v1299 = vunpack.c.l.b16 %v826
    %v1300 = vunpack.c.l.b16 %v827
    %v1301 = vpack.c.b16 %v1298, %v1297
    %v1302 = vpack.c.b16 %v1300, %v1299
    %v1306 = vsel %vm96, %v1287, 0
    %v1309 = vsel %vm96, %v1288, 0
    %1311 = vmatprep.subr.bf16.mxu0 0
    %1312 = vmatpush1.bf16.msra.mxu0 %v1301
    %1313 = vmatprep.subr.bf16.mxu0 0
    %1314 = vmatpush1.bf16.msra.mxu0 %v1302
    %1315 = vmatprep.subr.bf16.mxu0 0
    %1316 = vmatpush1.bf16.msra.mxu0 0
    %1317 = vmatprep.subr.bf16.mxu0 0
    %1318 = vmatpush1.bf16.msra.mxu0 0
    %1319 = vmatprep.subr.bf16.mxu0 0
    %1320 = vmatpush1.bf16.msra.mxu0 0
    %1321 = vmatprep.subr.bf16.mxu0 0
    %1322 = vmatpush1.bf16.msra.mxu0 0
    %1323 = vmatprep.subr.bf16.mxu0 0
    %1324 = vmatpush1.bf16.msra.mxu0 0
    %1325 = vmatprep.subr.bf16.mxu0 0
    %1326 = vmatpush1.bf16.msra.mxu0 0
    %1327 = vmatprep.subr.bf16.mxu0 0
    %1328 = vmatpush1.bf16.msra.mxu0 0
    %1329 = vmatprep.subr.bf16.mxu0 0
    %1330 = vmatpush1.bf16.msra.mxu0 0
    %1331 = vmatprep.subr.bf16.mxu0 0
    %1332 = vmatpush1.bf16.msra.mxu0 0
    %1333 = vmatprep.subr.bf16.mxu0 0
    %1334 = vmatpush1.bf16.msra.mxu0 0
    %1335 = vmatprep.subr.bf16.mxu0 0
    %1336 = vmatpush1.bf16.msra.mxu0 0
    %1337 = vmatprep.subr.bf16.mxu0 0
    %1338 = vmatpush1.bf16.msra.mxu0 0
    %1339 = vmatprep.subr.bf16.mxu0 0
    %1340 = vmatpush1.bf16.msra.mxu0 0
    %1341 = vmatprep.subr.bf16.mxu0 0
    %1342 = vmatpush1.bf16.msra.mxu0 0
    %1343 = vmatprep.mubr.bf16.mxu0 0
    %1344 = vmatmul.mubr.bf16.gmra.mrb[0].mxu0 %v1306
    %v1345 = vpop.f32.mrb[0].mxu0
    %v1346 = vadd.f32 %v1292, %v1345
    %v1347 = vpop.f32.mrb[0].mxu0
    %v1348 = vpop.f32.mrb[0].mxu0
    %v1349 = vadd.f32 %v1292, %v1348
    %v1350 = vpop.f32.mrb[0].mxu0
    %1351 = vmatprep.mubr.bf16.mxu0 0
    %1352 = vmatmul.mubr.bf16.gmra.mrb[0].mxu0 %v1309
    %v1353 = vpop.f32.mrb[0].mxu0
    %v1354 = vadd.f32 %v1292, %v1353
    %v1355 = vpop.f32.mrb[0].mxu0
    %v1356 = vpop.f32.mrb[0].mxu0
    %v1357 = vpop.f32.mrb[0].mxu0
    %1358 = vdwg.mxu0
    %v1359 = vmul.f32 %v1346, 0.5
    %v1360 = vmul.f32 %v1349, 0.5
    %v1361 = vmul.f32 %v1354, 0.5
    %v1362 = vmul.f32 %v1346, 0.70710677
    %v1363 = vmul.f32 %v1349, 0.70710677
    %v1364 = vmul.f32 %v1354, 0.70710677
    %vm1365 = vcmp.ge.f32.partialorder %v1362, 0.0
    %vm1366 = vcmp.ge.f32.partialorder %v1363, 0.0
    %vm1367 = vcmp.ge.f32.partialorder %v1364, 0.0
    %v1368 = vsel %vm1365, 1.0, -1.0
    %v1369 = vsel %vm1366, 1.0, -1.0
    %v1370 = vsel %vm1367, 1.0, -1.0
    %v1371 = vand.u32 2147483647, %v1362
    %v1372 = vand.u32 2147483647, %v1363
    %v1373 = vand.u32 2147483647, %v1364
    %v1374 = vmul.f32 %v1371, 0.3275911
    %v1375 = vmul.f32 %v1372, 0.3275911
    %v1376 = vmul.f32 %v1373, 0.3275911
    %v1377 = vadd.f32 %v1374, 1.0
    %v1378 = vadd.f32 %v1375, 1.0
    %v1379 = vadd.f32 %v1376, 1.0
    %v1380 = vrcp.pop %v1377
    %v1381 = vmul.f32 1.0, %v1380
    %v1382 = vrcp.pop %v1378
    %v1383 = vmul.f32 1.0, %v1382
    %v1384 = vrcp.pop %v1379
    %v1385 = vmul.f32 1.0, %v1384
    %v1386 = vmul.f32 %v1381, 1.0614054
    %v1387 = vmul.f32 %v1383, 1.0614054
    %v1388 = vmul.f32 %v1385, 1.0614054
    %v1389 = vadd.f32 %v1386, -1.4531521
    %v1390 = vadd.f32 %v1387, -1.4531521
    %v1391 = vadd.f32 %v1388, -1.4531521
    %v1392 = vmul.f32 %v1389, %v1381
    %v1393 = vmul.f32 %v1390, %v1383
    %v1394 = vmul.f32 %v1391, %v1385
    %v1395 = vadd.f32 %v1392, 1.4214138
    %v1396 = vadd.f32 %v1393, 1.4214138
    %v1397 = vadd.f32 %v1394, 1.4214138
    %v1398 = vmul.f32 %v1395, %v1381
    %v1399 = vmul.f32 %v1396, %v1383
    %v1400 = vmul.f32 %v1397, %v1385
    %v1401 = vadd.f32 %v1398, -0.28449672
    %v1402 = vadd.f32 %v1399, -0.28449672
    %v1403 = vadd.f32 %v1400, -0.28449672
    %v1404 = vmul.f32 %v1401, %v1381
    %v1405 = vmul.f32 %v1402, %v1383
    %v1406 = vmul.f32 %v1403, %v1385
    %v1407 = vadd.f32 %v1404, 0.2548296
    %v1408 = vadd.f32 %v1405, 0.2548296
    %v1409 = vadd.f32 %v1406, 0.2548296
    %v1410 = vmul.f32 %v1407, %v1381
    %v1411 = vmul.f32 %v1408, %v1383
    %v1412 = vmul.f32 %v1409, %v1385
    %v1413 = vsub.f32 0.0, %v1371
    %v1414 = vsub.f32 0.0, %v1372
    %v1415 = vsub.f32 0.0, %v1373
    %v1416 = vmul.f32 %v1413, %v1371
    %v1417 = vmul.f32 %v1414, %v1372
    %v1418 = vmul.f32 %v1415, %v1373
    %v1419 = vmul.f32 %v1416, 1.442695
    %v1420 = vpow.pop %v1419
    %v1421 = vmul.f32 %v1417, 1.442695
    %v1422 = vpow.pop %v1421
    %v1423 = vmul.f32 %v1418, 1.442695
    %v1424 = vpow.pop %v1423
    %v1425 = vmul.f32 %v1410, %v1420
    %v1426 = vmul.f32 %v1411, %v1422
    %v1427 = vmul.f32 %v1412, %v1424
    %v1428 = vsub.f32 1.0, %v1425
    %v1429 = vsub.f32 1.0, %v1426
    %v1430 = vsub.f32 1.0, %v1427
    %v1431 = vmul.f32 %v1368, %v1428
    %v1432 = vmul.f32 %v1369, %v1429
    %v1433 = vmul.f32 %v1370, %v1430
    %v1434 = vadd.f32 %v1431, 1.0
    %v1435 = vadd.f32 %v1432, 1.0
    %v1436 = vadd.f32 %v1433, 1.0
    %v1437 = vmul.f32 %v1359, %v1434
    %v1438 = vmul.f32 %v1360, %v1435
    %v1439 = vmul.f32 %v1361, %v1436
    %v1440 = vpack.c.bf16 %v1438, %v1437
    %v1441 = vpack.c.bf16 %v1439, %v1439
    %v1442 = vlaneseq
    %v1443 = vshrl.u32 %v1442, 7
    %v1444 = vsub.s32 0, %v1443
    %v1445 = vrot.slane %v835, %v1444
    %v1450 = vunpack.c.l.b16 %v828
    %v1451 = vunpack.c.l.b16 %v829
    %v1452 = vunpack.c.l.b16 %v830
    %v1453 = vunpack.c.l.b16 %v831
    %v1454 = vpack.c.b16 %v1451, %v1450
    %v1455 = vpack.c.b16 %v1453, %v1452
    %v1459 = vsel %vm96, %v1440, 0
    %v1462 = vsel %vm96, %v1441, 0
    %1464 = vmatprep.subr.bf16.mxu0 0
    %1465 = vmatpush1.bf16.msra.mxu0 %v1454
    %1466 = vmatprep.subr.bf16.mxu0 0
    %1467 = vmatpush1.bf16.msra.mxu0 %v1455
    %1468 = vmatprep.subr.bf16.mxu0 0
    %1469 = vmatpush1.bf16.msra.mxu0 0
    %1470 = vmatprep.subr.bf16.mxu0 0
    %1471 = vmatpush1.bf16.msra.mxu0 0
    %1472 = vmatprep.subr.bf16.mxu0 0
    %1473 = vmatpush1.bf16.msra.mxu0 0
    %1474 = vmatprep.subr.bf16.mxu0 0
    %1475 = vmatpush1.bf16.msra.mxu0 0
    %1476 = vmatprep.subr.bf16.mxu0 0
    %1477 = vmatpush1.bf16.msra.mxu0 0
    %1478 = vmatprep.subr.bf16.mxu0 0
    %1479 = vmatpush1.bf16.msra.mxu0 0
    %1480 = vmatprep.subr.bf16.mxu0 0
    %1481 = vmatpush1.bf16.msra.mxu0 0
    %1482 = vmatprep.subr.bf16.mxu0 0
    %1483 = vmatpush1.bf16.msra.mxu0 0
    %1484 = vmatprep.subr.bf16.mxu0 0
    %1485 = vmatpush1.bf16.msra.mxu0 0
    %1486 = vmatprep.subr.bf16.mxu0 0
    %1487 = vmatpush1.bf16.msra.mxu0 0
    %1488 = vmatprep.subr.bf16.mxu0 0
    %1489 = vmatpush1.bf16.msra.mxu0 0
    %1490 = vmatprep.subr.bf16.mxu0 0
    %1491 = vmatpush1.bf16.msra.mxu0 0
    %1492 = vmatprep.subr.bf16.mxu0 0
    %1493 = vmatpush1.bf16.msra.mxu0 0
    %1494 = vmatprep.subr.bf16.mxu0 0
    %1495 = vmatpush1.bf16.msra.mxu0 0
    %1496 = vmatprep.mubr.bf16.mxu0 0
    %1497 = vmatmul.mubr.bf16.gmra.mrb[0].mxu0 %v1459
    %v1498 = vpop.f32.mrb[0].mxu0
    %v1499 = vadd.f32 %v1445, %v1498
    %v1500 = vpop.f32.mrb[0].mxu0
    %v1501 = vpop.f32.mrb[0].mxu0
    %v1502 = vadd.f32 %v1445, %v1501
    %v1503 = vpop.f32.mrb[0].mxu0
    %1504 = vmatprep.mubr.bf16.mxu0 0
    %1505 = vmatmul.mubr.bf16.gmra.mrb[0].mxu0 %v1462
    %v1506 = vpop.f32.mrb[0].mxu0
    %v1507 = vadd.f32 %v1445, %v1506
    %v1508 = vpop.f32.mrb[0].mxu0
    %v1509 = vpop.f32.mrb[0].mxu0
    %v1510 = vpop.f32.mrb[0].mxu0
    %1511 = vdwg.mxu0
    %v1512 = vadd.f32 %v1284, %v1499
    %v1513 = vadd.f32 %v1285, %v1502
    %v1514 = vadd.f32 %v1286, %v1507
    %v1515 = vsel %vm96, %v1512, 0.0
    %1516 = vadd.xlane.f32.xlu0 %v1515
    %v1517 = vpop.xlane.xlu0 %1516
    %v1518 = vsel %vm96, %v1513, 0.0
    %1519 = vadd.xlane.f32.xlu0 %v1518
    %v1520 = vpop.xlane.xlu0 %1519
    %v1521 = vsel %vm96, %v1514, 0.0
    %1522 = vadd.xlane.f32.xlu0 %v1521
    %v1523 = vpop.xlane.xlu0 %1522
    %v1524 = vmul.f32 %v1517, %v478
    %v1525 = vmul.f32 %v1520, %v478
    %v1526 = vmul.f32 %v1523, %v478
    %v1527 = vmul.f32 %v1512, %v1512
    %v1528 = vmul.f32 %v1513, %v1513
    %v1529 = vmul.f32 %v1514, %v1514
    %v1530 = vsel %vm96, %v1527, 0.0
    %1531 = vadd.xlane.f32.xlu0 %v1530
    %v1532 = vpop.xlane.xlu0 %1531
    %v1533 = vsel %vm96, %v1528, 0.0
    %1534 = vadd.xlane.f32.xlu0 %v1533
    %v1535 = vpop.xlane.xlu0 %1534
    %v1536 = vsel %vm96, %v1529, 0.0
    %1537 = vadd.xlane.f32.xlu0 %v1536
    %v1538 = vpop.xlane.xlu0 %1537
    %v1539 = vmul.f32 %v1532, %v478
    %v1540 = vmul.f32 %v1535, %v478
    %v1541 = vmul.f32 %v1538, %v478
    %v1542 = vmul.f32 %v1524, %v1524
    %v1543 = vmul.f32 %v1525, %v1525
    %v1544 = vmul.f32 %v1526, %v1526
    %v1545 = vsub.f32 %v1539, %v1542
    %v1546 = vsub.f32 %v1540, %v1543
    %v1547 = vsub.f32 %v1541, %v1544
    %v1548 = vsub.f32 %v1512, %v1524
    %v1549 = vsub.f32 %v1513, %v1525
    %v1550 = vsub.f32 %v1514, %v1526
    %v1551 = vadd.f32 %v1545, 1e-05
    %v1552 = vadd.f32 %v1546, 1e-05
    %v1553 = vadd.f32 %v1547, 1e-05
    %v1554 = vrsqrt.pop %v1551
    %v1555 = vrsqrt.pop %v1552
    %v1556 = vrsqrt.pop %v1553
    %v1557 = vmul.f32 %v1548, %v1554
    %v1558 = vmul.f32 %v1549, %v1555
    %v1559 = vmul.f32 %v1550, %v1556
    %v1560 = vlaneseq
    %v1561 = vshrl.u32 %v1560, 7
    %v1562 = vsub.s32 0, %v1561
    %v1563 = vrot.slane %v838, %v1562
    %v1564 = vmul.f32 %v1557, %v1563
    %v1565 = vmul.f32 %v1558, %v1563
    %v1566 = vmul.f32 %v1559, %v1563
    %v1567 = vlaneseq
    %v1568 = vshrl.u32 %v1567, 7
    %v1569 = vsub.s32 0, %v1568
    %v1570 = vrot.slane %v839, %v1569
    %v1571 = vadd.f32 %v1564, %v1570
    %v1572 = vadd.f32 %v1565, %v1570
    %v1573 = vadd.f32 %v1566, %v1570
    %v1574 = vld [vmem:[%s2 + $0x23] sm:$0x1]
    %v1575 = vlaneseq
    %v1576 = vshrl.u32 %v1575, 7
    %v1577 = vsub.s32 0, %v1576
    %v1578 = vrot.slane %v1574, %v1577
    %v1579 = vmul.f32 %v49, %v1578
    %v1581 = vsel %vm240, %v46, 0
    %1583 = vmatprep.subr.mxu0 0.0
    %v1584 = vand.u32 %v1571, 4294901760
    %1585 = vmatpush1.msra.mxu0 %v1584
    %1586 = vmatprep.subr.mxu0 0.0
    %v1587 = vand.u32 %v1572, 4294901760
    %1588 = vmatpush1.msra.mxu0 %v1587
    %1589 = vmatprep.subr.mxu0 0.0
    %v1590 = vand.u32 %v1573, 4294901760
    %1591 = vmatpush1.msra.mxu0 %v1590
    %1592 = vmatprep.subr.mxu0 0.0
    %1593 = vmatpush1.msra.mxu0 0.0
    %1594 = vmatprep.subr.mxu0 0.0
    %1595 = vmatpush1.msra.mxu0 0.0
    %1596 = vmatprep.subr.mxu0 0.0
    %1597 = vmatpush1.msra.mxu0 0.0
    %1598 = vmatprep.subr.mxu0 0.0
    %1599 = vmatpush1.msra.mxu0 0.0
    %1600 = vmatprep.subr.mxu0 0.0
    %1601 = vmatpush1.msra.mxu0 0.0
    %1602 = vmatprep.subr.mxu0 0.0
    %1603 = vmatpush1.msra.mxu0 0.0
    %1604 = vmatprep.subr.mxu0 0.0
    %1605 = vmatpush1.msra.mxu0 0.0
    %1606 = vmatprep.subr.mxu0 0.0
    %1607 = vmatpush1.msra.mxu0 0.0
    %1608 = vmatprep.subr.mxu0 0.0
    %1609 = vmatpush1.msra.mxu0 0.0
    %1610 = vmatprep.subr.mxu0 0.0
    %1611 = vmatpush1.msra.mxu0 0.0
    %1612 = vmatprep.subr.mxu0 0.0
    %1613 = vmatpush1.msra.mxu0 0.0
    %1614 = vmatprep.subr.mxu0 0.0
    %1615 = vmatpush1.msra.mxu0 0.0
    %1616 = vmatprep.subr.mxu0 0.0
    %1617 = vmatpush1.msra.mxu0 0.0
    %1618 = vmatprep.subr.mxu0 0.0
    %1619 = vmatpush1.msra.mxu0 0.0
    %1620 = vmatprep.subr.mxu0 0.0
    %1621 = vmatpush1.msra.mxu0 0.0
    %1622 = vmatprep.subr.mxu0 0.0
    %1623 = vmatpush1.msra.mxu0 0.0
    %1624 = vmatprep.subr.mxu0 0.0
    %1625 = vmatpush1.msra.mxu0 0.0
    %1626 = vmatprep.subr.mxu0 0.0
    %1627 = vmatpush1.msra.mxu0 0.0
    %1628 = vmatprep.subr.mxu0 0.0
    %1629 = vmatpush1.msra.mxu0 0.0
    %1630 = vmatprep.subr.mxu0 0.0
    %1631 = vmatpush1.msra.mxu0 0.0
    %1632 = vmatprep.subr.mxu0 0.0
    %1633 = vmatpush1.msra.mxu0 0.0
    %1634 = vmatprep.subr.mxu0 0.0
    %1635 = vmatpush1.msra.mxu0 0.0
    %1636 = vmatprep.subr.mxu0 0.0
    %1637 = vmatpush1.msra.mxu0 0.0
    %1638 = vmatprep.subr.mxu0 0.0
    %1639 = vmatpush1.msra.mxu0 0.0
    %1640 = vmatprep.subr.mxu0 0.0
    %1641 = vmatpush1.msra.mxu0 0.0
    %1642 = vmatprep.subr.mxu0 0.0
    %1643 = vmatpush1.msra.mxu0 0.0
    %1644 = vmatprep.subr.mxu0 0.0
    %1645 = vmatpush1.msra.mxu0 0.0
    %1646 = vmatprep.subr.mxu0 0.0
    %1647 = vmatpush1.msra.mxu0 0.0
    %1648 = vmatprep.subr.mxu0 0.0
    %1649 = vmatpush1.msra.mxu0 0.0
    %1650 = vmatprep.mubr.f32.mxu0 0.0
    %v1651 = vand.u32 %v1581, 4294901760
    %v1652 = vsub.f32 %v1581, %v1651
    %v1653 = vand.u32 %v1652, 4294901760
    %v1654 = vsub.f32 %v1652, %v1653
    %v1655 = vand.u32 %v1654, 4294901760
    %1656 = vmatmul.mubr.f32.gmra.mrb[0].mxu0 %v1655
    %v1657 = vpop.f32.mrb[0].mxu0
    %v1658 = vadd.f32 %v1579, %v1657
    %v1659 = vpop.f32.mrb[0].mxu0
    %1660 = vdwg.mxu0
    %1661 = vmatprep.subr.mxu0 0.0
    %v1662 = vand.u32 %v1571, 4294901760
    %v1663 = vsub.f32 %v1571, %v1662
    %v1664 = vand.u32 %v1663, 4294901760
    %v1665 = vsub.f32 %v1663, %v1664
    %v1666 = vand.u32 %v1665, 4294901760
    %1667 = vmatpush1.msra.mxu0 %v1666
    %1668 = vmatprep.subr.mxu0 0.0
    %v1669 = vand.u32 %v1572, 4294901760
    %v1670 = vsub.f32 %v1572, %v1669
    %v1671 = vand.u32 %v1670, 4294901760
    %v1672 = vsub.f32 %v1670, %v1671
    %v1673 = vand.u32 %v1672, 4294901760
    %1674 = vmatpush1.msra.mxu0 %v1673
    %1675 = vmatprep.subr.mxu0 0.0
    %v1676 = vand.u32 %v1573, 4294901760
    %v1677 = vsub.f32 %v1573, %v1676
    %v1678 = vand.u32 %v1677, 4294901760
    %v1679 = vsub.f32 %v1677, %v1678
    %v1680 = vand.u32 %v1679, 4294901760
    %1681 = vmatpush1.msra.mxu0 %v1680
    %1682 = vmatprep.subr.mxu0 0.0
    %1683 = vmatpush1.msra.mxu0 0.0
    %1684 = vmatprep.subr.mxu0 0.0
    %1685 = vmatpush1.msra.mxu0 0.0
    %1686 = vmatprep.subr.mxu0 0.0
    %1687 = vmatpush1.msra.mxu0 0.0
    %1688 = vmatprep.subr.mxu0 0.0
    %1689 = vmatpush1.msra.mxu0 0.0
    %1690 = vmatprep.subr.mxu0 0.0
    %1691 = vmatpush1.msra.mxu0 0.0
    %1692 = vmatprep.subr.mxu0 0.0
    %1693 = vmatpush1.msra.mxu0 0.0
    %1694 = vmatprep.subr.mxu0 0.0
    %1695 = vmatpush1.msra.mxu0 0.0
    %1696 = vmatprep.subr.mxu0 0.0
    %1697 = vmatpush1.msra.mxu0 0.0
    %1698 = vmatprep.subr.mxu0 0.0
    %1699 = vmatpush1.msra.mxu0 0.0
    %1700 = vmatprep.subr.mxu0 0.0
    %1701 = vmatpush1.msra.mxu0 0.0
    %1702 = vmatprep.subr.mxu0 0.0
    %1703 = vmatpush1.msra.mxu0 0.0
    %1704 = vmatprep.subr.mxu0 0.0
    %1705 = vmatpush1.msra.mxu0 0.0
    %1706 = vmatprep.subr.mxu0 0.0
    %1707 = vmatpush1.msra.mxu0 0.0
    %1708 = vmatprep.subr.mxu0 0.0
    %1709 = vmatpush1.msra.mxu0 0.0
    %1710 = vmatprep.subr.mxu0 0.0
    %1711 = vmatpush1.msra.mxu0 0.0
    %1712 = vmatprep.subr.mxu0 0.0
    %1713 = vmatpush1.msra.mxu0 0.0
    %1714 = vmatprep.subr.mxu0 0.0
    %1715 = vmatpush1.msra.mxu0 0.0
    %1716 = vmatprep.subr.mxu0 0.0
    %1717 = vmatpush1.msra.mxu0 0.0
    %1718 = vmatprep.subr.mxu0 0.0
    %1719 = vmatpush1.msra.mxu0 0.0
    %1720 = vmatprep.subr.mxu0 0.0
    %1721 = vmatpush1.msra.mxu0 0.0
    %1722 = vmatprep.subr.mxu0 0.0
    %1723 = vmatpush1.msra.mxu0 0.0
    %1724 = vmatprep.subr.mxu0 0.0
    %1725 = vmatpush1.msra.mxu0 0.0
    %1726 = vmatprep.subr.mxu0 0.0
    %1727 = vmatpush1.msra.mxu0 0.0
    %1728 = vmatprep.subr.mxu0 0.0
    %1729 = vmatpush1.msra.mxu0 0.0
    %1730 = vmatprep.subr.mxu0 0.0
    %1731 = vmatpush1.msra.mxu0 0.0
    %1732 = vmatprep.subr.mxu0 0.0
    %1733 = vmatpush1.msra.mxu0 0.0
    %1734 = vmatprep.subr.mxu0 0.0
    %1735 = vmatpush1.msra.mxu0 0.0
    %1736 = vmatprep.subr.mxu0 0.0
    %1737 = vmatpush1.msra.mxu0 0.0
    %1738 = vmatprep.subr.mxu0 0.0
    %1739 = vmatpush1.msra.mxu0 0.0
    %1740 = vmatprep.mubr.f32.mxu0 0.0
    %v1741 = vand.u32 %v1581, 4294901760
    %1742 = vmatmul.mubr.f32.gmra.mrb[0].mxu0 %v1741
    %v1743 = vpop.f32.mrb[0].mxu0
    %v1744 = vadd.f32 %v1658, %v1743
    %v1745 = vpop.f32.mrb[0].mxu0
    %1746 = vdwg.mxu0
    %1747 = vmatprep.subr.mxu0 0.0
    %v1748 = vand.u32 %v1571, 4294901760
    %v1749 = vsub.f32 %v1571, %v1748
    %1750 = vmatpush1.msra.mxu0 %v1749
    %1751 = vmatprep.subr.mxu0 0.0
    %v1752 = vand.u32 %v1572, 4294901760
    %v1753 = vsub.f32 %v1572, %v1752
    %1754 = vmatpush1.msra.mxu0 %v1753
    %1755 = vmatprep.subr.mxu0 0.0
    %v1756 = vand.u32 %v1573, 4294901760
    %v1757 = vsub.f32 %v1573, %v1756
    %1758 = vmatpush1.msra.mxu0 %v1757
    %1759 = vmatprep.subr.mxu0 0.0
    %1760 = vmatpush1.msra.mxu0 0.0
    %1761 = vmatprep.subr.mxu0 0.0
    %1762 = vmatpush1.msra.mxu0 0.0
    %1763 = vmatprep.subr.mxu0 0.0
    %1764 = vmatpush1.msra.mxu0 0.0
    %1765 = vmatprep.subr.mxu0 0.0
    %1766 = vmatpush1.msra.mxu0 0.0
    %1767 = vmatprep.subr.mxu0 0.0
    %1768 = vmatpush1.msra.mxu0 0.0
    %1769 = vmatprep.subr.mxu0 0.0
    %1770 = vmatpush1.msra.mxu0 0.0
    %1771 = vmatprep.subr.mxu0 0.0
    %1772 = vmatpush1.msra.mxu0 0.0
    %1773 = vmatprep.subr.mxu0 0.0
    %1774 = vmatpush1.msra.mxu0 0.0
    %1775 = vmatprep.subr.mxu0 0.0
    %1776 = vmatpush1.msra.mxu0 0.0
    %1777 = vmatprep.subr.mxu0 0.0
    %1778 = vmatpush1.msra.mxu0 0.0
    %1779 = vmatprep.subr.mxu0 0.0
    %1780 = vmatpush1.msra.mxu0 0.0
    %1781 = vmatprep.subr.mxu0 0.0
    %1782 = vmatpush1.msra.mxu0 0.0
    %1783 = vmatprep.subr.mxu0 0.0
    %1784 = vmatpush1.msra.mxu0 0.0
    %1785 = vmatprep.subr.mxu0 0.0
    %1786 = vmatpush1.msra.mxu0 0.0
    %1787 = vmatprep.subr.mxu0 0.0
    %1788 = vmatpush1.msra.mxu0 0.0
    %1789 = vmatprep.subr.mxu0 0.0
    %1790 = vmatpush1.msra.mxu0 0.0
    %1791 = vmatprep.subr.mxu0 0.0
    %1792 = vmatpush1.msra.mxu0 0.0
    %1793 = vmatprep.subr.mxu0 0.0
    %1794 = vmatpush1.msra.mxu0 0.0
    %1795 = vmatprep.subr.mxu0 0.0
    %1796 = vmatpush1.msra.mxu0 0.0
    %1797 = vmatprep.subr.mxu0 0.0
    %1798 = vmatpush1.msra.mxu0 0.0
    %1799 = vmatprep.subr.mxu0 0.0
    %1800 = vmatpush1.msra.mxu0 0.0
    %1801 = vmatprep.subr.mxu0 0.0
    %1802 = vmatpush1.msra.mxu0 0.0
    %1803 = vmatprep.subr.mxu0 0.0
    %1804 = vmatpush1.msra.mxu0 0.0
    %1805 = vmatprep.subr.mxu0 0.0
    %1806 = vmatpush1.msra.mxu0 0.0
    %1807 = vmatprep.subr.mxu0 0.0
    %1808 = vmatpush1.msra.mxu0 0.0
    %1809 = vmatprep.subr.mxu0 0.0
    %1810 = vmatpush1.msra.mxu0 0.0
    %1811 = vmatprep.subr.mxu0 0.0
    %1812 = vmatpush1.msra.mxu0 0.0
    %1813 = vmatprep.subr.mxu0 0.0
    %1814 = vmatpush1.msra.mxu0 0.0
    %1815 = vmatprep.subr.mxu0 0.0
    %1816 = vmatpush1.msra.mxu0 0.0
    %1817 = vmatprep.mubr.f32.mxu0 0.0
    %v1818 = vand.u32 %v1581, 4294901760
    %v1819 = vsub.f32 %v1581, %v1818
    %1820 = vmatmul.mubr.f32.gmra.mrb[0].mxu0 %v1819
    %v1821 = vpop.f32.mrb[0].mxu0
    %v1822 = vadd.f32 %v1744, %v1821
    %v1823 = vpop.f32.mrb[0].mxu0
    %1824 = vdwg.mxu0
    %1825 = vmatprep.subr.mxu0 0.0
    %v1826 = vand.u32 %v1571, 4294901760
    %1827 = vmatpush1.msra.mxu0 %v1826
    %1828 = vmatprep.subr.mxu0 0.0
    %v1829 = vand.u32 %v1572, 4294901760
    %1830 = vmatpush1.msra.mxu0 %v1829
    %1831 = vmatprep.subr.mxu0 0.0
    %v1832 = vand.u32 %v1573, 4294901760
    %1833 = vmatpush1.msra.mxu0 %v1832
    %1834 = vmatprep.subr.mxu0 0.0
    %1835 = vmatpush1.msra.mxu0 0.0
    %1836 = vmatprep.subr.mxu0 0.0
    %1837 = vmatpush1.msra.mxu0 0.0
    %1838 = vmatprep.subr.mxu0 0.0
    %1839 = vmatpush1.msra.mxu0 0.0
    %1840 = vmatprep.subr.mxu0 0.0
    %1841 = vmatpush1.msra.mxu0 0.0
    %1842 = vmatprep.subr.mxu0 0.0
    %1843 = vmatpush1.msra.mxu0 0.0
    %1844 = vmatprep.subr.mxu0 0.0
    %1845 = vmatpush1.msra.mxu0 0.0
    %1846 = vmatprep.subr.mxu0 0.0
    %1847 = vmatpush1.msra.mxu0 0.0
    %1848 = vmatprep.subr.mxu0 0.0
    %1849 = vmatpush1.msra.mxu0 0.0
    %1850 = vmatprep.subr.mxu0 0.0
    %1851 = vmatpush1.msra.mxu0 0.0
    %1852 = vmatprep.subr.mxu0 0.0
    %1853 = vmatpush1.msra.mxu0 0.0
    %1854 = vmatprep.subr.mxu0 0.0
    %1855 = vmatpush1.msra.mxu0 0.0
    %1856 = vmatprep.subr.mxu0 0.0
    %1857 = vmatpush1.msra.mxu0 0.0
    %1858 = vmatprep.subr.mxu0 0.0
    %1859 = vmatpush1.msra.mxu0 0.0
    %1860 = vmatprep.subr.mxu0 0.0
    %1861 = vmatpush1.msra.mxu0 0.0
    %1862 = vmatprep.subr.mxu0 0.0
    %1863 = vmatpush1.msra.mxu0 0.0
    %1864 = vmatprep.subr.mxu0 0.0
    %1865 = vmatpush1.msra.mxu0 0.0
    %1866 = vmatprep.subr.mxu0 0.0
    %1867 = vmatpush1.msra.mxu0 0.0
    %1868 = vmatprep.subr.mxu0 0.0
    %1869 = vmatpush1.msra.mxu0 0.0
    %1870 = vmatprep.subr.mxu0 0.0
    %1871 = vmatpush1.msra.mxu0 0.0
    %1872 = vmatprep.subr.mxu0 0.0
    %1873 = vmatpush1.msra.mxu0 0.0
    %1874 = vmatprep.subr.mxu0 0.0
    %1875 = vmatpush1.msra.mxu0 0.0
    %1876 = vmatprep.subr.mxu0 0.0
    %1877 = vmatpush1.msra.mxu0 0.0
    %1878 = vmatprep.subr.mxu0 0.0
    %1879 = vmatpush1.msra.mxu0 0.0
    %1880 = vmatprep.subr.mxu0 0.0
    %1881 = vmatpush1.msra.mxu0 0.0
    %1882 = vmatprep.subr.mxu0 0.0
    %1883 = vmatpush1.msra.mxu0 0.0
    %1884 = vmatprep.subr.mxu0 0.0
    %1885 = vmatpush1.msra.mxu0 0.0
    %1886 = vmatprep.subr.mxu0 0.0
    %1887 = vmatpush1.msra.mxu0 0.0
    %1888 = vmatprep.subr.mxu0 0.0
    %1889 = vmatpush1.msra.mxu0 0.0
    %1890 = vmatprep.subr.mxu0 0.0
    %1891 = vmatpush1.msra.mxu0 0.0
    %1892 = vmatprep.mubr.f32.mxu0 0.0
    %v1893 = vand.u32 %v1581, 4294901760
    %v1894 = vsub.f32 %v1581, %v1893
    %v1895 = vand.u32 %v1894, 4294901760
    %1896 = vmatmul.mubr.f32.gmra.mrb[0].mxu0 %v1895
    %v1897 = vpop.f32.mrb[0].mxu0
    %v1898 = vadd.f32 %v1822, %v1897
    %v1899 = vpop.f32.mrb[0].mxu0
    %1900 = vdwg.mxu0
    %1901 = vmatprep.subr.mxu0 0.0
    %v1902 = vand.u32 %v1571, 4294901760
    %v1903 = vsub.f32 %v1571, %v1902
    %v1904 = vand.u32 %v1903, 4294901760
    %1905 = vmatpush1.msra.mxu0 %v1904
    %1906 = vmatprep.subr.mxu0 0.0
    %v1907 = vand.u32 %v1572, 4294901760
    %v1908 = vsub.f32 %v1572, %v1907
    %v1909 = vand.u32 %v1908, 4294901760
    %1910 = vmatpush1.msra.mxu0 %v1909
    %1911 = vmatprep.subr.mxu0 0.0
    %v1912 = vand.u32 %v1573, 4294901760
    %v1913 = vsub.f32 %v1573, %v1912
    %v1914 = vand.u32 %v1913, 4294901760
    %1915 = vmatpush1.msra.mxu0 %v1914
    %1916 = vmatprep.subr.mxu0 0.0
    %1917 = vmatpush1.msra.mxu0 0.0
    %1918 = vmatprep.subr.mxu0 0.0
    %1919 = vmatpush1.msra.mxu0 0.0
    %1920 = vmatprep.subr.mxu0 0.0
    %1921 = vmatpush1.msra.mxu0 0.0
    %1922 = vmatprep.subr.mxu0 0.0
    %1923 = vmatpush1.msra.mxu0 0.0
    %1924 = vmatprep.subr.mxu0 0.0
    %1925 = vmatpush1.msra.mxu0 0.0
    %1926 = vmatprep.subr.mxu0 0.0
    %1927 = vmatpush1.msra.mxu0 0.0
    %1928 = vmatprep.subr.mxu0 0.0
    %1929 = vmatpush1.msra.mxu0 0.0
    %1930 = vmatprep.subr.mxu0 0.0
    %1931 = vmatpush1.msra.mxu0 0.0
    %1932 = vmatprep.subr.mxu0 0.0
    %1933 = vmatpush1.msra.mxu0 0.0
    %1934 = vmatprep.subr.mxu0 0.0
    %1935 = vmatpush1.msra.mxu0 0.0
    %1936 = vmatprep.subr.mxu0 0.0
    %1937 = vmatpush1.msra.mxu0 0.0
    %1938 = vmatprep.subr.mxu0 0.0
    %1939 = vmatpush1.msra.mxu0 0.0
    %1940 = vmatprep.subr.mxu0 0.0
    %1941 = vmatpush1.msra.mxu0 0.0
    %1942 = vmatprep.subr.mxu0 0.0
    %1943 = vmatpush1.msra.mxu0 0.0
    %1944 = vmatprep.subr.mxu0 0.0
    %1945 = vmatpush1.msra.mxu0 0.0
    %1946 = vmatprep.subr.mxu0 0.0
    %1947 = vmatpush1.msra.mxu0 0.0
    %1948 = vmatprep.subr.mxu0 0.0
    %1949 = vmatpush1.msra.mxu0 0.0
    %1950 = vmatprep.subr.mxu0 0.0
    %1951 = vmatpush1.msra.mxu0 0.0
    %1952 = vmatprep.subr.mxu0 0.0
    %1953 = vmatpush1.msra.mxu0 0.0
    %1954 = vmatprep.subr.mxu0 0.0
    %1955 = vmatpush1.msra.mxu0 0.0
    %1956 = vmatprep.subr.mxu0 0.0
    %1957 = vmatpush1.msra.mxu0 0.0
    %1958 = vmatprep.subr.mxu0 0.0
    %1959 = vmatpush1.msra.mxu0 0.0
    %1960 = vmatprep.subr.mxu0 0.0
    %1961 = vmatpush1.msra.mxu0 0.0
    %1962 = vmatprep.subr.mxu0 0.0
    %1963 = vmatpush1.msra.mxu0 0.0
    %1964 = vmatprep.subr.mxu0 0.0
    %1965 = vmatpush1.msra.mxu0 0.0
    %1966 = vmatprep.subr.mxu0 0.0
    %1967 = vmatpush1.msra.mxu0 0.0
    %1968 = vmatprep.subr.mxu0 0.0
    %1969 = vmatpush1.msra.mxu0 0.0
    %1970 = vmatprep.subr.mxu0 0.0
    %1971 = vmatpush1.msra.mxu0 0.0
    %1972 = vmatprep.subr.mxu0 0.0
    %1973 = vmatpush1.msra.mxu0 0.0
    %1974 = vmatprep.mubr.f32.mxu0 0.0
    %v1975 = vand.u32 %v1581, 4294901760
    %1976 = vmatmul.mubr.f32.gmra.mrb[0].mxu0 %v1975
    %v1977 = vpop.f32.mrb[0].mxu0
    %v1978 = vadd.f32 %v1898, %v1977
    %v1979 = vpop.f32.mrb[0].mxu0
    %1980 = vdwg.mxu0
    %1981 = vmatprep.subr.mxu0 0.0
    %v1982 = vand.u32 %v1571, 4294901760
    %1983 = vmatpush1.msra.mxu0 %v1982
    %1984 = vmatprep.subr.mxu0 0.0
    %v1985 = vand.u32 %v1572, 4294901760
    %1986 = vmatpush1.msra.mxu0 %v1985
    %1987 = vmatprep.subr.mxu0 0.0
    %v1988 = vand.u32 %v1573, 4294901760
    %1989 = vmatpush1.msra.mxu0 %v1988
    %1990 = vmatprep.subr.mxu0 0.0
    %1991 = vmatpush1.msra.mxu0 0.0
    %1992 = vmatprep.subr.mxu0 0.0
    %1993 = vmatpush1.msra.mxu0 0.0
    %1994 = vmatprep.subr.mxu0 0.0
    %1995 = vmatpush1.msra.mxu0 0.0
    %1996 = vmatprep.subr.mxu0 0.0
    %1997 = vmatpush1.msra.mxu0 0.0
    %1998 = vmatprep.subr.mxu0 0.0
    %1999 = vmatpush1.msra.mxu0 0.0
    %2000 = vmatprep.subr.mxu0 0.0
    %2001 = vmatpush1.msra.mxu0 0.0
    %2002 = vmatprep.subr.mxu0 0.0
    %2003 = vmatpush1.msra.mxu0 0.0
    %2004 = vmatprep.subr.mxu0 0.0
    %2005 = vmatpush1.msra.mxu0 0.0
    %2006 = vmatprep.subr.mxu0 0.0
    %2007 = vmatpush1.msra.mxu0 0.0
    %2008 = vmatprep.subr.mxu0 0.0
    %2009 = vmatpush1.msra.mxu0 0.0
    %2010 = vmatprep.subr.mxu0 0.0
    %2011 = vmatpush1.msra.mxu0 0.0
    %2012 = vmatprep.subr.mxu0 0.0
    %2013 = vmatpush1.msra.mxu0 0.0
    %2014 = vmatprep.subr.mxu0 0.0
    %2015 = vmatpush1.msra.mxu0 0.0
    %2016 = vmatprep.subr.mxu0 0.0
    %2017 = vmatpush1.msra.mxu0 0.0
    %2018 = vmatprep.subr.mxu0 0.0
    %2019 = vmatpush1.msra.mxu0 0.0
    %2020 = vmatprep.subr.mxu0 0.0
    %2021 = vmatpush1.msra.mxu0 0.0
    %2022 = vmatprep.subr.mxu0 0.0
    %2023 = vmatpush1.msra.mxu0 0.0
    %2024 = vmatprep.subr.mxu0 0.0
    %2025 = vmatpush1.msra.mxu0 0.0
    %2026 = vmatprep.subr.mxu0 0.0
    %2027 = vmatpush1.msra.mxu0 0.0
    %2028 = vmatprep.subr.mxu0 0.0
    %2029 = vmatpush1.msra.mxu0 0.0
    %2030 = vmatprep.subr.mxu0 0.0
    %2031 = vmatpush1.msra.mxu0 0.0
    %2032 = vmatprep.subr.mxu0 0.0
    %2033 = vmatpush1.msra.mxu0 0.0
    %2034 = vmatprep.subr.mxu0 0.0
    %2035 = vmatpush1.msra.mxu0 0.0
    %2036 = vmatprep.subr.mxu0 0.0
    %2037 = vmatpush1.msra.mxu0 0.0
    %2038 = vmatprep.subr.mxu0 0.0
    %2039 = vmatpush1.msra.mxu0 0.0
    %2040 = vmatprep.subr.mxu0 0.0
    %2041 = vmatpush1.msra.mxu0 0.0
    %2042 = vmatprep.subr.mxu0 0.0
    %2043 = vmatpush1.msra.mxu0 0.0
    %2044 = vmatprep.subr.mxu0 0.0
    %2045 = vmatpush1.msra.mxu0 0.0
    %2046 = vmatprep.subr.mxu0 0.0
    %2047 = vmatpush1.msra.mxu0 0.0
    %2048 = vmatprep.mubr.f32.mxu0 0.0
    %v2049 = vand.u32 %v1581, 4294901760
    %2050 = vmatmul.mubr.f32.gmra.mrb[0].mxu0 %v2049
    %v2051 = vpop.f32.mrb[0].mxu0
    %v2052 = vadd.f32 %v1978, %v2051
    %v2053 = vpop.f32.mrb[0].mxu0
    %2054 = vdwg.mxu0
    %v2055 = vld [vmem:[%s1 + $0x80] sm:$0xf]
    %v2056 = vld [vmem:[%s1 + $0x84] sm:$0xf]
    %v2057 = vld [vmem:[%s1 + $0x88] sm:$0xf]
    %v2058 = vld [vmem:[%s1 + $0x8c] sm:$0xf]
    %v2059 = vld [vmem:[%s1 + $0x90] sm:$0xf]
    %v2060 = vld [vmem:[%s1 + $0x94] sm:$0xf]
    %v2061 = vld [vmem:[%s1 + $0x98] sm:$0xf]
    %v2062 = vld [vmem:[%s1 + $0x9c] sm:$0xf]
    %v2063 = vld [vmem:[%s1 + $0xa0] sm:$0xf]
    %v2064 = vld [vmem:[%s1 + $0xa4] sm:$0xf]
    %v2065 = vld [vmem:[%s1 + $0xa8] sm:$0xf]
    %v2066 = vld [vmem:[%s1 + $0xac] sm:$0xf]
    %v2067 = vld [vmem:[%s1 + $0xb0] sm:$0xf]
    %v2068 = vld [vmem:[%s1 + $0xb4] sm:$0xf]
    %v2069 = vld [vmem:[%s1 + $0xb8] sm:$0xf]
    %v2070 = vld [vmem:[%s1 + $0xbc] sm:$0xf]
    %v2071 = vld [vmem:[%s2 + $0x10] sm:$0x1]
    %v2072 = vld [vmem:[%s2 + $0x11] sm:$0x1]
    %v2073 = vld [vmem:[%s2 + $0x12] sm:$0x1]
    %v2074 = vld [vmem:[%s2 + $0x13] sm:$0x1]
    %v2075 = vld [vmem:[%s2 + $0x14] sm:$0x1]
    %v2076 = vld [vmem:[%s2 + $0x15] sm:$0x1]
    %v2077 = vld [vmem:[%s2 + $0x16] sm:$0x1]
    %v2078 = vld [vmem:[%s2 + $0x17] sm:$0x1]
    %v2079 = vpack.c.bf16 %v2052, %v2052
    %v2080 = vlaneseq
    %v2081 = vshrl.u32 %v2080, 7
    %v2082 = vsub.s32 0, %v2081
    %v2083 = vrot.slane %v2071, %v2082
    %v2088 = vunpack.c.l.b16 %v2055
    %v2089 = vunpack.c.l.b16 %v2056
    %v2090 = vunpack.c.l.b16 %v2057
    %v2091 = vunpack.c.l.b16 %v2058
    %v2092 = vpack.c.b16 %v2089, %v2088
    %v2093 = vpack.c.b16 %v2091, %v2090
    %v2097 = vsel %vm96, %v2079, 0
    %2099 = vmatprep.subr.bf16.mxu0 0
    %2100 = vmatpush1.bf16.msra.mxu0 %v2092
    %2101 = vmatprep.subr.bf16.mxu0 0
    %2102 = vmatpush1.bf16.msra.mxu0 %v2093
    %2103 = vmatprep.subr.bf16.mxu0 0
    %2104 = vmatpush1.bf16.msra.mxu0 0
    %2105 = vmatprep.subr.bf16.mxu0 0
    %2106 = vmatpush1.bf16.msra.mxu0 0
    %2107 = vmatprep.subr.bf16.mxu0 0
    %2108 = vmatpush1.bf16.msra.mxu0 0
    %2109 = vmatprep.subr.bf16.mxu0 0
    %2110 = vmatpush1.bf16.msra.mxu0 0
    %2111 = vmatprep.subr.bf16.mxu0 0
    %2112 = vmatpush1.bf16.msra.mxu0 0
    %2113 = vmatprep.subr.bf16.mxu0 0
    %2114 = vmatpush1.bf16.msra.mxu0 0
    %2115 = vmatprep.subr.bf16.mxu0 0
    %2116 = vmatpush1.bf16.msra.mxu0 0
    %2117 = vmatprep.subr.bf16.mxu0 0
    %2118 = vmatpush1.bf16.msra.mxu0 0
    %2119 = vmatprep.subr.bf16.mxu0 0
    %2120 = vmatpush1.bf16.msra.mxu0 0
    %2121 = vmatprep.subr.bf16.mxu0 0
    %2122 = vmatpush1.bf16.msra.mxu0 0
    %2123 = vmatprep.subr.bf16.mxu0 0
    %2124 = vmatpush1.bf16.msra.mxu0 0
    %2125 = vmatprep.subr.bf16.mxu0 0
    %2126 = vmatpush1.bf16.msra.mxu0 0
    %2127 = vmatprep.subr.bf16.mxu0 0
    %2128 = vmatpush1.bf16.msra.mxu0 0
    %2129 = vmatprep.subr.bf16.mxu0 0
    %2130 = vmatpush1.bf16.msra.mxu0 0
    %2131 = vmatprep.mubr.bf16.mxu0 0
    %2132 = vmatmul.mubr.bf16.gmra.mrb[0].mxu0 %v2097
    %v2133 = vpop.f32.mrb[0].mxu0
    %v2134 = vadd.f32 %v2083, %v2133
    %v2135 = vpop.f32.mrb[0].mxu0
    %v2136 = vpop.f32.mrb[0].mxu0
    %v2137 = vpop.f32.mrb[0].mxu0
    %2138 = vdwg.mxu0
    %v2139 = vpack.c.bf16 %v2134, %v2134
    %2141 = vrot.lane.b32.xlu0 %v2139, 96
    %v2142 = vpop.permute.xlu0 %2141
    %v2144 = vsel %vm96, %v2139, 0
    %v2147 = vsel %vm96, %v2142, 0
    %2149 = vmatprep.subr.bf16.mxu0 0
    %2150 = vmatpush1.bf16.xpose.msra.mxu0 %v2147
    %2151 = vmatprep.subr.bf16.mxu0 0
    %2152 = vmatpush1.bf16.xpose.msra.mxu0 0
    %2153 = vmatprep.subr.bf16.mxu0 0
    %2154 = vmatpush1.bf16.xpose.msra.mxu0 0
    %2155 = vmatprep.subr.bf16.mxu0 0
    %2156 = vmatpush1.bf16.xpose.msra.mxu0 0
    %2157 = vmatprep.subr.bf16.mxu0 0
    %2158 = vmatpush1.bf16.xpose.msra.mxu0 0
    %2159 = vmatprep.subr.bf16.mxu0 0
    %2160 = vmatpush1.bf16.xpose.msra.mxu0 0
    %2161 = vmatprep.subr.bf16.mxu0 0
    %2162 = vmatpush1.bf16.xpose.msra.mxu0 0
    %2163 = vmatprep.subr.bf16.mxu0 0
    %2164 = vmatpush1.bf16.xpose.msra.mxu0 0
    %2165 = vmatprep.subr.bf16.mxu0 0
    %2166 = vmatpush1.bf16.xpose.msra.mxu0 0
    %2167 = vmatprep.subr.bf16.mxu0 0
    %2168 = vmatpush1.bf16.xpose.msra.mxu0 0
    %2169 = vmatprep.subr.bf16.mxu0 0
    %2170 = vmatpush1.bf16.xpose.msra.mxu0 0
    %2171 = vmatprep.subr.bf16.mxu0 0
    %2172 = vmatpush1.bf16.xpose.msra.mxu0 0
    %2173 = vmatprep.subr.bf16.mxu0 0
    %2174 = vmatpush1.bf16.xpose.msra.mxu0 0
    %2175 = vmatprep.subr.bf16.mxu0 0
    %2176 = vmatpush1.bf16.xpose.msra.mxu0 0
    %2177 = vmatprep.subr.bf16.mxu0 0
    %2178 = vmatpush1.bf16.xpose.msra.mxu0 0
    %2179 = vmatprep.subr.bf16.mxu0 0
    %2180 = vmatpush1.bf16.xpose.msra.mxu0 0
    %2181 = vmatprep.mubr.bf16.mxu0 0
    %2182 = vmatmul.mubr.bf16.gmra.mrb[0].mxu0 %v2144
    %v2183 = vpop.f32.mrb[0].mxu0
    %v2184 = vadd.f32 %v50, %v2183
    %v2185 = vpop.f32.mrb[0].mxu0
    %v2186 = vpop.f32.mrb[0].mxu0
    %v2187 = vpop.f32.mrb[0].mxu0
    %2188 = vdwg.mxu0
    %vm2189 = vcmask 64512
    %v2190 = vsel %vm2189, %v2184, -inf
    %2191 = vmax.xlane.f32.xlu0 %v2190
    %v2192 = vpop.xlane.xlu0 %2191
    %v2193 = vsub.f32 %v2184, %v2192
    %v2194 = vmul.f32 %v2193, 1.442695
    %v2195 = vpow.pop %v2194
    %v2196 = vsel %vm2189, %v2195, 0.0
    %2197 = vadd.xlane.f32.xlu0 %v2196
    %v2198 = vpop.xlane.xlu0 %2197
    %v2199 = vrcp.pop %v2198
    %v2200 = vmul.f32 %v2195, %v2199
    %v2201 = vpack.c.bf16 %v2200, %v2200
    %2202 = vrot.lane.b32.xlu0 %v2139, 64
    %v2203 = vpop.permute.xlu0 %2202
    %v2205 = vsel %vm2189, %v2201, 0
    %v2208 = vsel %vm324, %v2203, 0
    %2210 = vmatprep.subr.bf16.mxu0 0
    %2211 = vmatpush1.bf16.msra.mxu0 %v2208
    %2212 = vmatprep.subr.bf16.mxu0 0
    %2213 = vmatpush1.bf16.msra.mxu0 0
    %2214 = vmatprep.subr.bf16.mxu0 0
    %2215 = vmatpush1.bf16.msra.mxu0 0
    %2216 = vmatprep.subr.bf16.mxu0 0
    %2217 = vmatpush1.bf16.msra.mxu0 0
    %2218 = vmatprep.subr.bf16.mxu0 0
    %2219 = vmatpush1.bf16.msra.mxu0 0
    %2220 = vmatprep.subr.bf16.mxu0 0
    %2221 = vmatpush1.bf16.msra.mxu0 0
    %2222 = vmatprep.subr.bf16.mxu0 0
    %2223 = vmatpush1.bf16.msra.mxu0 0
    %2224 = vmatprep.subr.bf16.mxu0 0
    %2225 = vmatpush1.bf16.msra.mxu0 0
    %2226 = vmatprep.subr.bf16.mxu0 0
    %2227 = vmatpush1.bf16.msra.mxu0 0
    %2228 = vmatprep.subr.bf16.mxu0 0
    %2229 = vmatpush1.bf16.msra.mxu0 0
    %2230 = vmatprep.subr.bf16.mxu0 0
    %2231 = vmatpush1.bf16.msra.mxu0 0
    %2232 = vmatprep.subr.bf16.mxu0 0
    %2233 = vmatpush1.bf16.msra.mxu0 0
    %2234 = vmatprep.subr.bf16.mxu0 0
    %2235 = vmatpush1.bf16.msra.mxu0 0
    %2236 = vmatprep.subr.bf16.mxu0 0
    %2237 = vmatpush1.bf16.msra.mxu0 0
    %2238 = vmatprep.subr.bf16.mxu0 0
    %2239 = vmatpush1.bf16.msra.mxu0 0
    %2240 = vmatprep.subr.bf16.mxu0 0
    %2241 = vmatpush1.bf16.msra.mxu0 0
    %2242 = vmatprep.mubr.bf16.mxu0 0
    %2243 = vmatmul.mubr.bf16.gmra.mrb[0].mxu0 %v2205
    %v2244 = vpop.f32.mrb[0].mxu0
    %v2245 = vadd.f32 0.0, %v2244
    %v2246 = vpop.f32.mrb[0].mxu0
    %v2247 = vpop.f32.mrb[0].mxu0
    %v2248 = vpop.f32.mrb[0].mxu0
    %2249 = vdwg.mxu0
    %v2250 = vpack.c.bf16 %v2245, %v2245
    %v2251 = vlaneseq
    %v2252 = vshrl.u32 %v2251, 7
    %v2253 = vsub.s32 0, %v2252
    %v2254 = vrot.slane %v2072, %v2253
    %v2259 = vunpack.c.l.b16 %v2059
    %v2260 = vunpack.c.l.b16 %v2060
    %v2261 = vunpack.c.l.b16 %v2061
    %v2262 = vunpack.c.l.b16 %v2062
    %v2263 = vpack.c.b16 %v2260, %v2259
    %v2264 = vpack.c.b16 %v2262, %v2261
    %v2268 = vsel %vm96, %v2250, 0
    %2270 = vmatprep.subr.bf16.mxu0 0
    %2271 = vmatpush1.bf16.msra.mxu0 %v2263
    %2272 = vmatprep.subr.bf16.mxu0 0
    %2273 = vmatpush1.bf16.msra.mxu0 %v2264
    %2274 = vmatprep.subr.bf16.mxu0 0
    %2275 = vmatpush1.bf16.msra.mxu0 0
    %2276 = vmatprep.subr.bf16.mxu0 0
    %2277 = vmatpush1.bf16.msra.mxu0 0
    %2278 = vmatprep.subr.bf16.mxu0 0
    %2279 = vmatpush1.bf16.msra.mxu0 0
    %2280 = vmatprep.subr.bf16.mxu0 0
    %2281 = vmatpush1.bf16.msra.mxu0 0
    %2282 = vmatprep.subr.bf16.mxu0 0
    %2283 = vmatpush1.bf16.msra.mxu0 0
    %2284 = vmatprep.subr.bf16.mxu0 0
    %2285 = vmatpush1.bf16.msra.mxu0 0
    %2286 = vmatprep.subr.bf16.mxu0 0
    %2287 = vmatpush1.bf16.msra.mxu0 0
    %2288 = vmatprep.subr.bf16.mxu0 0
    %2289 = vmatpush1.bf16.msra.mxu0 0
    %2290 = vmatprep.subr.bf16.mxu0 0
    %2291 = vmatpush1.bf16.msra.mxu0 0
    %2292 = vmatprep.subr.bf16.mxu0 0
    %2293 = vmatpush1.bf16.msra.mxu0 0
    %2294 = vmatprep.subr.bf16.mxu0 0
    %2295 = vmatpush1.bf16.msra.mxu0 0
    %2296 = vmatprep.subr.bf16.mxu0 0
    %2297 = vmatpush1.bf16.msra.mxu0 0
    %2298 = vmatprep.subr.bf16.mxu0 0
    %2299 = vmatpush1.bf16.msra.mxu0 0
    %2300 = vmatprep.subr.bf16.mxu0 0
    %2301 = vmatpush1.bf16.msra.mxu0 0
    %2302 = vmatprep.mubr.bf16.mxu0 0
    %2303 = vmatmul.mubr.bf16.gmra.mrb[0].mxu0 %v2268
    %v2304 = vpop.f32.mrb[0].mxu0
    %v2305 = vadd.f32 %v2254, %v2304
    %v2306 = vpop.f32.mrb[0].mxu0
    %v2307 = vpop.f32.mrb[0].mxu0
    %v2308 = vpop.f32.mrb[0].mxu0
    %2309 = vdwg.mxu0
    %v2310 = vadd.f32 %v2052, %v2305
    %v2311 = vsel %vm96, %v2310, 0.0
    %2312 = vadd.xlane.f32.xlu0 %v2311
    %v2313 = vpop.xlane.xlu0 %2312
    %v2314 = vmul.f32 %v2313, %v478
    %v2315 = vmul.f32 %v2310, %v2310
    %v2316 = vsel %vm96, %v2315, 0.0
    %2317 = vadd.xlane.f32.xlu0 %v2316
    %v2318 = vpop.xlane.xlu0 %2317
    %v2319 = vmul.f32 %v2318, %v478
    %v2320 = vmul.f32 %v2314, %v2314
    %v2321 = vsub.f32 %v2319, %v2320
    %v2322 = vsub.f32 %v2310, %v2314
    %v2323 = vadd.f32 %v2321, 1e-05
    %v2324 = vrsqrt.pop %v2323
    %v2325 = vmul.f32 %v2322, %v2324
    %v2326 = vlaneseq
    %v2327 = vshrl.u32 %v2326, 7
    %v2328 = vsub.s32 0, %v2327
    %v2329 = vrot.slane %v2075, %v2328
    %v2330 = vmul.f32 %v2325, %v2329
    %v2331 = vlaneseq
    %v2332 = vshrl.u32 %v2331, 7
    %v2333 = vsub.s32 0, %v2332
    %v2334 = vrot.slane %v2076, %v2333
    %v2335 = vadd.f32 %v2330, %v2334
    %v2336 = vpack.c.bf16 %v2335, %v2335
    %v2337 = vlaneseq
    %v2338 = vshrl.u32 %v2337, 7
    %v2339 = vsub.s32 0, %v2338
    %v2340 = vrot.slane %v2073, %v2339
    %v2345 = vunpack.c.l.b16 %v2063
    %v2346 = vunpack.c.l.b16 %v2064
    %v2347 = vunpack.c.l.b16 %v2065
    %v2348 = vunpack.c.l.b16 %v2066
    %v2349 = vpack.c.b16 %v2346, %v2345
    %v2350 = vpack.c.b16 %v2348, %v2347
    %v2354 = vsel %vm96, %v2336, 0
    %2356 = vmatprep.subr.bf16.mxu0 0
    %2357 = vmatpush1.bf16.msra.mxu0 %v2349
    %2358 = vmatprep.subr.bf16.mxu0 0
    %2359 = vmatpush1.bf16.msra.mxu0 %v2350
    %2360 = vmatprep.subr.bf16.mxu0 0
    %2361 = vmatpush1.bf16.msra.mxu0 0
    %2362 = vmatprep.subr.bf16.mxu0 0
    %2363 = vmatpush1.bf16.msra.mxu0 0
    %2364 = vmatprep.subr.bf16.mxu0 0
    %2365 = vmatpush1.bf16.msra.mxu0 0
    %2366 = vmatprep.subr.bf16.mxu0 0
    %2367 = vmatpush1.bf16.msra.mxu0 0
    %2368 = vmatprep.subr.bf16.mxu0 0
    %2369 = vmatpush1.bf16.msra.mxu0 0
    %2370 = vmatprep.subr.bf16.mxu0 0
    %2371 = vmatpush1.bf16.msra.mxu0 0
    %2372 = vmatprep.subr.bf16.mxu0 0
    %2373 = vmatpush1.bf16.msra.mxu0 0
    %2374 = vmatprep.subr.bf16.mxu0 0
    %2375 = vmatpush1.bf16.msra.mxu0 0
    %2376 = vmatprep.subr.bf16.mxu0 0
    %2377 = vmatpush1.bf16.msra.mxu0 0
    %2378 = vmatprep.subr.bf16.mxu0 0
    %2379 = vmatpush1.bf16.msra.mxu0 0
    %2380 = vmatprep.subr.bf16.mxu0 0
    %2381 = vmatpush1.bf16.msra.mxu0 0
    %2382 = vmatprep.subr.bf16.mxu0 0
    %2383 = vmatpush1.bf16.msra.mxu0 0
    %2384 = vmatprep.subr.bf16.mxu0 0
    %2385 = vmatpush1.bf16.msra.mxu0 0
    %2386 = vmatprep.subr.bf16.mxu0 0
    %2387 = vmatpush1.bf16.msra.mxu0 0
    %2388 = vmatprep.mubr.bf16.mxu0 0
    %2389 = vmatmul.mubr.bf16.gmra.mrb[0].mxu0 %v2354
    %v2390 = vpop.f32.mrb[0].mxu0
    %v2391 = vadd.f32 %v2340, %v2390
    %v2392 = vpop.f32.mrb[0].mxu0
    %v2393 = vpop.f32.mrb[0].mxu0
    %v2394 = vpop.f32.mrb[0].mxu0
    %2395 = vdwg.mxu0
    %v2396 = vmul.f32 %v2391, 0.5
    %v2397 = vmul.f32 %v2391, 0.70710677
    %vm2398 = vcmp.ge.f32.partialorder %v2397, 0.0
    %v2399 = vsel %vm2398, 1.0, -1.0
    %v2400 = vand.u32 2147483647, %v2397
    %v2401 = vmul.f32 %v2400, 0.3275911
    %v2402 = vadd.f32 %v2401, 1.0
    %v2403 = vrcp.pop %v2402
    %v2404 = vmul.f32 1.0, %v2403
    %v2405 = vmul.f32 %v2404, 1.0614054
    %v2406 = vadd.f32 %v2405, -1.4531521
    %v2407 = vmul.f32 %v2406, %v2404
    %v2408 = vadd.f32 %v2407, 1.4214138
    %v2409 = vmul.f32 %v2408, %v2404
    %v2410 = vadd.f32 %v2409, -0.28449672
    %v2411 = vmul.f32 %v2410, %v2404
    %v2412 = vadd.f32 %v2411, 0.2548296
    %v2413 = vmul.f32 %v2412, %v2404
    %v2414 = vsub.f32 0.0, %v2400
    %v2415 = vmul.f32 %v2414, %v2400
    %v2416 = vmul.f32 %v2415, 1.442695
    %v2417 = vpow.pop %v2416
    %v2418 = vmul.f32 %v2413, %v2417
    %v2419 = vsub.f32 1.0, %v2418
    %v2420 = vmul.f32 %v2399, %v2419
    %v2421 = vadd.f32 %v2420, 1.0
    %v2422 = vmul.f32 %v2396, %v2421
    %v2423 = vpack.c.bf16 %v2422, %v2422
    %v2424 = vlaneseq
    %v2425 = vshrl.u32 %v2424, 7
    %v2426 = vsub.s32 0, %v2425
    %v2427 = vrot.slane %v2074, %v2426
    %v2432 = vunpack.c.l.b16 %v2067
    %v2433 = vunpack.c.l.b16 %v2068
    %v2434 = vunpack.c.l.b16 %v2069
    %v2435 = vunpack.c.l.b16 %v2070
    %v2436 = vpack.c.b16 %v2433, %v2432
    %v2437 = vpack.c.b16 %v2435, %v2434
    %v2441 = vsel %vm96, %v2423, 0
    %2443 = vmatprep.subr.bf16.mxu0 0
    %2444 = vmatpush1.bf16.msra.mxu0 %v2436
    %2445 = vmatprep.subr.bf16.mxu0 0
    %2446 = vmatpush1.bf16.msra.mxu0 %v2437
    %2447 = vmatprep.subr.bf16.mxu0 0
    %2448 = vmatpush1.bf16.msra.mxu0 0
    %2449 = vmatprep.subr.bf16.mxu0 0
    %2450 = vmatpush1.bf16.msra.mxu0 0
    %2451 = vmatprep.subr.bf16.mxu0 0
    %2452 = vmatpush1.bf16.msra.mxu0 0
    %2453 = vmatprep.subr.bf16.mxu0 0
    %2454 = vmatpush1.bf16.msra.mxu0 0
    %2455 = vmatprep.subr.bf16.mxu0 0
    %2456 = vmatpush1.bf16.msra.mxu0 0
    %2457 = vmatprep.subr.bf16.mxu0 0
    %2458 = vmatpush1.bf16.msra.mxu0 0
    %2459 = vmatprep.subr.bf16.mxu0 0
    %2460 = vmatpush1.bf16.msra.mxu0 0
    %2461 = vmatprep.subr.bf16.mxu0 0
    %2462 = vmatpush1.bf16.msra.mxu0 0
    %2463 = vmatprep.subr.bf16.mxu0 0
    %2464 = vmatpush1.bf16.msra.mxu0 0
    %2465 = vmatprep.subr.bf16.mxu0 0
    %2466 = vmatpush1.bf16.msra.mxu0 0
    %2467 = vmatprep.subr.bf16.mxu0 0
    %2468 = vmatpush1.bf16.msra.mxu0 0
    %2469 = vmatprep.subr.bf16.mxu0 0
    %2470 = vmatpush1.bf16.msra.mxu0 0
    %2471 = vmatprep.subr.bf16.mxu0 0
    %2472 = vmatpush1.bf16.msra.mxu0 0
    %2473 = vmatprep.subr.bf16.mxu0 0
    %2474 = vmatpush1.bf16.msra.mxu0 0
    %2475 = vmatprep.mubr.bf16.mxu0 0
    %2476 = vmatmul.mubr.bf16.gmra.mrb[0].mxu0 %v2441
    %v2477 = vpop.f32.mrb[0].mxu0
    %v2478 = vadd.f32 %v2427, %v2477
    %v2479 = vpop.f32.mrb[0].mxu0
    %v2480 = vpop.f32.mrb[0].mxu0
    %v2481 = vpop.f32.mrb[0].mxu0
    %2482 = vdwg.mxu0
    %v2483 = vadd.f32 %v2335, %v2478
    %v2484 = vsel %vm96, %v2483, 0.0
    %2485 = vadd.xlane.f32.xlu0 %v2484
    %v2486 = vpop.xlane.xlu0 %2485
    %v2487 = vmul.f32 %v2486, %v478
    %v2488 = vmul.f32 %v2483, %v2483
    %v2489 = vsel %vm96, %v2488, 0.0
    %2490 = vadd.xlane.f32.xlu0 %v2489
    %v2491 = vpop.xlane.xlu0 %2490
    %v2492 = vmul.f32 %v2491, %v478
    %v2493 = vmul.f32 %v2487, %v2487
    %v2494 = vsub.f32 %v2492, %v2493
    %v2495 = vsub.f32 %v2483, %v2487
    %v2496 = vadd.f32 %v2494, 1e-05
    %v2497 = vrsqrt.pop %v2496
    %v2498 = vmul.f32 %v2495, %v2497
    %v2499 = vlaneseq
    %v2500 = vshrl.u32 %v2499, 7
    %v2501 = vsub.s32 0, %v2500
    %v2502 = vrot.slane %v2077, %v2501
    %v2503 = vmul.f32 %v2498, %v2502
    %v2504 = vlaneseq
    %v2505 = vshrl.u32 %v2504, 7
    %v2506 = vsub.s32 0, %v2505
    %v2507 = vrot.slane %v2078, %v2506
    %v2508 = vadd.f32 %v2503, %v2507
    %v2509 = vld [vmem:[%s1 + $0xc0] sm:$0xf]
    %v2510 = vld [vmem:[%s1 + $0xc4] sm:$0xf]
    %v2511 = vld [vmem:[%s1 + $0xc8] sm:$0xf]
    %v2512 = vld [vmem:[%s1 + $0xcc] sm:$0xf]
    %v2513 = vld [vmem:[%s1 + $0xd0] sm:$0xf]
    %v2514 = vld [vmem:[%s1 + $0xd4] sm:$0xf]
    %v2515 = vld [vmem:[%s1 + $0xd8] sm:$0xf]
    %v2516 = vld [vmem:[%s1 + $0xdc] sm:$0xf]
    %v2517 = vld [vmem:[%s1 + $0xe0] sm:$0xf]
    %v2518 = vld [vmem:[%s1 + $0xe4] sm:$0xf]
    %v2519 = vld [vmem:[%s1 + $0xe8] sm:$0xf]
    %v2520 = vld [vmem:[%s1 + $0xec] sm:$0xf]
    %v2521 = vld [vmem:[%s1 + $0xf0] sm:$0xf]
    %v2522 = vld [vmem:[%s1 + $0xf4] sm:$0xf]
    %v2523 = vld [vmem:[%s1 + $0xf8] sm:$0xf]
    %v2524 = vld [vmem:[%s1 + $0xfc] sm:$0xf]
    %v2525 = vld [vmem:[%s2 + $0x18] sm:$0x1]
    %v2526 = vld [vmem:[%s2 + $0x19] sm:$0x1]
    %v2527 = vld [vmem:[%s2 + $0x1a] sm:$0x1]
    %v2528 = vld [vmem:[%s2 + $0x1b] sm:$0x1]
    %v2529 = vld [vmem:[%s2 + $0x1c] sm:$0x1]
    %v2530 = vld [vmem:[%s2 + $0x1d] sm:$0x1]
    %v2531 = vld [vmem:[%s2 + $0x1e] sm:$0x1]
    %v2532 = vld [vmem:[%s2 + $0x1f] sm:$0x1]
    %v2533 = vpack.c.bf16 %v2508, %v2508
    %v2534 = vlaneseq
    %v2535 = vshrl.u32 %v2534, 7
    %v2536 = vsub.s32 0, %v2535
    %v2537 = vrot.slane %v2525, %v2536
    %v2542 = vunpack.c.l.b16 %v2509
    %v2543 = vunpack.c.l.b16 %v2510
    %v2544 = vunpack.c.l.b16 %v2511
    %v2545 = vunpack.c.l.b16 %v2512
    %v2546 = vpack.c.b16 %v2543, %v2542
    %v2547 = vpack.c.b16 %v2545, %v2544
    %v2551 = vsel %vm96, %v2533, 0
    %2553 = vmatprep.subr.bf16.mxu0 0
    %2554 = vmatpush1.bf16.msra.mxu0 %v2546
    %2555 = vmatprep.subr.bf16.mxu0 0
    %2556 = vmatpush1.bf16.msra.mxu0 %v2547
    %2557 = vmatprep.subr.bf16.mxu0 0
    %2558 = vmatpush1.bf16.msra.mxu0 0
    %2559 = vmatprep.subr.bf16.mxu0 0
    %2560 = vmatpush1.bf16.msra.mxu0 0
    %2561 = vmatprep.subr.bf16.mxu0 0
    %2562 = vmatpush1.bf16.msra.mxu0 0
    %2563 = vmatprep.subr.bf16.mxu0 0
    %2564 = vmatpush1.bf16.msra.mxu0 0
    %2565 = vmatprep.subr.bf16.mxu0 0
    %2566 = vmatpush1.bf16.msra.mxu0 0
    %2567 = vmatprep.subr.bf16.mxu0 0
    %2568 = vmatpush1.bf16.msra.mxu0 0
    %2569 = vmatprep.subr.bf16.mxu0 0
    %2570 = vmatpush1.bf16.msra.mxu0 0
    %2571 = vmatprep.subr.bf16.mxu0 0
    %2572 = vmatpush1.bf16.msra.mxu0 0
    %2573 = vmatprep.subr.bf16.mxu0 0
    %2574 = vmatpush1.bf16.msra.mxu0 0
    %2575 = vmatprep.subr.bf16.mxu0 0
    %2576 = vmatpush1.bf16.msra.mxu0 0
    %2577 = vmatprep.subr.bf16.mxu0 0
    %2578 = vmatpush1.bf16.msra.mxu0 0
    %2579 = vmatprep.subr.bf16.mxu0 0
    %2580 = vmatpush1.bf16.msra.mxu0 0
    %2581 = vmatprep.subr.bf16.mxu0 0
    %2582 = vmatpush1.bf16.msra.mxu0 0
    %2583 = vmatprep.subr.bf16.mxu0 0
    %2584 = vmatpush1.bf16.msra.mxu0 0
    %2585 = vmatprep.mubr.bf16.mxu0 0
    %2586 = vmatmul.mubr.bf16.gmra.mrb[0].mxu0 %v2551
    %v2587 = vpop.f32.mrb[0].mxu0
    %v2588 = vadd.f32 %v2537, %v2587
    %v2589 = vpop.f32.mrb[0].mxu0
    %v2590 = vpop.f32.mrb[0].mxu0
    %v2591 = vpop.f32.mrb[0].mxu0
    %2592 = vdwg.mxu0
    %v2593 = vpack.c.bf16 %v2588, %v2588
    %2595 = vrot.lane.b32.xlu0 %v2593, 96
    %v2596 = vpop.permute.xlu0 %2595
    %v2598 = vsel %vm96, %v2593, 0
    %v2601 = vsel %vm96, %v2596, 0
    %2603 = vmatprep.subr.bf16.mxu0 0
    %2604 = vmatpush1.bf16.xpose.msra.mxu0 %v2601
    %2605 = vmatprep.subr.bf16.mxu0 0
    %2606 = vmatpush1.bf16.xpose.msra.mxu0 0
    %2607 = vmatprep.subr.bf16.mxu0 0
    %2608 = vmatpush1.bf16.xpose.msra.mxu0 0
    %2609 = vmatprep.subr.bf16.mxu0 0
    %2610 = vmatpush1.bf16.xpose.msra.mxu0 0
    %2611 = vmatprep.subr.bf16.mxu0 0
    %2612 = vmatpush1.bf16.xpose.msra.mxu0 0
    %2613 = vmatprep.subr.bf16.mxu0 0
    %2614 = vmatpush1.bf16.xpose.msra.mxu0 0
    %2615 = vmatprep.subr.bf16.mxu0 0
    %2616 = vmatpush1.bf16.xpose.msra.mxu0 0
    %2617 = vmatprep.subr.bf16.mxu0 0
    %2618 = vmatpush1.bf16.xpose.msra.mxu0 0
    %2619 = vmatprep.subr.bf16.mxu0 0
    %2620 = vmatpush1.bf16.xpose.msra.mxu0 0
    %2621 = vmatprep.subr.bf16.mxu0 0
    %2622 = vmatpush1.bf16.xpose.msra.mxu0 0
    %2623 = vmatprep.subr.bf16.mxu0 0
    %2624 = vmatpush1.bf16.xpose.msra.mxu0 0
    %2625 = vmatprep.subr.bf16.mxu0 0
    %2626 = vmatpush1.bf16.xpose.msra.mxu0 0
    %2627 = vmatprep.subr.bf16.mxu0 0
    %2628 = vmatpush1.bf16.xpose.msra.mxu0 0
    %2629 = vmatprep.subr.bf16.mxu0 0
    %2630 = vmatpush1.bf16.xpose.msra.mxu0 0
    %2631 = vmatprep.subr.bf16.mxu0 0
    %2632 = vmatpush1.bf16.xpose.msra.mxu0 0
    %2633 = vmatprep.subr.bf16.mxu0 0
    %2634 = vmatpush1.bf16.xpose.msra.mxu0 0
    %2635 = vmatprep.mubr.bf16.mxu0 0
    %2636 = vmatmul.mubr.bf16.gmra.mrb[0].mxu0 %v2598
    %v2637 = vpop.f32.mrb[0].mxu0
    %v2638 = vadd.f32 %v50, %v2637
    %v2639 = vpop.f32.mrb[0].mxu0
    %v2640 = vpop.f32.mrb[0].mxu0
    %v2641 = vpop.f32.mrb[0].mxu0
    %2642 = vdwg.mxu0
    %v2643 = vsel %vm2189, %v2638, -inf
    %2644 = vmax.xlane.f32.xlu0 %v2643
    %v2645 = vpop.xlane.xlu0 %2644
    %v2646 = vsub.f32 %v2638, %v2645
    %v2647 = vmul.f32 %v2646, 1.442695
    %v2648 = vpow.pop %v2647
    %v2649 = vsel %vm2189, %v2648, 0.0
    %2650 = vadd.xlane.f32.xlu0 %v2649
    %v2651 = vpop.xlane.xlu0 %2650
    %v2652 = vrcp.pop %v2651
    %v2653 = vmul.f32 %v2648, %v2652
    %v2654 = vpack.c.bf16 %v2653, %v2653
    %2655 = vrot.lane.b32.xlu0 %v2593, 64
    %v2656 = vpop.permute.xlu0 %2655
    %v2658 = vsel %vm2189, %v2654, 0
    %v2661 = vsel %vm324, %v2656, 0
    %2663 = vmatprep.subr.bf16.mxu0 0
    %2664 = vmatpush1.bf16.msra.mxu0 %v2661
    %2665 = vmatprep.subr.bf16.mxu0 0
    %2666 = vmatpush1.bf16.msra.mxu0 0
    %2667 = vmatprep.subr.bf16.mxu0 0
    %2668 = vmatpush1.bf16.msra.mxu0 0
    %2669 = vmatprep.subr.bf16.mxu0 0
    %2670 = vmatpush1.bf16.msra.mxu0 0
    %2671 = vmatprep.subr.bf16.mxu0 0
    %2672 = vmatpush1.bf16.msra.mxu0 0
    %2673 = vmatprep.subr.bf16.mxu0 0
    %2674 = vmatpush1.bf16.msra.mxu0 0
    %2675 = vmatprep.subr.bf16.mxu0 0
    %2676 = vmatpush1.bf16.msra.mxu0 0
    %2677 = vmatprep.subr.bf16.mxu0 0
    %2678 = vmatpush1.bf16.msra.mxu0 0
    %2679 = vmatprep.subr.bf16.mxu0 0
    %2680 = vmatpush1.bf16.msra.mxu0 0
    %2681 = vmatprep.subr.bf16.mxu0 0
    %2682 = vmatpush1.bf16.msra.mxu0 0
    %2683 = vmatprep.subr.bf16.mxu0 0
    %2684 = vmatpush1.bf16.msra.mxu0 0
    %2685 = vmatprep.subr.bf16.mxu0 0
    %2686 = vmatpush1.bf16.msra.mxu0 0
    %2687 = vmatprep.subr.bf16.mxu0 0
    %2688 = vmatpush1.bf16.msra.mxu0 0
    %2689 = vmatprep.subr.bf16.mxu0 0
    %2690 = vmatpush1.bf16.msra.mxu0 0
    %2691 = vmatprep.subr.bf16.mxu0 0
    %2692 = vmatpush1.bf16.msra.mxu0 0
    %2693 = vmatprep.subr.bf16.mxu0 0
    %2694 = vmatpush1.bf16.msra.mxu0 0
    %2695 = vmatprep.mubr.bf16.mxu0 0
    %2696 = vmatmul.mubr.bf16.gmra.mrb[0].mxu0 %v2658
    %v2697 = vpop.f32.mrb[0].mxu0
    %v2698 = vadd.f32 0.0, %v2697
    %v2699 = vpop.f32.mrb[0].mxu0
    %v2700 = vpop.f32.mrb[0].mxu0
    %v2701 = vpop.f32.mrb[0].mxu0
    %2702 = vdwg.mxu0
    %v2703 = vpack.c.bf16 %v2698, %v2698
    %v2704 = vlaneseq
    %v2705 = vshrl.u32 %v2704, 7
    %v2706 = vsub.s32 0, %v2705
    %v2707 = vrot.slane %v2526, %v2706
    %v2712 = vunpack.c.l.b16 %v2513
    %v2713 = vunpack.c.l.b16 %v2514
    %v2714 = vunpack.c.l.b16 %v2515
    %v2715 = vunpack.c.l.b16 %v2516
    %v2716 = vpack.c.b16 %v2713, %v2712
    %v2717 = vpack.c.b16 %v2715, %v2714
    %v2721 = vsel %vm96, %v2703, 0
    %2723 = vmatprep.subr.bf16.mxu0 0
    %2724 = vmatpush1.bf16.msra.mxu0 %v2716
    %2725 = vmatprep.subr.bf16.mxu0 0
    %2726 = vmatpush1.bf16.msra.mxu0 %v2717
    %2727 = vmatprep.subr.bf16.mxu0 0
    %2728 = vmatpush1.bf16.msra.mxu0 0
    %2729 = vmatprep.subr.bf16.mxu0 0
    %2730 = vmatpush1.bf16.msra.mxu0 0
    %2731 = vmatprep.subr.bf16.mxu0 0
    %2732 = vmatpush1.bf16.msra.mxu0 0
    %2733 = vmatprep.subr.bf16.mxu0 0
    %2734 = vmatpush1.bf16.msra.mxu0 0
    %2735 = vmatprep.subr.bf16.mxu0 0
    %2736 = vmatpush1.bf16.msra.mxu0 0
    %2737 = vmatprep.subr.bf16.mxu0 0
    %2738 = vmatpush1.bf16.msra.mxu0 0
    %2739 = vmatprep.subr.bf16.mxu0 0
    %2740 = vmatpush1.bf16.msra.mxu0 0
    %2741 = vmatprep.subr.bf16.mxu0 0
    %2742 = vmatpush1.bf16.msra.mxu0 0
    %2743 = vmatprep.subr.bf16.mxu0 0
    %2744 = vmatpush1.bf16.msra.mxu0 0
    %2745 = vmatprep.subr.bf16.mxu0 0
    %2746 = vmatpush1.bf16.msra.mxu0 0
    %2747 = vmatprep.subr.bf16.mxu0 0
    %2748 = vmatpush1.bf16.msra.mxu0 0
    %2749 = vmatprep.subr.bf16.mxu0 0
    %2750 = vmatpush1.bf16.msra.mxu0 0
    %2751 = vmatprep.subr.bf16.mxu0 0
    %2752 = vmatpush1.bf16.msra.mxu0 0
    %2753 = vmatprep.subr.bf16.mxu0 0
    %2754 = vmatpush1.bf16.msra.mxu0 0
    %2755 = vmatprep.mubr.bf16.mxu0 0
    %2756 = vmatmul.mubr.bf16.gmra.mrb[0].mxu0 %v2721
    %v2757 = vpop.f32.mrb[0].mxu0
    %v2758 = vadd.f32 %v2707, %v2757
    %v2759 = vpop.f32.mrb[0].mxu0
    %v2760 = vpop.f32.mrb[0].mxu0
    %v2761 = vpop.f32.mrb[0].mxu0
    %2762 = vdwg.mxu0
    %v2763 = vadd.f32 %v2508, %v2758
    %v2764 = vsel %vm96, %v2763, 0.0
    %2765 = vadd.xlane.f32.xlu0 %v2764
    %v2766 = vpop.xlane.xlu0 %2765
    %v2767 = vmul.f32 %v2766, %v478
    %v2768 = vmul.f32 %v2763, %v2763
    %v2769 = vsel %vm96, %v2768, 0.0
    %2770 = vadd.xlane.f32.xlu0 %v2769
    %v2771 = vpop.xlane.xlu0 %2770
    %v2772 = vmul.f32 %v2771, %v478
    %v2773 = vmul.f32 %v2767, %v2767
    %v2774 = vsub.f32 %v2772, %v2773
    %v2775 = vsub.f32 %v2763, %v2767
    %v2776 = vadd.f32 %v2774, 1e-05
    %v2777 = vrsqrt.pop %v2776
    %v2778 = vmul.f32 %v2775, %v2777
    %v2779 = vlaneseq
    %v2780 = vshrl.u32 %v2779, 7
    %v2781 = vsub.s32 0, %v2780
    %v2782 = vrot.slane %v2529, %v2781
    %v2783 = vmul.f32 %v2778, %v2782
    %v2784 = vlaneseq
    %v2785 = vshrl.u32 %v2784, 7
    %v2786 = vsub.s32 0, %v2785
    %v2787 = vrot.slane %v2530, %v2786
    %v2788 = vadd.f32 %v2783, %v2787
    %v2789 = vpack.c.bf16 %v2788, %v2788
    %v2790 = vlaneseq
    %v2791 = vshrl.u32 %v2790, 7
    %v2792 = vsub.s32 0, %v2791
    %v2793 = vrot.slane %v2527, %v2792
    %v2798 = vunpack.c.l.b16 %v2517
    %v2799 = vunpack.c.l.b16 %v2518
    %v2800 = vunpack.c.l.b16 %v2519
    %v2801 = vunpack.c.l.b16 %v2520
    %v2802 = vpack.c.b16 %v2799, %v2798
    %v2803 = vpack.c.b16 %v2801, %v2800
    %v2807 = vsel %vm96, %v2789, 0
    %2809 = vmatprep.subr.bf16.mxu0 0
    %2810 = vmatpush1.bf16.msra.mxu0 %v2802
    %2811 = vmatprep.subr.bf16.mxu0 0
    %2812 = vmatpush1.bf16.msra.mxu0 %v2803
    %2813 = vmatprep.subr.bf16.mxu0 0
    %2814 = vmatpush1.bf16.msra.mxu0 0
    %2815 = vmatprep.subr.bf16.mxu0 0
    %2816 = vmatpush1.bf16.msra.mxu0 0
    %2817 = vmatprep.subr.bf16.mxu0 0
    %2818 = vmatpush1.bf16.msra.mxu0 0
    %2819 = vmatprep.subr.bf16.mxu0 0
    %2820 = vmatpush1.bf16.msra.mxu0 0
    %2821 = vmatprep.subr.bf16.mxu0 0
    %2822 = vmatpush1.bf16.msra.mxu0 0
    %2823 = vmatprep.subr.bf16.mxu0 0
    %2824 = vmatpush1.bf16.msra.mxu0 0
    %2825 = vmatprep.subr.bf16.mxu0 0
    %2826 = vmatpush1.bf16.msra.mxu0 0
    %2827 = vmatprep.subr.bf16.mxu0 0
    %2828 = vmatpush1.bf16.msra.mxu0 0
    %2829 = vmatprep.subr.bf16.mxu0 0
    %2830 = vmatpush1.bf16.msra.mxu0 0
    %2831 = vmatprep.subr.bf16.mxu0 0
    %2832 = vmatpush1.bf16.msra.mxu0 0
    %2833 = vmatprep.subr.bf16.mxu0 0
    %2834 = vmatpush1.bf16.msra.mxu0 0
    %2835 = vmatprep.subr.bf16.mxu0 0
    %2836 = vmatpush1.bf16.msra.mxu0 0
    %2837 = vmatprep.subr.bf16.mxu0 0
    %2838 = vmatpush1.bf16.msra.mxu0 0
    %2839 = vmatprep.subr.bf16.mxu0 0
    %2840 = vmatpush1.bf16.msra.mxu0 0
    %2841 = vmatprep.mubr.bf16.mxu0 0
    %2842 = vmatmul.mubr.bf16.gmra.mrb[0].mxu0 %v2807
    %v2843 = vpop.f32.mrb[0].mxu0
    %v2844 = vadd.f32 %v2793, %v2843
    %v2845 = vpop.f32.mrb[0].mxu0
    %v2846 = vpop.f32.mrb[0].mxu0
    %v2847 = vpop.f32.mrb[0].mxu0
    %2848 = vdwg.mxu0
    %v2849 = vmul.f32 %v2844, 0.5
    %v2850 = vmul.f32 %v2844, 0.70710677
    %vm2851 = vcmp.ge.f32.partialorder %v2850, 0.0
    %v2852 = vsel %vm2851, 1.0, -1.0
    %v2853 = vand.u32 2147483647, %v2850
    %v2854 = vmul.f32 %v2853, 0.3275911
    %v2855 = vadd.f32 %v2854, 1.0
    %v2856 = vrcp.pop %v2855
    %v2857 = vmul.f32 1.0, %v2856
    %v2858 = vmul.f32 %v2857, 1.0614054
    %v2859 = vadd.f32 %v2858, -1.4531521
    %v2860 = vmul.f32 %v2859, %v2857
    %v2861 = vadd.f32 %v2860, 1.4214138
    %v2862 = vmul.f32 %v2861, %v2857
    %v2863 = vadd.f32 %v2862, -0.28449672
    %v2864 = vmul.f32 %v2863, %v2857
    %v2865 = vadd.f32 %v2864, 0.2548296
    %v2866 = vmul.f32 %v2865, %v2857
    %v2867 = vsub.f32 0.0, %v2853
    %v2868 = vmul.f32 %v2867, %v2853
    %v2869 = vmul.f32 %v2868, 1.442695
    %v2870 = vpow.pop %v2869
    %v2871 = vmul.f32 %v2866, %v2870
    %v2872 = vsub.f32 1.0, %v2871
    %v2873 = vmul.f32 %v2852, %v2872
    %v2874 = vadd.f32 %v2873, 1.0
    %v2875 = vmul.f32 %v2849, %v2874
    %v2876 = vpack.c.bf16 %v2875, %v2875
    %v2877 = vlaneseq
    %v2878 = vshrl.u32 %v2877, 7
    %v2879 = vsub.s32 0, %v2878
    %v2880 = vrot.slane %v2528, %v2879
    %v2885 = vunpack.c.l.b16 %v2521
    %v2886 = vunpack.c.l.b16 %v2522
    %v2887 = vunpack.c.l.b16 %v2523
    %v2888 = vunpack.c.l.b16 %v2524
    %v2889 = vpack.c.b16 %v2886, %v2885
    %v2890 = vpack.c.b16 %v2888, %v2887
    %v2894 = vsel %vm96, %v2876, 0
    %2896 = vmatprep.subr.bf16.mxu0 0
    %2897 = vmatpush1.bf16.msra.mxu0 %v2889
    %2898 = vmatprep.subr.bf16.mxu0 0
    %2899 = vmatpush1.bf16.msra.mxu0 %v2890
    %2900 = vmatprep.subr.bf16.mxu0 0
    %2901 = vmatpush1.bf16.msra.mxu0 0
    %2902 = vmatprep.subr.bf16.mxu0 0
    %2903 = vmatpush1.bf16.msra.mxu0 0
    %2904 = vmatprep.subr.bf16.mxu0 0
    %2905 = vmatpush1.bf16.msra.mxu0 0
    %2906 = vmatprep.subr.bf16.mxu0 0
    %2907 = vmatpush1.bf16.msra.mxu0 0
    %2908 = vmatprep.subr.bf16.mxu0 0
    %2909 = vmatpush1.bf16.msra.mxu0 0
    %2910 = vmatprep.subr.bf16.mxu0 0
    %2911 = vmatpush1.bf16.msra.mxu0 0
    %2912 = vmatprep.subr.bf16.mxu0 0
    %2913 = vmatpush1.bf16.msra.mxu0 0
    %2914 = vmatprep.subr.bf16.mxu0 0
    %2915 = vmatpush1.bf16.msra.mxu0 0
    %2916 = vmatprep.subr.bf16.mxu0 0
    %2917 = vmatpush1.bf16.msra.mxu0 0
    %2918 = vmatprep.subr.bf16.mxu0 0
    %2919 = vmatpush1.bf16.msra.mxu0 0
    %2920 = vmatprep.subr.bf16.mxu0 0
    %2921 = vmatpush1.bf16.msra.mxu0 0
    %2922 = vmatprep.subr.bf16.mxu0 0
    %2923 = vmatpush1.bf16.msra.mxu0 0
    %2924 = vmatprep.subr.bf16.mxu0 0
    %2925 = vmatpush1.bf16.msra.mxu0 0
    %2926 = vmatprep.subr.bf16.mxu0 0
    %2927 = vmatpush1.bf16.msra.mxu0 0
    %2928 = vmatprep.mubr.bf16.mxu0 0
    %2929 = vmatmul.mubr.bf16.gmra.mrb[0].mxu0 %v2894
    %v2930 = vpop.f32.mrb[0].mxu0
    %v2931 = vadd.f32 %v2880, %v2930
    %v2932 = vpop.f32.mrb[0].mxu0
    %v2933 = vpop.f32.mrb[0].mxu0
    %v2934 = vpop.f32.mrb[0].mxu0
    %2935 = vdwg.mxu0
    %v2936 = vadd.f32 %v2788, %v2931
    %v2937 = vsel %vm96, %v2936, 0.0
    %2938 = vadd.xlane.f32.xlu0 %v2937
    %v2939 = vpop.xlane.xlu0 %2938
    %v2940 = vmul.f32 %v2939, %v478
    %v2941 = vmul.f32 %v2936, %v2936
    %v2942 = vsel %vm96, %v2941, 0.0
    %2943 = vadd.xlane.f32.xlu0 %v2942
    %v2944 = vpop.xlane.xlu0 %2943
    %v2945 = vmul.f32 %v2944, %v478
    %v2946 = vmul.f32 %v2940, %v2940
    %v2947 = vsub.f32 %v2945, %v2946
    %v2948 = vsub.f32 %v2936, %v2940
    %v2949 = vadd.f32 %v2947, 1e-05
    %v2950 = vrsqrt.pop %v2949
    %v2951 = vmul.f32 %v2948, %v2950
    %v2952 = vlaneseq
    %v2953 = vshrl.u32 %v2952, 7
    %v2954 = vsub.s32 0, %v2953
    %v2955 = vrot.slane %v2531, %v2954
    %v2956 = vmul.f32 %v2951, %v2955
    %v2957 = vlaneseq
    %v2958 = vshrl.u32 %v2957, 7
    %v2959 = vsub.s32 0, %v2958
    %v2960 = vrot.slane %v2532, %v2959
    %v2961 = vadd.f32 %v2956, %v2960
    %v2962 = vld [vmem:[%s2 + $0x20] sm:$0x1]
    %v2963 = vld [vmem:[%s2 + $0x21] sm:$0x1]
    %vm2964 = vcmask 254976
    %v2965 = vsel %vm2964, %v2961, 0.0
    %2966 = vadd.xlane.f32.xlu0 %v2965
    %v2967 = vpop.xlane.xlu0 %2966
    %v2968 = vmul.f32 %v2967, %v478
    %v2969 = vmul.f32 %v2961, %v2961
    %v2970 = vsel %vm2964, %v2969, 0.0
    %2971 = vadd.xlane.f32.xlu0 %v2970
    %v2972 = vpop.xlane.xlu0 %2971
    %v2973 = vmul.f32 %v2972, %v478
    %v2974 = vmul.f32 %v2968, %v2968
    %v2975 = vsub.f32 %v2973, %v2974
    %v2976 = vsub.f32 %v2961, %v2968
    %v2977 = vadd.f32 %v2975, 1e-06
    %v2978 = vrsqrt.pop %v2977
    %v2979 = vmul.f32 %v2976, %v2978
    %v2980 = vlaneseq
    %v2981 = vshrl.u32 %v2980, 7
    %v2982 = vsub.s32 0, %v2981
    %v2983 = vrot.slane %v2962, %v2982
    %v2984 = vmul.f32 %v2979, %v2983
    %v2985 = vlaneseq
    %v2986 = vshrl.u32 %v2985, 7
    %v2987 = vsub.s32 0, %v2986
    %v2988 = vrot.slane %v2963, %v2987
    %v2989 = vadd.f32 %v2984, %v2988
    %v2990 = vld [vmem:[%s1 + $0x100] sm:$0xf]
    %v2991 = vld [vmem:[%s1 + $0x104] sm:$0xf]
    %v2992 = vld [vmem:[%s1 + $0x108] sm:$0xf]
    %v2993 = vld [vmem:[%s1 + $0x10c] sm:$0xf]
    %v2994 = vld [vmem:[%s2 + $0x22] sm:$0x1]
    %v2995 = vpack.c.bf16 %v2989, %v2989
    %v2996 = vlaneseq
    %v2997 = vshrl.u32 %v2996, 7
    %v2998 = vsub.s32 0, %v2997
    %v2999 = vrot.slane %v2994, %v2998
    %v3004 = vunpack.c.l.b16 %v2990
    %v3005 = vunpack.c.l.b16 %v2991
    %v3006 = vunpack.c.l.b16 %v2992
    %v3007 = vunpack.c.l.b16 %v2993
    %v3008 = vpack.c.b16 %v3005, %v3004
    %v3009 = vpack.c.b16 %v3007, %v3006
    %v3013 = vsel %vm96, %v2995, 0
    %3015 = vmatprep.subr.bf16.mxu0 0
    %3016 = vmatpush1.bf16.msra.mxu0 %v3008
    %3017 = vmatprep.subr.bf16.mxu0 0
    %3018 = vmatpush1.bf16.msra.mxu0 %v3009
    %3019 = vmatprep.subr.bf16.mxu0 0
    %3020 = vmatpush1.bf16.msra.mxu0 0
    %3021 = vmatprep.subr.bf16.mxu0 0
    %3022 = vmatpush1.bf16.msra.mxu0 0
    %3023 = vmatprep.subr.bf16.mxu0 0
    %3024 = vmatpush1.bf16.msra.mxu0 0
    %3025 = vmatprep.subr.bf16.mxu0 0
    %3026 = vmatpush1.bf16.msra.mxu0 0
    %3027 = vmatprep.subr.bf16.mxu0 0
    %3028 = vmatpush1.bf16.msra.mxu0 0
    %3029 = vmatprep.subr.bf16.mxu0 0
    %3030 = vmatpush1.bf16.msra.mxu0 0
    %3031 = vmatprep.subr.bf16.mxu0 0
    %3032 = vmatpush1.bf16.msra.mxu0 0
    %3033 = vmatprep.subr.bf16.mxu0 0
    %3034 = vmatpush1.bf16.msra.mxu0 0
    %3035 = vmatprep.subr.bf16.mxu0 0
    %3036 = vmatpush1.bf16.msra.mxu0 0
    %3037 = vmatprep.subr.bf16.mxu0 0
    %3038 = vmatpush1.bf16.msra.mxu0 0
    %3039 = vmatprep.subr.bf16.mxu0 0
    %3040 = vmatpush1.bf16.msra.mxu0 0
    %3041 = vmatprep.subr.bf16.mxu0 0
    %3042 = vmatpush1.bf16.msra.mxu0 0
    %3043 = vmatprep.subr.bf16.mxu0 0
    %3044 = vmatpush1.bf16.msra.mxu0 0
    %3045 = vmatprep.subr.bf16.mxu0 0
    %3046 = vmatpush1.bf16.msra.mxu0 0
    %3047 = vmatprep.mubr.bf16.mxu0 0
    %3048 = vmatmul.mubr.bf16.gmra.mrb[0].mxu0 %v3013
    %v3049 = vpop.f32.mrb[0].mxu0
    %v3050 = vadd.f32 %v2999, %v3049
    %v3051 = vpop.f32.mrb[0].mxu0
    %v3052 = vpop.f32.mrb[0].mxu0
    %v3053 = vpop.f32.mrb[0].mxu0
    %3054 = vdwg.mxu0
    %3055 = vst [vmem:[#allocation2] sm:$0x3] %v3050
    // Predicated region
    $region14: #{_lambda_.1} parent=1 // pred_check
      _
    $region15: #{_lambda_.1} parent=1 // pred_check_branch
      %3057 = sbr.rel (0) target = $region17
    $region16: #{_lambda_.1} parent=1 // pred_region
      %s3059 = ssub.s32 32, 32
      %3060 = vsyncadd [#allocation3], %s3059
      %s3062 = sshll.u32 [#allocation2], 4
      %s3063 = int_to_ptr.vmem [resolvable:$true] %s3062
      %3065 = dma.vmem_to_hbm [thread:$0]  %s3063, 32, %s3, [#allocation3]
    $region17: #{_lambda_.1} parent=1 // pred_fallthru
      _
    // Predicated region
    $region18: #{_lambda_.1} parent=1 // pred_check
      _
    $region19: #{_lambda_.1} parent=1 // pred_check_branch
      %3067 = sbr.rel (0) target = $region21
    $region20: #{_lambda_.1} parent=1 // pred_region
      %3068 = dma.done [#allocation3], 32
    $region21: #{_lambda_.1} parent=1 // pred_fallthru
      _
    %3069 = vsyncpa [#allocation3], 1

</llo_original>
